<compile_context>
chip_gen: v7x
topology: tpu7x:2x2x1
jax: 0.10.0
libtpu: 0.0.40
codegen_flags: <defaults>
</compile_context>

<pallas_src>
import jax
import jax.numpy as jnp
from jax import lax
from jax.experimental import pallas as pl
from jax.experimental.pallas import tpu as pltpu


# Contract Cin: lhs [Cin, P] x rhs [Cin, tn] -> [P, tn]  (transposed-LHS matmul).
_TN_DIM_NUMBERS = (((0,), (0,)), ((), ()))
_BN_EPS = 1.0e-3


def _fused_add_conv1x1_bn_kernel(x1_ref, x2_ref, w_ref, gb_ref, o_ref):
    # x1, x2: [Cin, P]  f32  (full arrays; block index constant over the grid)
    # w:      [Cin, tn] bf16 (streamed per Cout tile, double-buffered)
    # gb:     [2, tn]   f32  (row 0 = gamma, row 1 = beta)
    # o:      [P, tn]   f32  (lane-dense: Cout tile on the 128-lane axis)

    # Elementwise add + bf16 cast.  Tiny (Cin*P elements); recomputed per Cout tile so
    # every grid step is independent -> the grid axis is safely "parallel" (megacore).
    s = (x1_ref[...] + x2_ref[...]).astype(jnp.bfloat16)

    # 1x1 conv == matmul on the MXU, contracting Cin; f32 accumulation.
    y = lax.dot_general(
        s, w_ref[...], _TN_DIM_NUMBERS, preferred_element_type=jnp.float32
    )  # [P, tn] f32

    # BatchNorm (training-mode forward, biased variance) with two-pass (centered)
    # statistics over the un-tiled P axis; per-channel params are [1, tn] row vectors.
    p = y.shape[0]
    inv_p = 1.0 / p
    mean = jnp.sum(y, axis=0, keepdims=True) * inv_p              # [1, tn]
    centered = y - mean                                           # [P, tn]
    var = jnp.sum(centered * centered, axis=0, keepdims=True) * inv_p
    gamma = gb_ref[0:1, :]                                        # [1, tn]
    beta = gb_ref[1:2, :]                                         # [1, tn]
    scale = gamma * lax.rsqrt(var + _BN_EPS)
    o_ref[...] = (centered * scale + beta).astype(o_ref.dtype)


def prepare_conv_bn_params(weight, gamma, beta):
    """One-time (init-time) parameter prep; NOT part of the per-call path.

    weight: [Cout, Cin, 1, 1] f32 -> [Cin, Cout] bf16 (stored persistently in bf16)
    gamma, beta: [Cout] f32       -> packed [2, Cout] f32
    """
    cout, cin = weight.shape[0], weight.shape[1]
    w_mat = weight.reshape(cout, cin).T.astype(jnp.bfloat16)       # [Cin, Cout] bf16
    gb = jnp.stack(
        [gamma.astype(jnp.float32), beta.astype(jnp.float32)], axis=0
    )                                                              # [2, Cout] f32
    return w_mat, gb


def fused_add_conv1x1_bn(x878, x863, w_mat, gb, *, tn=1152):
    """x878, x863: [N, Cin, H, W] f32; w_mat: [Cin, Cout] bf16; gb: [2, Cout] f32."""
    n, cin, h, w = x878.shape
    cin_w, cout = w_mat.shape
    assert cin_w == cin
    p = n * h * w
    assert cout % tn == 0 and tn % 128 == 0, "Cout tile must be a 128-multiple divisor"

    # NCHW -> [Cin, P].  For N == 1 this is a pure reshape (no transpose op).
    def to_cp(x):
        if n == 1:
            return x.reshape(cin, h * w)
        return jnp.transpose(x, (1, 0, 2, 3)).reshape(cin, p)

    x1 = to_cp(x878)
    x2 = to_cp(x863)

    bytes_accessed = (
        2 * cin * p * 4          # x1, x2 (f32)
        + cin * cout * 2         # weight (bf16)
        + 2 * cout * 4           # gamma/beta
        + p * cout * 4           # output (f32)
    )
    cost = pl.CostEstimate(
        flops=2 * p * cin * cout,
        transcendentals=cout,          # rsqrt per channel
        bytes_accessed=bytes_accessed,
    )

    out_flat = pl.pallas_call(
        _fused_add_conv1x1_bn_kernel,
        out_shape=jax.ShapeDtypeStruct((p, cout), jnp.float32),
        grid=(cout // tn,),
        in_specs=[
            pl.BlockSpec((cin, p), lambda j: (0, 0)),    # x1: full, shared by all tiles
            pl.BlockSpec((cin, p), lambda j: (0, 0)),    # x2: full, shared by all tiles
            pl.BlockSpec((cin, tn), lambda j: (0, j)),   # weight: streamed over Cout
            pl.BlockSpec((2, tn), lambda j: (0, j)),     # packed gamma/beta tile
        ],
        out_specs=pl.BlockSpec((p, tn), lambda j: (0, j)),
        compiler_params=pltpu.CompilerParams(
            dimension_semantics=("parallel",),           # 1 tile per v7x TensorCore
        ),
        cost_estimate=cost,
    )(x1, x2, w_mat, gb)

    # [P, Cout] (lane-dense) -> NCHW.  Single post-kernel relayout at the jit boundary.
    return jnp.transpose(out_flat.reshape(n, h, w, cout), (0, 3, 1, 2))


def _reference(x878, x863, weight, gamma, beta, eps=_BN_EPS):
    """Pure-JAX f32 reference of the PyTorch module's forward (batch-stat BN)."""
    x = x878 + x863
    n, cin, h, w = x.shape
    cout = weight.shape[0]
    wm = weight.reshape(cout, cin)
    y = jnp.einsum("oc,ncp->nop", wm, x.reshape(n, cin, h * w)).reshape(n, cout, h, w)
    mean = jnp.mean(y, axis=(0, 2, 3), keepdims=True)
    var = jnp.mean((y - mean) ** 2, axis=(0, 2, 3), keepdims=True)  # biased
    return (
        gamma.reshape(1, cout, 1, 1) * (y - mean) * lax.rsqrt(var + eps)
        + beta.reshape(1, cout, 1, 1)
    )


if __name__ == "__main__":
    key = jax.random.PRNGKey(0)
    k1, k2, k3, k4, k5 = jax.random.split(key, 5)

    # Shapes of the original module: x in [1, 384, 7, 7], Conv2d(384 -> 2304, 1x1).
    N, CIN, H, W = 1, 384, 7, 7
    COUT = 2304

    x878 = jax.random.normal(k1, (N, CIN, H, W), dtype=jnp.float32)
    x863 = jax.random.normal(k2, (N, CIN, H, W), dtype=jnp.float32)
    weight = jax.random.normal(k3, (COUT, CIN, 1, 1), dtype=jnp.float32) * 0.05
    gamma = 1.0 + 0.1 * jax.random.normal(k4, (COUT,), dtype=jnp.float32)
    beta = 0.1 * jax.random.normal(k5, (COUT,), dtype=jnp.float32)

    # One-time parameter prep (outside the per-call / jitted path).
    w_mat, gb = prepare_conv_bn_params(weight, gamma, beta)
    jax.block_until_ready((w_mat, gb))

    fused = jax.jit(fused_add_conv1x1_bn)
    out = fused(x878, x863, w_mat, gb)
    jax.block_until_ready(out)
    assert out.shape == (N, COUT, H, W)

    # Validate against the f32 reference.  Matmul runs in bf16 (f32 accumulation), so
    # typical max-abs error is ~1e-2; assert with a generous but meaningful bound.
    ref = _reference(x878, x863, weight, gamma, beta)
    max_err = float(jnp.max(jnp.abs(out - ref)))
    assert max_err < 0.1, f"max abs error vs f32 reference too large: {max_err}"

    # TODO(synk): BatchNorm running_mean/running_var in-place momentum updates
    # (training-mode side effect) are not emitted; they do not affect the returned tensor.
    print("KERNEL_OK")
</pallas_src>

<mosaic_0001>
module attributes {stable_mosaic.version = 11 : i64} {
  func.func @_fused_add_conv1x1_bn_kernel(%arg0: i32, %arg1: memref<384x49xf32, #tpu.memory_space<vmem>>, %arg2: memref<384x49xf32, #tpu.memory_space<vmem>>, %arg3: memref<384x1152xbf16, #tpu.memory_space<vmem>>, %arg4: memref<2x1152xf32, #tpu.memory_space<vmem>>, %arg5: memref<49x1152xf32, #tpu.memory_space<vmem>>) attributes {dimension_semantics = [#tpu.dimension_semantics<parallel>], iteration_bounds = array<i64: 2>, scalar_prefetch = 0 : i64, scratch_operands = 0 : i64, tpu.core_type = #tpu.core_type<tc>, window_params = [{pipeline_mode = #tpu.pipeline_mode<synchronous>, transform_indices = @transform_0, window_bounds = array<i64: 384, 49>}, {pipeline_mode = #tpu.pipeline_mode<synchronous>, transform_indices = @transform_1, window_bounds = array<i64: 384, 49>}, {transform_indices = @transform_2, window_bounds = array<i64: 384, 1152>}, {transform_indices = @transform_3, window_bounds = array<i64: 2, 1152>}, {transform_indices = @transform_4, window_bounds = array<i64: 49, 1152>}]} {
    %c0 = arith.constant 0 : index
    %c0_0 = arith.constant 0 : index
    %0 = vector.load %arg1[%c0, %c0_0] : memref<384x49xf32, #tpu.memory_space<vmem>>, vector<384x49xf32>
    %c0_1 = arith.constant 0 : index
    %c0_2 = arith.constant 0 : index
    %1 = vector.load %arg2[%c0_1, %c0_2] : memref<384x49xf32, #tpu.memory_space<vmem>>, vector<384x49xf32>
    %2 = arith.addf %0, %1 : vector<384x49xf32>
    %3 = arith.truncf %2 : vector<384x49xf32> to vector<384x49xbf16>
    %c0_3 = arith.constant 0 : index
    %c0_4 = arith.constant 0 : index
    %4 = vector.load %arg3[%c0_3, %c0_4] : memref<384x1152xbf16, #tpu.memory_space<vmem>>, vector<384x1152xbf16>
    %cst = arith.constant dense<0.000000e+00> : vector<49x1152xf32>
    %5 = tpu.matmul %3, %4, %cst {dimension_numbers = #tpu.dot_dimension_numbers<[0], [0], [1], [1], [0, 1, 1, 1], [], []>} : vector<384x49xbf16>, vector<384x1152xbf16>, vector<49x1152xf32> -> vector<49x1152xf32>
    %cst_5 = arith.constant dense<0.000000e+00> : vector<1152xf32>
    %6 = vector.multi_reduction <add>, %5, %cst_5 [0] : vector<49x1152xf32> to vector<1152xf32>
    %7 = vector.shape_cast %6 : vector<1152xf32> to vector<1x1152xf32>
    %cst_6 = arith.constant 0.0204081628 : f32
    %8 = vector.broadcast %cst_6 : f32 to vector<1x1152xf32>
    %9 = arith.mulf %7, %8 : vector<1x1152xf32>
    %10 = vector.broadcast %9 : vector<1x1152xf32> to vector<49x1152xf32>
    %11 = arith.subf %5, %10 : vector<49x1152xf32>
    %12 = arith.mulf %11, %11 : vector<49x1152xf32>
    %cst_7 = arith.constant dense<0.000000e+00> : vector<1152xf32>
    %13 = vector.multi_reduction <add>, %12, %cst_7 [0] : vector<49x1152xf32> to vector<1152xf32>
    %14 = vector.shape_cast %13 : vector<1152xf32> to vector<1x1152xf32>
    %cst_8 = arith.constant 0.0204081628 : f32
    %15 = vector.broadcast %cst_8 : f32 to vector<1x1152xf32>
    %16 = arith.mulf %14, %15 : vector<1x1152xf32>
    %c0_9 = arith.constant 0 : index
    %c0_10 = arith.constant 0 : index
    %17 = vector.load %arg4[%c0_9, %c0_10] : memref<2x1152xf32, #tpu.memory_space<vmem>>, vector<1x1152xf32>
    %c1 = arith.constant 1 : index
    %c0_11 = arith.constant 0 : index
    %18 = vector.load %arg4[%c1, %c0_11] : memref<2x1152xf32, #tpu.memory_space<vmem>>, vector<1x1152xf32>
    %cst_12 = arith.constant 1.000000e-03 : f32
    %19 = vector.broadcast %cst_12 : f32 to vector<1x1152xf32>
    %20 = arith.addf %16, %19 : vector<1x1152xf32>
    %21 = math.rsqrt %20 : vector<1x1152xf32>
    %22 = arith.mulf %17, %21 : vector<1x1152xf32>
    %23 = vector.broadcast %22 : vector<1x1152xf32> to vector<49x1152xf32>
    %24 = arith.mulf %11, %23 : vector<49x1152xf32>
    %25 = vector.broadcast %18 : vector<1x1152xf32> to vector<49x1152xf32>
    %26 = arith.addf %24, %25 : vector<49x1152xf32>
    %c0_13 = arith.constant 0 : index
    %c0_14 = arith.constant 0 : index
    %27 = vector.load %arg5[%c0_13, %c0_14] : memref<49x1152xf32, #tpu.memory_space<vmem>>, vector<49x1152xf32>
    tpu.vector_store %arg5[%c0_13, %c0_14], %26 {strides = array<i32>} : memref<49x1152xf32, #tpu.memory_space<vmem>>, vector<49x1152xf32>,
    return
  }
  func.func @transform_0(%arg0: i32) -> (i32, i32) {
    %c0_i32 = arith.constant 0 : i32
    %c0_i32_0 = arith.constant 0 : i32
    %c0_i32_1 = arith.constant 0 : i32
    return %c0_i32, %c0_i32_0 : i32, i32
  }
  func.func @transform_1(%arg0: i32) -> (i32, i32) {
    %c0_i32 = arith.constant 0 : i32
    %c0_i32_0 = arith.constant 0 : i32
    %c0_i32_1 = arith.constant 0 : i32
    return %c0_i32, %c0_i32_0 : i32, i32
  }
  func.func @transform_2(%arg0: i32) -> (i32, i32) {
    %c0_i32 = arith.constant 0 : i32
    %c0_i32_0 = arith.constant 0 : i32
    return %c0_i32, %arg0 : i32, i32
  }
  func.func @transform_3(%arg0: i32) -> (i32, i32) {
    %c0_i32 = arith.constant 0 : i32
    %c0_i32_0 = arith.constant 0 : i32
    return %c0_i32, %arg0 : i32, i32
  }
  func.func @transform_4(%arg0: i32) -> (i32, i32) {
    %c0_i32 = arith.constant 0 : i32
    %c0_i32_0 = arith.constant 0 : i32
    return %c0_i32, %arg0 : i32, i32
  }
}

</mosaic_0001>

<llo_original>
// kernel: fused_add_conv1x1_bn.1
$region0: #{fused_add_conv1x1_bn.1}
  #allocation0 [shape = 'u32[]', space=smem, size = 0x4, offset = 0x4, fixed_abs, tag = 'smem constant byte address 0x4 - core index']
  #allocation1 [shape = 'u32[144,128]{1,0:T(1,128)}', space=vmem, size = 0x12000, scoped, tag = 'internal scratch']
  %s0 = inlined_call_operand.vmem [shape: f32[384,49], index: 0, kind: input, shape index: {}]
  %s1 = inlined_call_operand.vmem [shape: f32[384,49], index: 1, kind: input, shape index: {}]
  %s2 = inlined_call_operand.hbm [shape: bf16[384,2304], index: 2, kind: input, shape index: {}]
  %s3 = inlined_call_operand.hbm [shape: f32[2,2304], index: 3, kind: input, shape index: {}]
  %s4 = inlined_call_operand.vmem [shape: f32[49,2304], index: 4, kind: output, shape index: {}]
  %s5 = sld [smem:[#allocation0]]
  $region76: #{fused_add_conv1x1_bn.1} parent=0
    _
  %s7 = ssub.s32 1, %s5
  %s8 = scalar_select 0, %s7, %s5
  $region1: #{fused_add_conv1x1_bn.1} parent=0
    #allocation2 [shape = 'u8[1769472]{0}', space=vmem, size = 0x1b0000, scoped, tag = 'input window, operand 2']
    #allocation3 [shape = 's32[2]{0}', space=sflag, size = 0x8, scoped, tag = 'scoped memory for fused_add_conv1x1_bn.1']
    #allocation4 [shape = 'u8[18432]{0}', space=vmem, size = 0x4800, scoped, tag = 'input window, operand 3']
    #allocation5 [shape = 's32[2]{0}', space=sflag, size = 0x8, scoped, tag = 'scoped memory for fused_add_conv1x1_bn.1']
    #allocation6 [shape = 'u8[516096]{0}', space=vmem, size = 0x7e000, scoped, tag = 'output window, operand 0']
    %9 = vsyncpa [#allocation3], 0
    %s10 = scalar_lea.sflag [#allocation3], 1
    %11 = vsyncpa %s10, 0
    %12 = vsyncpa [#allocation5], 0
    %s13 = scalar_lea.sflag [#allocation5], 1
    %14 = vsyncpa %s13, 0
    loop: start=0, step=1, limit=4
    $region2: #{fused_add_conv1x1_bn.1} parent=1 // loop_pre_header
      _
    $region3: #{fused_add_conv1x1_bn.1} parent=1 // loop_header
      %s16 = sphi 0, %s20
      %p17 = scmp.ge.s32.totalorder %s16, 4
      %s24 = sphi 0, %s24
      %s26 = sphi 0, %s24
      %s27 = sphi 0, %s26
      %s41 = sphi 0, %s27
      %s45 = sphi 0, %s45
      %s47 = sphi 0, %s45
      %s48 = sphi 0, %s47
      %s62 = sphi 0, %s48
      %s68 = sphi 0, %s70
      %s71 = sphi 0, %s68
      %s72 = sphi 0, %s71
      %s88 = sphi 0, %s72
      %s94 = sphi 0, %s96
      %s97 = sphi 0, %s94
      %s98 = sphi 0, %s97
      %s114 = sphi 0, %s98
      %s120 = sphi 0, %s122
      %s123 = sphi 0, %s120
      %s124 = sphi 0, %s123
      %s140 = sphi 0, %s124
    $region4: #{fused_add_conv1x1_bn.1} parent=1 // loop_header_branch
      %19 = sbr.rel (%p17) target = $region8
    $region5: #{fused_add_conv1x1_bn.1} parent=1 // loop_body
      %s21 = ssub.s32 %s16, 1
      %s22 = ssub.s32 %s16, 2
      %s23 = sadd.s32 %s16, 1
      %s25 = sadd.s32 %s24, 1
      %p28 = scmp.eq.s32.totalorder %s16, 1
      %p29 = scmp.ne.s32.totalorder %s24, %s26
      %p30 = scmp.eq.s32.totalorder %s16, 0
      %p31 = por %p29, %p30
      %p32 = scmp.ne.s32.totalorder %s24, %s26
      %p33 = scmp.eq.s32.totalorder %s21, 1
      %p34 = por %p32, %p33
      %p35 = scmp.ne.s32.totalorder %s26, %s27
      %p36 = scmp.eq.s32.totalorder %s21, 0
      %p37 = por %p35, %p36
      %p38 = scmp.ne.s32.totalorder %s26, %s27
      %p39 = scmp.eq.s32.totalorder %s22, 1
      %p40 = por %p38, %p39
      %p42 = scmp.ne.s32.totalorder %s27, %s41
      %p43 = scmp.eq.s32.totalorder %s22, 0
      %p44 = por %p42, %p43
      %s46 = sadd.s32 %s45, 1
      %p49 = scmp.eq.s32.totalorder %s16, 1
      %p50 = scmp.ne.s32.totalorder %s45, %s47
      %p51 = scmp.eq.s32.totalorder %s16, 0
      %p52 = por %p50, %p51
      %p53 = scmp.ne.s32.totalorder %s45, %s47
      %p54 = scmp.eq.s32.totalorder %s21, 1
      %p55 = por %p53, %p54
      %p56 = scmp.ne.s32.totalorder %s47, %s48
      %p57 = scmp.eq.s32.totalorder %s21, 0
      %p58 = por %p56, %p57
      %p59 = scmp.ne.s32.totalorder %s47, %s48
      %p60 = scmp.eq.s32.totalorder %s22, 1
      %p61 = por %p59, %p60
      %p63 = scmp.ne.s32.totalorder %s48, %s62
      %p64 = scmp.eq.s32.totalorder %s22, 0
      %p65 = por %p63, %p64
      %s66 = ssub.s32 %s16, %s23
      %p67 = scmp.eq.s32.totalorder %s66, 0
      %s69 = sadd.s32 %s68, 1
      %s70 = scalar_select %p67, %s68, %s69
      %p73 = pneg %p67
      %p74 = scmp.eq.s32.totalorder %s16, 1
      %p75 = por %p73, %p74
      %p76 = scmp.ne.s32.totalorder %s68, %s71
      %p77 = scmp.eq.s32.totalorder %s16, 0
      %p78 = por %p76, %p77
      %p79 = scmp.ne.s32.totalorder %s68, %s71
      %p80 = scmp.eq.s32.totalorder %s21, 1
      %p81 = por %p79, %p80
      %p82 = scmp.ne.s32.totalorder %s71, %s72
      %p83 = scmp.eq.s32.totalorder %s21, 0
      %p84 = por %p82, %p83
      %p85 = scmp.ne.s32.totalorder %s71, %s72
      %p86 = scmp.eq.s32.totalorder %s22, 1
      %p87 = por %p85, %p86
      %p89 = scmp.ne.s32.totalorder %s72, %s88
      %p90 = scmp.eq.s32.totalorder %s22, 0
      %p91 = por %p89, %p90
      %s92 = ssub.s32 %s16, %s23
      %p93 = scmp.eq.s32.totalorder %s92, 0
      %s95 = sadd.s32 %s94, 1
      %s96 = scalar_select %p93, %s94, %s95
      %p99 = pneg %p93
      %p100 = scmp.eq.s32.totalorder %s16, 1
      %p101 = por %p99, %p100
      %p102 = scmp.ne.s32.totalorder %s94, %s97
      %p103 = scmp.eq.s32.totalorder %s16, 0
      %p104 = por %p102, %p103
      %p105 = scmp.ne.s32.totalorder %s94, %s97
      %p106 = scmp.eq.s32.totalorder %s21, 1
      %p107 = por %p105, %p106
      %p108 = scmp.ne.s32.totalorder %s97, %s98
      %p109 = scmp.eq.s32.totalorder %s21, 0
      %p110 = por %p108, %p109
      %p111 = scmp.ne.s32.totalorder %s97, %s98
      %p112 = scmp.eq.s32.totalorder %s22, 1
      %p113 = por %p111, %p112
      %p115 = scmp.ne.s32.totalorder %s98, %s114
      %p116 = scmp.eq.s32.totalorder %s22, 0
      %p117 = por %p115, %p116
      %s118 = ssub.s32 %s16, %s23
      %p119 = scmp.eq.s32.totalorder %s118, 0
      %s121 = sadd.s32 %s120, 1
      %s122 = scalar_select %p119, %s120, %s121
      %p125 = pneg %p119
      %p126 = scmp.eq.s32.totalorder %s16, 1
      %p127 = por %p125, %p126
      %p128 = scmp.ne.s32.totalorder %s120, %s123
      %p129 = scmp.eq.s32.totalorder %s16, 0
      %p130 = por %p128, %p129
      %p131 = scmp.ne.s32.totalorder %s120, %s123
      %p132 = scmp.eq.s32.totalorder %s21, 1
      %p133 = por %p131, %p132
      %p134 = scmp.ne.s32.totalorder %s123, %s124
      %p135 = scmp.eq.s32.totalorder %s21, 0
      %p136 = por %p134, %p135
      %p137 = scmp.ne.s32.totalorder %s123, %s124
      %p138 = scmp.eq.s32.totalorder %s22, 1
      %p139 = por %p137, %p138
      %p141 = scmp.ne.s32.totalorder %s124, %s140
      %p142 = scmp.eq.s32.totalorder %s22, 0
      %p143 = por %p141, %p142
      %p144 = scmp.le.s32.totalorder 1, %s16
      %p145 = scmp.lt.s32.totalorder %s16, 3
      %p146 = pnand %p144, %p145
      %p147 = pneg %p146
      // Predicated region
      $region9: #{fused_add_conv1x1_bn.1} parent=5 // pred_check
        _
      $region10: #{fused_add_conv1x1_bn.1} parent=5 // pred_check_branch
        %149 = sbr.rel (%p146) target = $region12
      $region11: #{fused_add_conv1x1_bn.1} parent=5 // pred_region
        %s150 = ssub.s32 %s16, 1
        // Predicated region
        $region13: #{fused_add_conv1x1_bn.1} parent=11 // pred_check
          %p151 = pneg %p37
        $region14: #{fused_add_conv1x1_bn.1} parent=11 // pred_check_branch
          %153 = sbr.rel (%p151) target = $region16
        $region15: #{fused_add_conv1x1_bn.1} parent=11 // pred_region
          _
        $region16: #{fused_add_conv1x1_bn.1} parent=11 // pred_fallthru
          _
        // Predicated region
        $region17: #{fused_add_conv1x1_bn.1} parent=11 // pred_check
          %p154 = pneg %p58
        $region18: #{fused_add_conv1x1_bn.1} parent=11 // pred_check_branch
          %156 = sbr.rel (%p154) target = $region20
        $region19: #{fused_add_conv1x1_bn.1} parent=11 // pred_region
          _
        $region20: #{fused_add_conv1x1_bn.1} parent=11 // pred_fallthru
          _
      $region12: #{fused_add_conv1x1_bn.1} parent=5 // pred_fallthru
        _
      %p157 = scmp.lt.s32.totalorder %s16, 2
      // Predicated region
      $region21: #{fused_add_conv1x1_bn.1} parent=5 // pred_check
        %p158 = pneg %p157
      $region22: #{fused_add_conv1x1_bn.1} parent=5 // pred_check_branch
        %160 = sbr.rel (%p158) target = $region24
      $region23: #{fused_add_conv1x1_bn.1} parent=5 // pred_region
        // Predicated region
        $region25: #{fused_add_conv1x1_bn.1} parent=23 // pred_check
          %p161 = pneg %p78
        $region26: #{fused_add_conv1x1_bn.1} parent=23 // pred_check_branch
          %163 = sbr.rel (%p161) target = $region28
        $region27: #{fused_add_conv1x1_bn.1} parent=23 // pred_region
          %s164 = sand.u32 %s68, 1
          %s165 = scalar_lea.sflag [#allocation3], %s164
          %s166 = sand.u32 %s68, 1
          %s167 = smul.addr %s166, 1728
          %s168 = scalar_lea.vmem [#allocation2], %s167
          %s169 = smul.u32 9, %s16
          %s171 = ssub.s32 27648, 27648
          %172 = vsyncadd %s165, %s171
          %s173 = smul.addr %s169, 64
          %s174 = scalar_lea.hbm %s2, %s173
          %s175 = sshll.u32 %s168, 4
          %s176 = int_to_ptr.vmem [resolvable:$true] %s175
          %181 = dma.hbm_to_vmem [thread:$0]  %s174, 27648, %s176, %s165, 1152, 576, 36
        $region28: #{fused_add_conv1x1_bn.1} parent=23 // pred_fallthru
          _
        // Predicated region
        $region29: #{fused_add_conv1x1_bn.1} parent=23 // pred_check
          %p182 = pneg %p104
        $region30: #{fused_add_conv1x1_bn.1} parent=23 // pred_check_branch
          %184 = sbr.rel (%p182) target = $region32
        $region31: #{fused_add_conv1x1_bn.1} parent=23 // pred_region
          %s185 = sand.u32 %s94, 1
          %s186 = scalar_lea.sflag [#allocation5], %s185
          %s187 = sand.u32 %s94, 1
          %s188 = smul.addr %s187, 18
          %s189 = scalar_lea.vmem [#allocation4], %s188
          %s190 = smul.u32 9, %s16
          %s192 = ssub.s32 288, 288
          %193 = vsyncadd %s186, %s192
          %s194 = smul.addr %s190, 32
          %s195 = scalar_lea.hbm %s3, %s194
          %s197 = sshll.u32 %s189, 4
          %s198 = int_to_ptr.vmem [resolvable:$true] %s197
          %200 = dma.hbm_to_vmem [thread:$0]  %s195, 288, %s198, %s186
        $region32: #{fused_add_conv1x1_bn.1} parent=23 // pred_fallthru
          _
      $region24: #{fused_add_conv1x1_bn.1} parent=5 // pred_fallthru
        _
      %p201 = scmp.le.s32.totalorder 1, %s16
      %p202 = scmp.lt.s32.totalorder %s16, 3
      %p203 = pnand %p201, %p202
      %p204 = pneg %p203
      // Predicated region
      $region33: #{fused_add_conv1x1_bn.1} parent=5 // pred_check
        _
      $region34: #{fused_add_conv1x1_bn.1} parent=5 // pred_check_branch
        %206 = sbr.rel (%p203) target = $region36
      $region35: #{fused_add_conv1x1_bn.1} parent=5 // pred_region
        %s207 = ssub.s32 %s16, 1
        %s208 = sand.u32 %s71, 1
        %s209 = scalar_lea.sflag [#allocation3], %s208
        %s210 = sand.u32 %s71, 1
        %s211 = smul.addr %s210, 1728
        %s212 = scalar_lea.vmem [#allocation2], %s211
        // Predicated region
        $region37: #{fused_add_conv1x1_bn.1} parent=35 // pred_check
          %p213 = pneg %p84
        $region38: #{fused_add_conv1x1_bn.1} parent=35 // pred_check_branch
          %215 = sbr.rel (%p213) target = $region40
        $region39: #{fused_add_conv1x1_bn.1} parent=35 // pred_region
          %216 = dma.done %s209, 27648
        $region40: #{fused_add_conv1x1_bn.1} parent=35 // pred_fallthru
          _
        %s217 = sand.u32 %s97, 1
        %s218 = scalar_lea.sflag [#allocation5], %s217
        %s219 = sand.u32 %s97, 1
        %s220 = smul.addr %s219, 18
        %s221 = scalar_lea.vmem [#allocation4], %s220
        // Predicated region
        $region41: #{fused_add_conv1x1_bn.1} parent=35 // pred_check
          %p222 = pneg %p110
        $region42: #{fused_add_conv1x1_bn.1} parent=35 // pred_check_branch
          %224 = sbr.rel (%p222) target = $region44
        $region43: #{fused_add_conv1x1_bn.1} parent=35 // pred_region
          %225 = dma.done %s218, 288
        $region44: #{fused_add_conv1x1_bn.1} parent=35 // pred_fallthru
          _
        %p226 = pneg %p37
        %p227 = pneg %p34
        %p228 = pneg %p58
        %p229 = pneg %p55
        %s230 = sand.u32 %s71, 1
        %s231 = scalar_lea.sflag [#allocation3], %s230
        %s232 = sand.u32 %s71, 1
        %s233 = smul.addr %s232, 1728
        %s234 = scalar_lea.vmem [#allocation2], %s233
        %p235 = pneg %p84
        %p236 = pneg %p81
        %s237 = sand.u32 %s97, 1
        %s238 = scalar_lea.sflag [#allocation5], %s237
        %s239 = sand.u32 %s97, 1
        %s240 = smul.addr %s239, 18
        %s241 = scalar_lea.vmem [#allocation4], %s240
        %p242 = pneg %p110
        %p243 = pneg %p107
        %p244 = pneg %p136
        %p245 = pneg %p133
        %s246 = sand.u32 %s123, 1
        %s247 = sand.u32 %s123, 1
        %s248 = smul.addr %s247, 504
        %s249 = scalar_lea.vmem [#allocation6], %s248
        %s250 = smul.u32 9, %s21
        %s251 = smul.u32 9, %s21
        %s252 = smul.u32 9, %s21
        %v254 = vld [vmem:[%s0] sm:$0xff]
        %v255 = vld [vmem:[%s0 + $0x8] sm:$0xff]
        %v256 = vld [vmem:[%s0 + $0x10] sm:$0xff]
        %v257 = vld [vmem:[%s0 + $0x18] sm:$0xff]
        %v258 = vld [vmem:[%s0 + $0x20] sm:$0xff]
        %v259 = vld [vmem:[%s0 + $0x28] sm:$0xff]
        %v260 = vld [vmem:[%s0 + $0x30] sm:$0xff]
        %v261 = vld [vmem:[%s0 + $0x38] sm:$0xff]
        %v262 = vld [vmem:[%s0 + $0x40] sm:$0xff]
        %v263 = vld [vmem:[%s0 + $0x48] sm:$0xff]
        %v264 = vld [vmem:[%s0 + $0x50] sm:$0xff]
        %v265 = vld [vmem:[%s0 + $0x58] sm:$0xff]
        %v266 = vld [vmem:[%s0 + $0x60] sm:$0xff]
        %v267 = vld [vmem:[%s0 + $0x68] sm:$0xff]
        %v268 = vld [vmem:[%s0 + $0x70] sm:$0xff]
        %v269 = vld [vmem:[%s0 + $0x78] sm:$0xff]
        %v270 = vld [vmem:[%s0 + $0x80] sm:$0xff]
        %v271 = vld [vmem:[%s0 + $0x88] sm:$0xff]
        %v272 = vld [vmem:[%s0 + $0x90] sm:$0xff]
        %v273 = vld [vmem:[%s0 + $0x98] sm:$0xff]
        %v274 = vld [vmem:[%s0 + $0xa0] sm:$0xff]
        %v275 = vld [vmem:[%s0 + $0xa8] sm:$0xff]
        %v276 = vld [vmem:[%s0 + $0xb0] sm:$0xff]
        %v277 = vld [vmem:[%s0 + $0xb8] sm:$0xff]
        %v278 = vld [vmem:[%s0 + $0xc0] sm:$0xff]
        %v279 = vld [vmem:[%s0 + $0xc8] sm:$0xff]
        %v280 = vld [vmem:[%s0 + $0xd0] sm:$0xff]
        %v281 = vld [vmem:[%s0 + $0xd8] sm:$0xff]
        %v282 = vld [vmem:[%s0 + $0xe0] sm:$0xff]
        %v283 = vld [vmem:[%s0 + $0xe8] sm:$0xff]
        %v284 = vld [vmem:[%s0 + $0xf0] sm:$0xff]
        %v285 = vld [vmem:[%s0 + $0xf8] sm:$0xff]
        %v286 = vld [vmem:[%s0 + $0x100] sm:$0xff]
        %v287 = vld [vmem:[%s0 + $0x108] sm:$0xff]
        %v288 = vld [vmem:[%s0 + $0x110] sm:$0xff]
        %v289 = vld [vmem:[%s0 + $0x118] sm:$0xff]
        %v290 = vld [vmem:[%s0 + $0x120] sm:$0xff]
        %v291 = vld [vmem:[%s0 + $0x128] sm:$0xff]
        %v292 = vld [vmem:[%s0 + $0x130] sm:$0xff]
        %v293 = vld [vmem:[%s0 + $0x138] sm:$0xff]
        %v294 = vld [vmem:[%s0 + $0x140] sm:$0xff]
        %v295 = vld [vmem:[%s0 + $0x148] sm:$0xff]
        %v296 = vld [vmem:[%s0 + $0x150] sm:$0xff]
        %v297 = vld [vmem:[%s0 + $0x158] sm:$0xff]
        %v298 = vld [vmem:[%s0 + $0x160] sm:$0xff]
        %v299 = vld [vmem:[%s0 + $0x168] sm:$0xff]
        %v300 = vld [vmem:[%s0 + $0x170] sm:$0xff]
        %v301 = vld [vmem:[%s0 + $0x178] sm:$0xff]
        %v302 = vld [vmem:[%s1] sm:$0xff]
        %v303 = vld [vmem:[%s1 + $0x8] sm:$0xff]
        %v304 = vld [vmem:[%s1 + $0x10] sm:$0xff]
        %v305 = vld [vmem:[%s1 + $0x18] sm:$0xff]
        %v306 = vld [vmem:[%s1 + $0x20] sm:$0xff]
        %v307 = vld [vmem:[%s1 + $0x28] sm:$0xff]
        %v308 = vld [vmem:[%s1 + $0x30] sm:$0xff]
        %v309 = vld [vmem:[%s1 + $0x38] sm:$0xff]
        %v310 = vld [vmem:[%s1 + $0x40] sm:$0xff]
        %v311 = vld [vmem:[%s1 + $0x48] sm:$0xff]
        %v312 = vld [vmem:[%s1 + $0x50] sm:$0xff]
        %v313 = vld [vmem:[%s1 + $0x58] sm:$0xff]
        %v314 = vld [vmem:[%s1 + $0x60] sm:$0xff]
        %v315 = vld [vmem:[%s1 + $0x68] sm:$0xff]
        %v316 = vld [vmem:[%s1 + $0x70] sm:$0xff]
        %v317 = vld [vmem:[%s1 + $0x78] sm:$0xff]
        %v318 = vld [vmem:[%s1 + $0x80] sm:$0xff]
        %v319 = vld [vmem:[%s1 + $0x88] sm:$0xff]
        %v320 = vld [vmem:[%s1 + $0x90] sm:$0xff]
        %v321 = vld [vmem:[%s1 + $0x98] sm:$0xff]
        %v322 = vld [vmem:[%s1 + $0xa0] sm:$0xff]
        %v323 = vld [vmem:[%s1 + $0xa8] sm:$0xff]
        %v324 = vld [vmem:[%s1 + $0xb0] sm:$0xff]
        %v325 = vld [vmem:[%s1 + $0xb8] sm:$0xff]
        %v326 = vld [vmem:[%s1 + $0xc0] sm:$0xff]
        %v327 = vld [vmem:[%s1 + $0xc8] sm:$0xff]
        %v328 = vld [vmem:[%s1 + $0xd0] sm:$0xff]
        %v329 = vld [vmem:[%s1 + $0xd8] sm:$0xff]
        %v330 = vld [vmem:[%s1 + $0xe0] sm:$0xff]
        %v331 = vld [vmem:[%s1 + $0xe8] sm:$0xff]
        %v332 = vld [vmem:[%s1 + $0xf0] sm:$0xff]
        %v333 = vld [vmem:[%s1 + $0xf8] sm:$0xff]
        %v334 = vld [vmem:[%s1 + $0x100] sm:$0xff]
        %v335 = vld [vmem:[%s1 + $0x108] sm:$0xff]
        %v336 = vld [vmem:[%s1 + $0x110] sm:$0xff]
        %v337 = vld [vmem:[%s1 + $0x118] sm:$0xff]
        %v338 = vld [vmem:[%s1 + $0x120] sm:$0xff]
        %v339 = vld [vmem:[%s1 + $0x128] sm:$0xff]
        %v340 = vld [vmem:[%s1 + $0x130] sm:$0xff]
        %v341 = vld [vmem:[%s1 + $0x138] sm:$0xff]
        %v342 = vld [vmem:[%s1 + $0x140] sm:$0xff]
        %v343 = vld [vmem:[%s1 + $0x148] sm:$0xff]
        %v344 = vld [vmem:[%s1 + $0x150] sm:$0xff]
        %v345 = vld [vmem:[%s1 + $0x158] sm:$0xff]
        %v346 = vld [vmem:[%s1 + $0x160] sm:$0xff]
        %v347 = vld [vmem:[%s1 + $0x168] sm:$0xff]
        %v348 = vld [vmem:[%s1 + $0x170] sm:$0xff]
        %v349 = vld [vmem:[%s1 + $0x178] sm:$0xff]
        %v350 = vadd.f32 %v254, %v302
        %v351 = vadd.f32 %v255, %v303
        %v352 = vadd.f32 %v256, %v304
        %v353 = vadd.f32 %v257, %v305
        %v354 = vadd.f32 %v258, %v306
        %v355 = vadd.f32 %v259, %v307
        %v356 = vadd.f32 %v260, %v308
        %v357 = vadd.f32 %v261, %v309
        %v358 = vadd.f32 %v262, %v310
        %v359 = vadd.f32 %v263, %v311
        %v360 = vadd.f32 %v264, %v312
        %v361 = vadd.f32 %v265, %v313
        %v362 = vadd.f32 %v266, %v314
        %v363 = vadd.f32 %v267, %v315
        %v364 = vadd.f32 %v268, %v316
        %v365 = vadd.f32 %v269, %v317
        %v366 = vadd.f32 %v270, %v318
        %v367 = vadd.f32 %v271, %v319
        %v368 = vadd.f32 %v272, %v320
        %v369 = vadd.f32 %v273, %v321
        %v370 = vadd.f32 %v274, %v322
        %v371 = vadd.f32 %v275, %v323
        %v372 = vadd.f32 %v276, %v324
        %v373 = vadd.f32 %v277, %v325
        %v374 = vadd.f32 %v278, %v326
        %v375 = vadd.f32 %v279, %v327
        %v376 = vadd.f32 %v280, %v328
        %v377 = vadd.f32 %v281, %v329
        %v378 = vadd.f32 %v282, %v330
        %v379 = vadd.f32 %v283, %v331
        %v380 = vadd.f32 %v284, %v332
        %v381 = vadd.f32 %v285, %v333
        %v382 = vadd.f32 %v286, %v334
        %v383 = vadd.f32 %v287, %v335
        %v384 = vadd.f32 %v288, %v336
        %v385 = vadd.f32 %v289, %v337
        %v386 = vadd.f32 %v290, %v338
        %v387 = vadd.f32 %v291, %v339
        %v388 = vadd.f32 %v292, %v340
        %v389 = vadd.f32 %v293, %v341
        %v390 = vadd.f32 %v294, %v342
        %v391 = vadd.f32 %v295, %v343
        %v392 = vadd.f32 %v296, %v344
        %v393 = vadd.f32 %v297, %v345
        %v394 = vadd.f32 %v298, %v346
        %v395 = vadd.f32 %v299, %v347
        %v396 = vadd.f32 %v300, %v348
        %v397 = vadd.f32 %v301, %v349
        %v398 = vpack.c.bf16 %v351, %v350
        %v399 = vpack.c.bf16 %v353, %v352
        %v400 = vpack.c.bf16 %v355, %v354
        %v401 = vpack.c.bf16 %v357, %v356
        %v402 = vpack.c.bf16 %v359, %v358
        %v403 = vpack.c.bf16 %v361, %v360
        %v404 = vpack.c.bf16 %v363, %v362
        %v405 = vpack.c.bf16 %v365, %v364
        %v406 = vpack.c.bf16 %v367, %v366
        %v407 = vpack.c.bf16 %v369, %v368
        %v408 = vpack.c.bf16 %v371, %v370
        %v409 = vpack.c.bf16 %v373, %v372
        %v410 = vpack.c.bf16 %v375, %v374
        %v411 = vpack.c.bf16 %v377, %v376
        %v412 = vpack.c.bf16 %v379, %v378
        %v413 = vpack.c.bf16 %v381, %v380
        %v414 = vpack.c.bf16 %v383, %v382
        %v415 = vpack.c.bf16 %v385, %v384
        %v416 = vpack.c.bf16 %v387, %v386
        %v417 = vpack.c.bf16 %v389, %v388
        %v418 = vpack.c.bf16 %v391, %v390
        %v419 = vpack.c.bf16 %v393, %v392
        %v420 = vpack.c.bf16 %v395, %v394
        %v421 = vpack.c.bf16 %v397, %v396
        %v422 = vld [vmem:[%s212] sm:$0xff]
        %v423 = vld [vmem:[%s212 + $0x8] sm:$0xff]
        %v424 = vld [vmem:[%s212 + $0x10] sm:$0xff]
        %v425 = vld [vmem:[%s212 + $0x18] sm:$0xff]
        %v426 = vld [vmem:[%s212 + $0x20] sm:$0xf]
        %v427 = vld [vmem:[%s212 + $0x24] sm:$0xff]
        %v428 = vld [vmem:[%s212 + $0x2c] sm:$0xff]
        %v429 = vld [vmem:[%s212 + $0x34] sm:$0xff]
        %v430 = vld [vmem:[%s212 + $0x3c] sm:$0xff]
        %v431 = vld [vmem:[%s212 + $0x44] sm:$0xf]
        %v432 = vld [vmem:[%s212 + $0x48] sm:$0xff]
        %v433 = vld [vmem:[%s212 + $0x50] sm:$0xff]
        %v434 = vld [vmem:[%s212 + $0x58] sm:$0xff]
        %v435 = vld [vmem:[%s212 + $0x60] sm:$0xff]
        %v436 = vld [vmem:[%s212 + $0x68] sm:$0xf]
        %v437 = vld [vmem:[%s212 + $0x6c] sm:$0xff]
        %v438 = vld [vmem:[%s212 + $0x74] sm:$0xff]
        %v439 = vld [vmem:[%s212 + $0x7c] sm:$0xff]
        %v440 = vld [vmem:[%s212 + $0x84] sm:$0xff]
        %v441 = vld [vmem:[%s212 + $0x8c] sm:$0xf]
        %v442 = vld [vmem:[%s212 + $0x90] sm:$0xff]
        %v443 = vld [vmem:[%s212 + $0x98] sm:$0xff]
        %v444 = vld [vmem:[%s212 + $0xa0] sm:$0xff]
        %v445 = vld [vmem:[%s212 + $0xa8] sm:$0xff]
        %v446 = vld [vmem:[%s212 + $0xb0] sm:$0xf]
        %v447 = vld [vmem:[%s212 + $0xb4] sm:$0xff]
        %v448 = vld [vmem:[%s212 + $0xbc] sm:$0xff]
        %v449 = vld [vmem:[%s212 + $0xc4] sm:$0xff]
        %v450 = vld [vmem:[%s212 + $0xcc] sm:$0xff]
        %v451 = vld [vmem:[%s212 + $0xd4] sm:$0xf]
        %v452 = vld [vmem:[%s212 + $0xd8] sm:$0xff]
        %v453 = vld [vmem:[%s212 + $0xe0] sm:$0xff]
        %v454 = vld [vmem:[%s212 + $0xe8] sm:$0xff]
        %v455 = vld [vmem:[%s212 + $0xf0] sm:$0xff]
        %v456 = vld [vmem:[%s212 + $0xf8] sm:$0xf]
        %v457 = vld [vmem:[%s212 + $0xfc] sm:$0xff]
        %v458 = vld [vmem:[%s212 + $0x104] sm:$0xff]
        %v459 = vld [vmem:[%s212 + $0x10c] sm:$0xff]
        %v460 = vld [vmem:[%s212 + $0x114] sm:$0xff]
        %v461 = vld [vmem:[%s212 + $0x11c] sm:$0xf]
        %v462 = vld [vmem:[%s212 + $0x120] sm:$0xff]
        %v463 = vld [vmem:[%s212 + $0x128] sm:$0xff]
        %v464 = vld [vmem:[%s212 + $0x130] sm:$0xff]
        %v465 = vld [vmem:[%s212 + $0x138] sm:$0xff]
        %v466 = vld [vmem:[%s212 + $0x140] sm:$0xf]
        %v467 = vld [vmem:[%s212 + $0x144] sm:$0xff]
        %v468 = vld [vmem:[%s212 + $0x14c] sm:$0xff]
        %v469 = vld [vmem:[%s212 + $0x154] sm:$0xff]
        %v470 = vld [vmem:[%s212 + $0x15c] sm:$0xff]
        %v471 = vld [vmem:[%s212 + $0x164] sm:$0xf]
        %v472 = vld [vmem:[%s212 + $0x168] sm:$0xff]
        %v473 = vld [vmem:[%s212 + $0x170] sm:$0xff]
        %v474 = vld [vmem:[%s212 + $0x178] sm:$0xff]
        %v475 = vld [vmem:[%s212 + $0x180] sm:$0xff]
        %v476 = vld [vmem:[%s212 + $0x188] sm:$0xf]
        %v477 = vld [vmem:[%s212 + $0x18c] sm:$0xff]
        %v478 = vld [vmem:[%s212 + $0x194] sm:$0xff]
        %v479 = vld [vmem:[%s212 + $0x19c] sm:$0xff]
        %v480 = vld [vmem:[%s212 + $0x1a4] sm:$0xff]
        %v481 = vld [vmem:[%s212 + $0x1ac] sm:$0xf]
        %v482 = vld [vmem:[%s212 + $0x1b0] sm:$0xff]
        %v483 = vld [vmem:[%s212 + $0x1b8] sm:$0xff]
        %v484 = vld [vmem:[%s212 + $0x1c0] sm:$0xff]
        %v485 = vld [vmem:[%s212 + $0x1c8] sm:$0xff]
        %v486 = vld [vmem:[%s212 + $0x1d0] sm:$0xf]
        %v487 = vld [vmem:[%s212 + $0x1d4] sm:$0xff]
        %v488 = vld [vmem:[%s212 + $0x1dc] sm:$0xff]
        %v489 = vld [vmem:[%s212 + $0x1e4] sm:$0xff]
        %v490 = vld [vmem:[%s212 + $0x1ec] sm:$0xff]
        %v491 = vld [vmem:[%s212 + $0x1f4] sm:$0xf]
        %v492 = vld [vmem:[%s212 + $0x1f8] sm:$0xff]
        %v493 = vld [vmem:[%s212 + $0x200] sm:$0xff]
        %v494 = vld [vmem:[%s212 + $0x208] sm:$0xff]
        %v495 = vld [vmem:[%s212 + $0x210] sm:$0xff]
        %v496 = vld [vmem:[%s212 + $0x218] sm:$0xf]
        %v497 = vld [vmem:[%s212 + $0x21c] sm:$0xff]
        %v498 = vld [vmem:[%s212 + $0x224] sm:$0xff]
        %v499 = vld [vmem:[%s212 + $0x22c] sm:$0xff]
        %v500 = vld [vmem:[%s212 + $0x234] sm:$0xff]
        %v501 = vld [vmem:[%s212 + $0x23c] sm:$0xf]
        %v502 = vld [vmem:[%s212 + $0x240] sm:$0xff]
        %v503 = vld [vmem:[%s212 + $0x248] sm:$0xff]
        %v504 = vld [vmem:[%s212 + $0x250] sm:$0xff]
        %v505 = vld [vmem:[%s212 + $0x258] sm:$0xff]
        %v506 = vld [vmem:[%s212 + $0x260] sm:$0xf]
        %v507 = vld [vmem:[%s212 + $0x264] sm:$0xff]
        %v508 = vld [vmem:[%s212 + $0x26c] sm:$0xff]
        %v509 = vld [vmem:[%s212 + $0x274] sm:$0xff]
        %v510 = vld [vmem:[%s212 + $0x27c] sm:$0xff]
        %v511 = vld [vmem:[%s212 + $0x284] sm:$0xf]
        %v512 = vld [vmem:[%s212 + $0x288] sm:$0xff]
        %v513 = vld [vmem:[%s212 + $0x290] sm:$0xff]
        %v514 = vld [vmem:[%s212 + $0x298] sm:$0xff]
        %v515 = vld [vmem:[%s212 + $0x2a0] sm:$0xff]
        %v516 = vld [vmem:[%s212 + $0x2a8] sm:$0xf]
        %v517 = vld [vmem:[%s212 + $0x2ac] sm:$0xff]
        %v518 = vld [vmem:[%s212 + $0x2b4] sm:$0xff]
        %v519 = vld [vmem:[%s212 + $0x2bc] sm:$0xff]
        %v520 = vld [vmem:[%s212 + $0x2c4] sm:$0xff]
        %v521 = vld [vmem:[%s212 + $0x2cc] sm:$0xf]
        %v522 = vld [vmem:[%s212 + $0x2d0] sm:$0xff]
        %v523 = vld [vmem:[%s212 + $0x2d8] sm:$0xff]
        %v524 = vld [vmem:[%s212 + $0x2e0] sm:$0xff]
        %v525 = vld [vmem:[%s212 + $0x2e8] sm:$0xff]
        %v526 = vld [vmem:[%s212 + $0x2f0] sm:$0xf]
        %v527 = vld [vmem:[%s212 + $0x2f4] sm:$0xff]
        %v528 = vld [vmem:[%s212 + $0x2fc] sm:$0xff]
        %v529 = vld [vmem:[%s212 + $0x304] sm:$0xff]
        %v530 = vld [vmem:[%s212 + $0x30c] sm:$0xff]
        %v531 = vld [vmem:[%s212 + $0x314] sm:$0xf]
        %v532 = vld [vmem:[%s212 + $0x318] sm:$0xff]
        %v533 = vld [vmem:[%s212 + $0x320] sm:$0xff]
        %v534 = vld [vmem:[%s212 + $0x328] sm:$0xff]
        %v535 = vld [vmem:[%s212 + $0x330] sm:$0xff]
        %v536 = vld [vmem:[%s212 + $0x338] sm:$0xf]
        %v537 = vld [vmem:[%s212 + $0x33c] sm:$0xff]
        %v538 = vld [vmem:[%s212 + $0x344] sm:$0xff]
        %v539 = vld [vmem:[%s212 + $0x34c] sm:$0xff]
        %v540 = vld [vmem:[%s212 + $0x354] sm:$0xff]
        %v541 = vld [vmem:[%s212 + $0x35c] sm:$0xf]
        %v542 = vld [vmem:[%s212 + $0x360] sm:$0xff]
        %v543 = vld [vmem:[%s212 + $0x368] sm:$0xff]
        %v544 = vld [vmem:[%s212 + $0x370] sm:$0xff]
        %v545 = vld [vmem:[%s212 + $0x378] sm:$0xff]
        %v546 = vld [vmem:[%s212 + $0x380] sm:$0xf]
        %v547 = vld [vmem:[%s212 + $0x384] sm:$0xff]
        %v548 = vld [vmem:[%s212 + $0x38c] sm:$0xff]
        %v549 = vld [vmem:[%s212 + $0x394] sm:$0xff]
        %v550 = vld [vmem:[%s212 + $0x39c] sm:$0xff]
        %v551 = vld [vmem:[%s212 + $0x3a4] sm:$0xf]
        %v552 = vld [vmem:[%s212 + $0x3a8] sm:$0xff]
        %v553 = vld [vmem:[%s212 + $0x3b0] sm:$0xff]
        %v554 = vld [vmem:[%s212 + $0x3b8] sm:$0xff]
        %v555 = vld [vmem:[%s212 + $0x3c0] sm:$0xff]
        %v556 = vld [vmem:[%s212 + $0x3c8] sm:$0xf]
        %v557 = vld [vmem:[%s212 + $0x3cc] sm:$0xff]
        %v558 = vld [vmem:[%s212 + $0x3d4] sm:$0xff]
        %v559 = vld [vmem:[%s212 + $0x3dc] sm:$0xff]
        %v560 = vld [vmem:[%s212 + $0x3e4] sm:$0xff]
        %v561 = vld [vmem:[%s212 + $0x3ec] sm:$0xf]
        %v562 = vld [vmem:[%s212 + $0x3f0] sm:$0xff]
        %v563 = vld [vmem:[%s212 + $0x3f8] sm:$0xff]
        %v564 = vld [vmem:[%s212 + $0x400] sm:$0xff]
        %v565 = vld [vmem:[%s212 + $0x408] sm:$0xff]
        %v566 = vld [vmem:[%s212 + $0x410] sm:$0xf]
        %v567 = vld [vmem:[%s212 + $0x414] sm:$0xff]
        %v568 = vld [vmem:[%s212 + $0x41c] sm:$0xff]
        %v569 = vld [vmem:[%s212 + $0x424] sm:$0xff]
        %v570 = vld [vmem:[%s212 + $0x42c] sm:$0xff]
        %v571 = vld [vmem:[%s212 + $0x434] sm:$0xf]
        %v572 = vld [vmem:[%s212 + $0x438] sm:$0xff]
        %v573 = vld [vmem:[%s212 + $0x440] sm:$0xff]
        %v574 = vld [vmem:[%s212 + $0x448] sm:$0xff]
        %v575 = vld [vmem:[%s212 + $0x450] sm:$0xff]
        %v576 = vld [vmem:[%s212 + $0x458] sm:$0xf]
        %v577 = vld [vmem:[%s212 + $0x45c] sm:$0xff]
        %v578 = vld [vmem:[%s212 + $0x464] sm:$0xff]
        %v579 = vld [vmem:[%s212 + $0x46c] sm:$0xff]
        %v580 = vld [vmem:[%s212 + $0x474] sm:$0xff]
        %v581 = vld [vmem:[%s212 + $0x47c] sm:$0xf]
        %v582 = vld [vmem:[%s212 + $0x480] sm:$0xff]
        %v583 = vld [vmem:[%s212 + $0x488] sm:$0xff]
        %v584 = vld [vmem:[%s212 + $0x490] sm:$0xff]
        %v585 = vld [vmem:[%s212 + $0x498] sm:$0xff]
        %v586 = vld [vmem:[%s212 + $0x4a0] sm:$0xf]
        %v587 = vld [vmem:[%s212 + $0x4a4] sm:$0xff]
        %v588 = vld [vmem:[%s212 + $0x4ac] sm:$0xff]
        %v589 = vld [vmem:[%s212 + $0x4b4] sm:$0xff]
        %v590 = vld [vmem:[%s212 + $0x4bc] sm:$0xff]
        %v591 = vld [vmem:[%s212 + $0x4c4] sm:$0xf]
        %v592 = vld [vmem:[%s212 + $0x4c8] sm:$0xff]
        %v593 = vld [vmem:[%s212 + $0x4d0] sm:$0xff]
        %v594 = vld [vmem:[%s212 + $0x4d8] sm:$0xff]
        %v595 = vld [vmem:[%s212 + $0x4e0] sm:$0xff]
        %v596 = vld [vmem:[%s212 + $0x4e8] sm:$0xf]
        %v597 = vld [vmem:[%s212 + $0x4ec] sm:$0xff]
        %v598 = vld [vmem:[%s212 + $0x4f4] sm:$0xff]
        %v599 = vld [vmem:[%s212 + $0x4fc] sm:$0xff]
        %v600 = vld [vmem:[%s212 + $0x504] sm:$0xff]
        %v601 = vld [vmem:[%s212 + $0x50c] sm:$0xf]
        %v602 = vld [vmem:[%s212 + $0x510] sm:$0xff]
        %v603 = vld [vmem:[%s212 + $0x518] sm:$0xff]
        %v604 = vld [vmem:[%s212 + $0x520] sm:$0xff]
        %v605 = vld [vmem:[%s212 + $0x528] sm:$0xff]
        %v606 = vld [vmem:[%s212 + $0x530] sm:$0xf]
        %v607 = vld [vmem:[%s212 + $0x534] sm:$0xff]
        %v608 = vld [vmem:[%s212 + $0x53c] sm:$0xff]
        %v609 = vld [vmem:[%s212 + $0x544] sm:$0xff]
        %v610 = vld [vmem:[%s212 + $0x54c] sm:$0xff]
        %v611 = vld [vmem:[%s212 + $0x554] sm:$0xf]
        %v612 = vld [vmem:[%s212 + $0x558] sm:$0xff]
        %v613 = vld [vmem:[%s212 + $0x560] sm:$0xff]
        %v614 = vld [vmem:[%s212 + $0x568] sm:$0xff]
        %v615 = vld [vmem:[%s212 + $0x570] sm:$0xff]
        %v616 = vld [vmem:[%s212 + $0x578] sm:$0xf]
        %v617 = vld [vmem:[%s212 + $0x57c] sm:$0xff]
        %v618 = vld [vmem:[%s212 + $0x584] sm:$0xff]
        %v619 = vld [vmem:[%s212 + $0x58c] sm:$0xff]
        %v620 = vld [vmem:[%s212 + $0x594] sm:$0xff]
        %v621 = vld [vmem:[%s212 + $0x59c] sm:$0xf]
        %v622 = vld [vmem:[%s212 + $0x5a0] sm:$0xff]
        %v623 = vld [vmem:[%s212 + $0x5a8] sm:$0xff]
        %v624 = vld [vmem:[%s212 + $0x5b0] sm:$0xff]
        %v625 = vld [vmem:[%s212 + $0x5b8] sm:$0xff]
        %v626 = vld [vmem:[%s212 + $0x5c0] sm:$0xf]
        %v627 = vld [vmem:[%s212 + $0x5c4] sm:$0xff]
        %v628 = vld [vmem:[%s212 + $0x5cc] sm:$0xff]
        %v629 = vld [vmem:[%s212 + $0x5d4] sm:$0xff]
        %v630 = vld [vmem:[%s212 + $0x5dc] sm:$0xff]
        %v631 = vld [vmem:[%s212 + $0x5e4] sm:$0xf]
        %v632 = vld [vmem:[%s212 + $0x5e8] sm:$0xff]
        %v633 = vld [vmem:[%s212 + $0x5f0] sm:$0xff]
        %v634 = vld [vmem:[%s212 + $0x5f8] sm:$0xff]
        %v635 = vld [vmem:[%s212 + $0x600] sm:$0xff]
        %v636 = vld [vmem:[%s212 + $0x608] sm:$0xf]
        %v637 = vld [vmem:[%s212 + $0x60c] sm:$0xff]
        %v638 = vld [vmem:[%s212 + $0x614] sm:$0xff]
        %v639 = vld [vmem:[%s212 + $0x61c] sm:$0xff]
        %v640 = vld [vmem:[%s212 + $0x624] sm:$0xff]
        %v641 = vld [vmem:[%s212 + $0x62c] sm:$0xf]
        %v642 = vld [vmem:[%s212 + $0x630] sm:$0xff]
        %v643 = vld [vmem:[%s212 + $0x638] sm:$0xff]
        %v644 = vld [vmem:[%s212 + $0x640] sm:$0xff]
        %v645 = vld [vmem:[%s212 + $0x648] sm:$0xff]
        %v646 = vld [vmem:[%s212 + $0x650] sm:$0xf]
        %v647 = vld [vmem:[%s212 + $0x654] sm:$0xff]
        %v648 = vld [vmem:[%s212 + $0x65c] sm:$0xff]
        %v649 = vld [vmem:[%s212 + $0x664] sm:$0xff]
        %v650 = vld [vmem:[%s212 + $0x66c] sm:$0xff]
        %v651 = vld [vmem:[%s212 + $0x674] sm:$0xf]
        %v652 = vld [vmem:[%s212 + $0x678] sm:$0xff]
        %v653 = vld [vmem:[%s212 + $0x680] sm:$0xff]
        %v654 = vld [vmem:[%s212 + $0x688] sm:$0xff]
        %v655 = vld [vmem:[%s212 + $0x690] sm:$0xff]
        %v656 = vld [vmem:[%s212 + $0x698] sm:$0xf]
        %v657 = vld [vmem:[%s212 + $0x69c] sm:$0xff]
        %v658 = vld [vmem:[%s212 + $0x6a4] sm:$0xff]
        %v659 = vld [vmem:[%s212 + $0x6ac] sm:$0xff]
        %v660 = vld [vmem:[%s212 + $0x6b4] sm:$0xff]
        %v661 = vld [vmem:[%s212 + $0x6bc] sm:$0xf]
        %662 = vxpose.xlu0.c.b16.start [1/8] %v398, 128
        %663 = vxpose.xlu0.c.b16.cont [2/8] %v399, 128
        %664 = vxpose.xlu0.c.b16.cont [3/8] %v400, 128
        %665 = vxpose.xlu0.c.b16.cont [4/8] %v401, 128
        %666 = vxpose.xlu0.c.b16.cont [5/8] %v402, 128
        %667 = vxpose.xlu0.c.b16.cont [6/8] %v403, 128
        %668 = vxpose.xlu0.c.b16.cont [7/8] %v404, 128
        %669 = vxpose.xlu0.c.b16.end [8/8] %v405, 128
        %v670 = vpop.trf.xlu0
        %v671 = vpop.trf.xlu0
        %v672 = vpop.trf.xlu0
        %v673 = vpop.trf.xlu0
        %v674 = vpop.trf.xlu0
        %v675 = vpop.trf.xlu0
        %v676 = vpop.trf.xlu0
        %v677 = vpop.trf.xlu0
        %678 = vxpose.xlu0.c.b16.start [1/8] %v406, 128
        %679 = vxpose.xlu0.c.b16.cont [2/8] %v407, 128
        %680 = vxpose.xlu0.c.b16.cont [3/8] %v408, 128
        %681 = vxpose.xlu0.c.b16.cont [4/8] %v409, 128
        %682 = vxpose.xlu0.c.b16.cont [5/8] %v410, 128
        %683 = vxpose.xlu0.c.b16.cont [6/8] %v411, 128
        %684 = vxpose.xlu0.c.b16.cont [7/8] %v412, 128
        %685 = vxpose.xlu0.c.b16.end [8/8] %v413, 128
        %v686 = vpop.trf.xlu0
        %v687 = vpop.trf.xlu0
        %v688 = vpop.trf.xlu0
        %v689 = vpop.trf.xlu0
        %v690 = vpop.trf.xlu0
        %v691 = vpop.trf.xlu0
        %v692 = vpop.trf.xlu0
        %v693 = vpop.trf.xlu0
        %694 = vxpose.xlu0.c.b16.start [1/8] %v414, 128
        %695 = vxpose.xlu0.c.b16.cont [2/8] %v415, 128
        %696 = vxpose.xlu0.c.b16.cont [3/8] %v416, 128
        %697 = vxpose.xlu0.c.b16.cont [4/8] %v417, 128
        %698 = vxpose.xlu0.c.b16.cont [5/8] %v418, 128
        %699 = vxpose.xlu0.c.b16.cont [6/8] %v419, 128
        %700 = vxpose.xlu0.c.b16.cont [7/8] %v420, 128
        %701 = vxpose.xlu0.c.b16.end [8/8] %v421, 128
        %v702 = vpop.trf.xlu0
        %v703 = vpop.trf.xlu0
        %v704 = vpop.trf.xlu0
        %v705 = vpop.trf.xlu0
        %v706 = vpop.trf.xlu0
        %v707 = vpop.trf.xlu0
        %v708 = vpop.trf.xlu0
        %v709 = vpop.trf.xlu0
        %v950 = vunpack.c.l.b16 %v422
        %v951 = vunpack.c.h.b16 %v422
        %v952 = vunpack.c.l.b16 %v423
        %v953 = vunpack.c.h.b16 %v423
        %v954 = vunpack.c.l.b16 %v424
        %v955 = vunpack.c.h.b16 %v424
        %v956 = vunpack.c.l.b16 %v425
        %v957 = vunpack.c.h.b16 %v425
        %v958 = vunpack.c.l.b16 %v426
        %v959 = vunpack.c.l.b16 %v427
        %v960 = vunpack.c.h.b16 %v427
        %v961 = vunpack.c.l.b16 %v428
        %v962 = vunpack.c.h.b16 %v428
        %v963 = vunpack.c.l.b16 %v429
        %v964 = vunpack.c.h.b16 %v429
        %v965 = vunpack.c.l.b16 %v430
        %v966 = vunpack.c.h.b16 %v430
        %v967 = vunpack.c.l.b16 %v431
        %v968 = vunpack.c.l.b16 %v432
        %v969 = vunpack.c.h.b16 %v432
        %v970 = vunpack.c.l.b16 %v433
        %v971 = vunpack.c.h.b16 %v433
        %v972 = vunpack.c.l.b16 %v434
        %v973 = vunpack.c.h.b16 %v434
        %v974 = vunpack.c.l.b16 %v435
        %v975 = vunpack.c.h.b16 %v435
        %v976 = vunpack.c.l.b16 %v436
        %v977 = vunpack.c.l.b16 %v437
        %v978 = vunpack.c.h.b16 %v437
        %v979 = vunpack.c.l.b16 %v438
        %v980 = vunpack.c.h.b16 %v438
        %v981 = vunpack.c.l.b16 %v439
        %v982 = vunpack.c.h.b16 %v439
        %v983 = vunpack.c.l.b16 %v440
        %v984 = vunpack.c.h.b16 %v440
        %v985 = vunpack.c.l.b16 %v441
        %v986 = vunpack.c.l.b16 %v442
        %v987 = vunpack.c.h.b16 %v442
        %v988 = vunpack.c.l.b16 %v443
        %v989 = vunpack.c.h.b16 %v443
        %v990 = vunpack.c.l.b16 %v444
        %v991 = vunpack.c.h.b16 %v444
        %v992 = vunpack.c.l.b16 %v445
        %v993 = vunpack.c.h.b16 %v445
        %v994 = vunpack.c.l.b16 %v446
        %v995 = vunpack.c.l.b16 %v447
        %v996 = vunpack.c.h.b16 %v447
        %v997 = vunpack.c.l.b16 %v448
        %v998 = vunpack.c.h.b16 %v448
        %v999 = vunpack.c.l.b16 %v449
        %v1000 = vunpack.c.h.b16 %v449
        %v1001 = vunpack.c.l.b16 %v450
        %v1002 = vunpack.c.h.b16 %v450
        %v1003 = vunpack.c.l.b16 %v451
        %v1004 = vunpack.c.l.b16 %v452
        %v1005 = vunpack.c.h.b16 %v452
        %v1006 = vunpack.c.l.b16 %v453
        %v1007 = vunpack.c.h.b16 %v453
        %v1008 = vunpack.c.l.b16 %v454
        %v1009 = vunpack.c.h.b16 %v454
        %v1010 = vunpack.c.l.b16 %v455
        %v1011 = vunpack.c.h.b16 %v455
        %v1012 = vunpack.c.l.b16 %v456
        %v1013 = vunpack.c.l.b16 %v457
        %v1014 = vunpack.c.h.b16 %v457
        %v1015 = vunpack.c.l.b16 %v458
        %v1016 = vunpack.c.h.b16 %v458
        %v1017 = vunpack.c.l.b16 %v459
        %v1018 = vunpack.c.h.b16 %v459
        %v1019 = vunpack.c.l.b16 %v460
        %v1020 = vunpack.c.h.b16 %v460
        %v1021 = vunpack.c.l.b16 %v461
        %v1022 = vunpack.c.l.b16 %v462
        %v1023 = vunpack.c.h.b16 %v462
        %v1024 = vunpack.c.l.b16 %v463
        %v1025 = vunpack.c.h.b16 %v463
        %v1026 = vunpack.c.l.b16 %v464
        %v1027 = vunpack.c.h.b16 %v464
        %v1028 = vunpack.c.l.b16 %v465
        %v1029 = vunpack.c.h.b16 %v465
        %v1030 = vunpack.c.l.b16 %v466
        %v1031 = vunpack.c.l.b16 %v467
        %v1032 = vunpack.c.h.b16 %v467
        %v1033 = vunpack.c.l.b16 %v468
        %v1034 = vunpack.c.h.b16 %v468
        %v1035 = vunpack.c.l.b16 %v469
        %v1036 = vunpack.c.h.b16 %v469
        %v1037 = vunpack.c.l.b16 %v470
        %v1038 = vunpack.c.h.b16 %v470
        %v1039 = vunpack.c.l.b16 %v471
        %v1040 = vunpack.c.l.b16 %v472
        %v1041 = vunpack.c.h.b16 %v472
        %v1042 = vunpack.c.l.b16 %v473
        %v1043 = vunpack.c.h.b16 %v473
        %v1044 = vunpack.c.l.b16 %v474
        %v1045 = vunpack.c.h.b16 %v474
        %v1046 = vunpack.c.l.b16 %v475
        %v1047 = vunpack.c.h.b16 %v475
        %v1048 = vunpack.c.l.b16 %v476
        %v1049 = vunpack.c.l.b16 %v477
        %v1050 = vunpack.c.h.b16 %v477
        %v1051 = vunpack.c.l.b16 %v478
        %v1052 = vunpack.c.h.b16 %v478
        %v1053 = vunpack.c.l.b16 %v479
        %v1054 = vunpack.c.h.b16 %v479
        %v1055 = vunpack.c.l.b16 %v480
        %v1056 = vunpack.c.h.b16 %v480
        %v1057 = vunpack.c.l.b16 %v481
        %v1058 = vunpack.c.l.b16 %v482
        %v1059 = vunpack.c.h.b16 %v482
        %v1060 = vunpack.c.l.b16 %v483
        %v1061 = vunpack.c.h.b16 %v483
        %v1062 = vunpack.c.l.b16 %v484
        %v1063 = vunpack.c.h.b16 %v484
        %v1064 = vunpack.c.l.b16 %v485
        %v1065 = vunpack.c.h.b16 %v485
        %v1066 = vunpack.c.l.b16 %v486
        %v1067 = vunpack.c.l.b16 %v487
        %v1068 = vunpack.c.h.b16 %v487
        %v1069 = vunpack.c.l.b16 %v488
        %v1070 = vunpack.c.h.b16 %v488
        %v1071 = vunpack.c.l.b16 %v489
        %v1072 = vunpack.c.h.b16 %v489
        %v1073 = vunpack.c.l.b16 %v490
        %v1074 = vunpack.c.h.b16 %v490
        %v1075 = vunpack.c.l.b16 %v491
        %v1076 = vunpack.c.l.b16 %v492
        %v1077 = vunpack.c.h.b16 %v492
        %v1078 = vunpack.c.l.b16 %v493
        %v1079 = vunpack.c.h.b16 %v493
        %v1080 = vunpack.c.l.b16 %v494
        %v1081 = vunpack.c.h.b16 %v494
        %v1082 = vunpack.c.l.b16 %v495
        %v1083 = vunpack.c.h.b16 %v495
        %v1084 = vunpack.c.l.b16 %v496
        %v1085 = vunpack.c.l.b16 %v497
        %v1086 = vunpack.c.h.b16 %v497
        %v1087 = vunpack.c.l.b16 %v498
        %v1088 = vunpack.c.h.b16 %v498
        %v1089 = vunpack.c.l.b16 %v499
        %v1090 = vunpack.c.h.b16 %v499
        %v1091 = vunpack.c.l.b16 %v500
        %v1092 = vunpack.c.h.b16 %v500
        %v1093 = vunpack.c.l.b16 %v501
        %v1094 = vunpack.c.l.b16 %v502
        %v1095 = vunpack.c.h.b16 %v502
        %v1096 = vunpack.c.l.b16 %v503
        %v1097 = vunpack.c.h.b16 %v503
        %v1098 = vunpack.c.l.b16 %v504
        %v1099 = vunpack.c.h.b16 %v504
        %v1100 = vunpack.c.l.b16 %v505
        %v1101 = vunpack.c.h.b16 %v505
        %v1102 = vunpack.c.l.b16 %v506
        %v1103 = vunpack.c.l.b16 %v507
        %v1104 = vunpack.c.h.b16 %v507
        %v1105 = vunpack.c.l.b16 %v508
        %v1106 = vunpack.c.h.b16 %v508
        %v1107 = vunpack.c.l.b16 %v509
        %v1108 = vunpack.c.h.b16 %v509
        %v1109 = vunpack.c.l.b16 %v510
        %v1110 = vunpack.c.h.b16 %v510
        %v1111 = vunpack.c.l.b16 %v511
        %v1112 = vunpack.c.l.b16 %v512
        %v1113 = vunpack.c.h.b16 %v512
        %v1114 = vunpack.c.l.b16 %v513
        %v1115 = vunpack.c.h.b16 %v513
        %v1116 = vunpack.c.l.b16 %v514
        %v1117 = vunpack.c.h.b16 %v514
        %v1118 = vunpack.c.l.b16 %v515
        %v1119 = vunpack.c.h.b16 %v515
        %v1120 = vunpack.c.l.b16 %v516
        %v1121 = vunpack.c.l.b16 %v517
        %v1122 = vunpack.c.h.b16 %v517
        %v1123 = vunpack.c.l.b16 %v518
        %v1124 = vunpack.c.h.b16 %v518
        %v1125 = vunpack.c.l.b16 %v519
        %v1126 = vunpack.c.h.b16 %v519
        %v1127 = vunpack.c.l.b16 %v520
        %v1128 = vunpack.c.h.b16 %v520
        %v1129 = vunpack.c.l.b16 %v521
        %v1130 = vunpack.c.l.b16 %v522
        %v1131 = vunpack.c.h.b16 %v522
        %v1132 = vunpack.c.l.b16 %v523
        %v1133 = vunpack.c.h.b16 %v523
        %v1134 = vunpack.c.l.b16 %v524
        %v1135 = vunpack.c.h.b16 %v524
        %v1136 = vunpack.c.l.b16 %v525
        %v1137 = vunpack.c.h.b16 %v525
        %v1138 = vunpack.c.l.b16 %v526
        %v1139 = vunpack.c.l.b16 %v527
        %v1140 = vunpack.c.h.b16 %v527
        %v1141 = vunpack.c.l.b16 %v528
        %v1142 = vunpack.c.h.b16 %v528
        %v1143 = vunpack.c.l.b16 %v529
        %v1144 = vunpack.c.h.b16 %v529
        %v1145 = vunpack.c.l.b16 %v530
        %v1146 = vunpack.c.h.b16 %v530
        %v1147 = vunpack.c.l.b16 %v531
        %v1148 = vunpack.c.l.b16 %v532
        %v1149 = vunpack.c.h.b16 %v532
        %v1150 = vunpack.c.l.b16 %v533
        %v1151 = vunpack.c.h.b16 %v533
        %v1152 = vunpack.c.l.b16 %v534
        %v1153 = vunpack.c.h.b16 %v534
        %v1154 = vunpack.c.l.b16 %v535
        %v1155 = vunpack.c.h.b16 %v535
        %v1156 = vunpack.c.l.b16 %v536
        %v1157 = vunpack.c.l.b16 %v537
        %v1158 = vunpack.c.h.b16 %v537
        %v1159 = vunpack.c.l.b16 %v538
        %v1160 = vunpack.c.h.b16 %v538
        %v1161 = vunpack.c.l.b16 %v539
        %v1162 = vunpack.c.h.b16 %v539
        %v1163 = vunpack.c.l.b16 %v540
        %v1164 = vunpack.c.h.b16 %v540
        %v1165 = vunpack.c.l.b16 %v541
        %v1166 = vunpack.c.l.b16 %v542
        %v1167 = vunpack.c.h.b16 %v542
        %v1168 = vunpack.c.l.b16 %v543
        %v1169 = vunpack.c.h.b16 %v543
        %v1170 = vunpack.c.l.b16 %v544
        %v1171 = vunpack.c.h.b16 %v544
        %v1172 = vunpack.c.l.b16 %v545
        %v1173 = vunpack.c.h.b16 %v545
        %v1174 = vunpack.c.l.b16 %v546
        %v1175 = vunpack.c.l.b16 %v547
        %v1176 = vunpack.c.h.b16 %v547
        %v1177 = vunpack.c.l.b16 %v548
        %v1178 = vunpack.c.h.b16 %v548
        %v1179 = vunpack.c.l.b16 %v549
        %v1180 = vunpack.c.h.b16 %v549
        %v1181 = vunpack.c.l.b16 %v550
        %v1182 = vunpack.c.h.b16 %v550
        %v1183 = vunpack.c.l.b16 %v551
        %v1184 = vunpack.c.l.b16 %v552
        %v1185 = vunpack.c.h.b16 %v552
        %v1186 = vunpack.c.l.b16 %v553
        %v1187 = vunpack.c.h.b16 %v553
        %v1188 = vunpack.c.l.b16 %v554
        %v1189 = vunpack.c.h.b16 %v554
        %v1190 = vunpack.c.l.b16 %v555
        %v1191 = vunpack.c.h.b16 %v555
        %v1192 = vunpack.c.l.b16 %v556
        %v1193 = vunpack.c.l.b16 %v557
        %v1194 = vunpack.c.h.b16 %v557
        %v1195 = vunpack.c.l.b16 %v558
        %v1196 = vunpack.c.h.b16 %v558
        %v1197 = vunpack.c.l.b16 %v559
        %v1198 = vunpack.c.h.b16 %v559
        %v1199 = vunpack.c.l.b16 %v560
        %v1200 = vunpack.c.h.b16 %v560
        %v1201 = vunpack.c.l.b16 %v561
        %v1202 = vunpack.c.l.b16 %v562
        %v1203 = vunpack.c.h.b16 %v562
        %v1204 = vunpack.c.l.b16 %v563
        %v1205 = vunpack.c.h.b16 %v563
        %v1206 = vunpack.c.l.b16 %v564
        %v1207 = vunpack.c.h.b16 %v564
        %v1208 = vunpack.c.l.b16 %v565
        %v1209 = vunpack.c.h.b16 %v565
        %v1210 = vunpack.c.l.b16 %v566
        %v1211 = vunpack.c.l.b16 %v567
        %v1212 = vunpack.c.h.b16 %v567
        %v1213 = vunpack.c.l.b16 %v568
        %v1214 = vunpack.c.h.b16 %v568
        %v1215 = vunpack.c.l.b16 %v569
        %v1216 = vunpack.c.h.b16 %v569
        %v1217 = vunpack.c.l.b16 %v570
        %v1218 = vunpack.c.h.b16 %v570
        %v1219 = vunpack.c.l.b16 %v571
        %v1220 = vunpack.c.l.b16 %v572
        %v1221 = vunpack.c.h.b16 %v572
        %v1222 = vunpack.c.l.b16 %v573
        %v1223 = vunpack.c.h.b16 %v573
        %v1224 = vunpack.c.l.b16 %v574
        %v1225 = vunpack.c.h.b16 %v574
        %v1226 = vunpack.c.l.b16 %v575
        %v1227 = vunpack.c.h.b16 %v575
        %v1228 = vunpack.c.l.b16 %v576
        %v1229 = vunpack.c.l.b16 %v577
        %v1230 = vunpack.c.h.b16 %v577
        %v1231 = vunpack.c.l.b16 %v578
        %v1232 = vunpack.c.h.b16 %v578
        %v1233 = vunpack.c.l.b16 %v579
        %v1234 = vunpack.c.h.b16 %v579
        %v1235 = vunpack.c.l.b16 %v580
        %v1236 = vunpack.c.h.b16 %v580
        %v1237 = vunpack.c.l.b16 %v581
        %v1238 = vunpack.c.l.b16 %v582
        %v1239 = vunpack.c.h.b16 %v582
        %v1240 = vunpack.c.l.b16 %v583
        %v1241 = vunpack.c.h.b16 %v583
        %v1242 = vunpack.c.l.b16 %v584
        %v1243 = vunpack.c.h.b16 %v584
        %v1244 = vunpack.c.l.b16 %v585
        %v1245 = vunpack.c.h.b16 %v585
        %v1246 = vunpack.c.l.b16 %v586
        %v1247 = vunpack.c.l.b16 %v587
        %v1248 = vunpack.c.h.b16 %v587
        %v1249 = vunpack.c.l.b16 %v588
        %v1250 = vunpack.c.h.b16 %v588
        %v1251 = vunpack.c.l.b16 %v589
        %v1252 = vunpack.c.h.b16 %v589
        %v1253 = vunpack.c.l.b16 %v590
        %v1254 = vunpack.c.h.b16 %v590
        %v1255 = vunpack.c.l.b16 %v591
        %v1256 = vunpack.c.l.b16 %v592
        %v1257 = vunpack.c.h.b16 %v592
        %v1258 = vunpack.c.l.b16 %v593
        %v1259 = vunpack.c.h.b16 %v593
        %v1260 = vunpack.c.l.b16 %v594
        %v1261 = vunpack.c.h.b16 %v594
        %v1262 = vunpack.c.l.b16 %v595
        %v1263 = vunpack.c.h.b16 %v595
        %v1264 = vunpack.c.l.b16 %v596
        %v1265 = vunpack.c.l.b16 %v597
        %v1266 = vunpack.c.h.b16 %v597
        %v1267 = vunpack.c.l.b16 %v598
        %v1268 = vunpack.c.h.b16 %v598
        %v1269 = vunpack.c.l.b16 %v599
        %v1270 = vunpack.c.h.b16 %v599
        %v1271 = vunpack.c.l.b16 %v600
        %v1272 = vunpack.c.h.b16 %v600
        %v1273 = vunpack.c.l.b16 %v601
        %v1274 = vunpack.c.l.b16 %v602
        %v1275 = vunpack.c.h.b16 %v602
        %v1276 = vunpack.c.l.b16 %v603
        %v1277 = vunpack.c.h.b16 %v603
        %v1278 = vunpack.c.l.b16 %v604
        %v1279 = vunpack.c.h.b16 %v604
        %v1280 = vunpack.c.l.b16 %v605
        %v1281 = vunpack.c.h.b16 %v605
        %v1282 = vunpack.c.l.b16 %v606
        %v1283 = vunpack.c.l.b16 %v607
        %v1284 = vunpack.c.h.b16 %v607
        %v1285 = vunpack.c.l.b16 %v608
        %v1286 = vunpack.c.h.b16 %v608
        %v1287 = vunpack.c.l.b16 %v609
        %v1288 = vunpack.c.h.b16 %v609
        %v1289 = vunpack.c.l.b16 %v610
        %v1290 = vunpack.c.h.b16 %v610
        %v1291 = vunpack.c.l.b16 %v611
        %v1292 = vunpack.c.l.b16 %v612
        %v1293 = vunpack.c.h.b16 %v612
        %v1294 = vunpack.c.l.b16 %v613
        %v1295 = vunpack.c.h.b16 %v613
        %v1296 = vunpack.c.l.b16 %v614
        %v1297 = vunpack.c.h.b16 %v614
        %v1298 = vunpack.c.l.b16 %v615
        %v1299 = vunpack.c.h.b16 %v615
        %v1300 = vunpack.c.l.b16 %v616
        %v1301 = vunpack.c.l.b16 %v617
        %v1302 = vunpack.c.h.b16 %v617
        %v1303 = vunpack.c.l.b16 %v618
        %v1304 = vunpack.c.h.b16 %v618
        %v1305 = vunpack.c.l.b16 %v619
        %v1306 = vunpack.c.h.b16 %v619
        %v1307 = vunpack.c.l.b16 %v620
        %v1308 = vunpack.c.h.b16 %v620
        %v1309 = vunpack.c.l.b16 %v621
        %v1310 = vunpack.c.l.b16 %v622
        %v1311 = vunpack.c.h.b16 %v622
        %v1312 = vunpack.c.l.b16 %v623
        %v1313 = vunpack.c.h.b16 %v623
        %v1314 = vunpack.c.l.b16 %v624
        %v1315 = vunpack.c.h.b16 %v624
        %v1316 = vunpack.c.l.b16 %v625
        %v1317 = vunpack.c.h.b16 %v625
        %v1318 = vunpack.c.l.b16 %v626
        %v1319 = vunpack.c.l.b16 %v627
        %v1320 = vunpack.c.h.b16 %v627
        %v1321 = vunpack.c.l.b16 %v628
        %v1322 = vunpack.c.h.b16 %v628
        %v1323 = vunpack.c.l.b16 %v629
        %v1324 = vunpack.c.h.b16 %v629
        %v1325 = vunpack.c.l.b16 %v630
        %v1326 = vunpack.c.h.b16 %v630
        %v1327 = vunpack.c.l.b16 %v631
        %v1328 = vunpack.c.l.b16 %v632
        %v1329 = vunpack.c.h.b16 %v632
        %v1330 = vunpack.c.l.b16 %v633
        %v1331 = vunpack.c.h.b16 %v633
        %v1332 = vunpack.c.l.b16 %v634
        %v1333 = vunpack.c.h.b16 %v634
        %v1334 = vunpack.c.l.b16 %v635
        %v1335 = vunpack.c.h.b16 %v635
        %v1336 = vunpack.c.l.b16 %v636
        %v1337 = vunpack.c.l.b16 %v637
        %v1338 = vunpack.c.h.b16 %v637
        %v1339 = vunpack.c.l.b16 %v638
        %v1340 = vunpack.c.h.b16 %v638
        %v1341 = vunpack.c.l.b16 %v639
        %v1342 = vunpack.c.h.b16 %v639
        %v1343 = vunpack.c.l.b16 %v640
        %v1344 = vunpack.c.h.b16 %v640
        %v1345 = vunpack.c.l.b16 %v641
        %v1346 = vunpack.c.l.b16 %v642
        %v1347 = vunpack.c.h.b16 %v642
        %v1348 = vunpack.c.l.b16 %v643
        %v1349 = vunpack.c.h.b16 %v643
        %v1350 = vunpack.c.l.b16 %v644
        %v1351 = vunpack.c.h.b16 %v644
        %v1352 = vunpack.c.l.b16 %v645
        %v1353 = vunpack.c.h.b16 %v645
        %v1354 = vunpack.c.l.b16 %v646
        %v1355 = vunpack.c.l.b16 %v647
        %v1356 = vunpack.c.h.b16 %v647
        %v1357 = vunpack.c.l.b16 %v648
        %v1358 = vunpack.c.h.b16 %v648
        %v1359 = vunpack.c.l.b16 %v649
        %v1360 = vunpack.c.h.b16 %v649
        %v1361 = vunpack.c.l.b16 %v650
        %v1362 = vunpack.c.h.b16 %v650
        %v1363 = vunpack.c.l.b16 %v651
        %v1364 = vunpack.c.l.b16 %v652
        %v1365 = vunpack.c.h.b16 %v652
        %v1366 = vunpack.c.l.b16 %v653
        %v1367 = vunpack.c.h.b16 %v653
        %v1368 = vunpack.c.l.b16 %v654
        %v1369 = vunpack.c.h.b16 %v654
        %v1370 = vunpack.c.l.b16 %v655
        %v1371 = vunpack.c.h.b16 %v655
        %v1372 = vunpack.c.l.b16 %v656
        %v1373 = vunpack.c.l.b16 %v657
        %v1374 = vunpack.c.h.b16 %v657
        %v1375 = vunpack.c.l.b16 %v658
        %v1376 = vunpack.c.h.b16 %v658
        %v1377 = vunpack.c.l.b16 %v659
        %v1378 = vunpack.c.h.b16 %v659
        %v1379 = vunpack.c.l.b16 %v660
        %v1380 = vunpack.c.h.b16 %v660
        %v1381 = vunpack.c.l.b16 %v661
        %v1382 = vpack.c.b16 %v959, %v950
        %v1383 = vpack.c.b16 %v960, %v951
        %v1384 = vpack.c.b16 %v961, %v952
        %v1385 = vpack.c.b16 %v962, %v953
        %v1386 = vpack.c.b16 %v963, %v954
        %v1387 = vpack.c.b16 %v964, %v955
        %v1388 = vpack.c.b16 %v965, %v956
        %v1389 = vpack.c.b16 %v966, %v957
        %v1390 = vpack.c.b16 %v967, %v958
        %v1391 = vpack.c.b16 %v977, %v968
        %v1392 = vpack.c.b16 %v978, %v969
        %v1393 = vpack.c.b16 %v979, %v970
        %v1394 = vpack.c.b16 %v980, %v971
        %v1395 = vpack.c.b16 %v981, %v972
        %v1396 = vpack.c.b16 %v982, %v973
        %v1397 = vpack.c.b16 %v983, %v974
        %v1398 = vpack.c.b16 %v984, %v975
        %v1399 = vpack.c.b16 %v985, %v976
        %v1400 = vpack.c.b16 %v995, %v986
        %v1401 = vpack.c.b16 %v996, %v987
        %v1402 = vpack.c.b16 %v997, %v988
        %v1403 = vpack.c.b16 %v998, %v989
        %v1404 = vpack.c.b16 %v999, %v990
        %v1405 = vpack.c.b16 %v1000, %v991
        %v1406 = vpack.c.b16 %v1001, %v992
        %v1407 = vpack.c.b16 %v1002, %v993
        %v1408 = vpack.c.b16 %v1003, %v994
        %v1409 = vpack.c.b16 %v1013, %v1004
        %v1410 = vpack.c.b16 %v1014, %v1005
        %v1411 = vpack.c.b16 %v1015, %v1006
        %v1412 = vpack.c.b16 %v1016, %v1007
        %v1413 = vpack.c.b16 %v1017, %v1008
        %v1414 = vpack.c.b16 %v1018, %v1009
        %v1415 = vpack.c.b16 %v1019, %v1010
        %v1416 = vpack.c.b16 %v1020, %v1011
        %v1417 = vpack.c.b16 %v1021, %v1012
        %v1418 = vpack.c.b16 %v1031, %v1022
        %v1419 = vpack.c.b16 %v1032, %v1023
        %v1420 = vpack.c.b16 %v1033, %v1024
        %v1421 = vpack.c.b16 %v1034, %v1025
        %v1422 = vpack.c.b16 %v1035, %v1026
        %v1423 = vpack.c.b16 %v1036, %v1027
        %v1424 = vpack.c.b16 %v1037, %v1028
        %v1425 = vpack.c.b16 %v1038, %v1029
        %v1426 = vpack.c.b16 %v1039, %v1030
        %v1427 = vpack.c.b16 %v1049, %v1040
        %v1428 = vpack.c.b16 %v1050, %v1041
        %v1429 = vpack.c.b16 %v1051, %v1042
        %v1430 = vpack.c.b16 %v1052, %v1043
        %v1431 = vpack.c.b16 %v1053, %v1044
        %v1432 = vpack.c.b16 %v1054, %v1045
        %v1433 = vpack.c.b16 %v1055, %v1046
        %v1434 = vpack.c.b16 %v1056, %v1047
        %v1435 = vpack.c.b16 %v1057, %v1048
        %v1436 = vpack.c.b16 %v1067, %v1058
        %v1437 = vpack.c.b16 %v1068, %v1059
        %v1438 = vpack.c.b16 %v1069, %v1060
        %v1439 = vpack.c.b16 %v1070, %v1061
        %v1440 = vpack.c.b16 %v1071, %v1062
        %v1441 = vpack.c.b16 %v1072, %v1063
        %v1442 = vpack.c.b16 %v1073, %v1064
        %v1443 = vpack.c.b16 %v1074, %v1065
        %v1444 = vpack.c.b16 %v1075, %v1066
        %v1445 = vpack.c.b16 %v1085, %v1076
        %v1446 = vpack.c.b16 %v1086, %v1077
        %v1447 = vpack.c.b16 %v1087, %v1078
        %v1448 = vpack.c.b16 %v1088, %v1079
        %v1449 = vpack.c.b16 %v1089, %v1080
        %v1450 = vpack.c.b16 %v1090, %v1081
        %v1451 = vpack.c.b16 %v1091, %v1082
        %v1452 = vpack.c.b16 %v1092, %v1083
        %v1453 = vpack.c.b16 %v1093, %v1084
        %v1454 = vpack.c.b16 %v1103, %v1094
        %v1455 = vpack.c.b16 %v1104, %v1095
        %v1456 = vpack.c.b16 %v1105, %v1096
        %v1457 = vpack.c.b16 %v1106, %v1097
        %v1458 = vpack.c.b16 %v1107, %v1098
        %v1459 = vpack.c.b16 %v1108, %v1099
        %v1460 = vpack.c.b16 %v1109, %v1100
        %v1461 = vpack.c.b16 %v1110, %v1101
        %v1462 = vpack.c.b16 %v1111, %v1102
        %v1463 = vpack.c.b16 %v1121, %v1112
        %v1464 = vpack.c.b16 %v1122, %v1113
        %v1465 = vpack.c.b16 %v1123, %v1114
        %v1466 = vpack.c.b16 %v1124, %v1115
        %v1467 = vpack.c.b16 %v1125, %v1116
        %v1468 = vpack.c.b16 %v1126, %v1117
        %v1469 = vpack.c.b16 %v1127, %v1118
        %v1470 = vpack.c.b16 %v1128, %v1119
        %v1471 = vpack.c.b16 %v1129, %v1120
        %v1472 = vpack.c.b16 %v1139, %v1130
        %v1473 = vpack.c.b16 %v1140, %v1131
        %v1474 = vpack.c.b16 %v1141, %v1132
        %v1475 = vpack.c.b16 %v1142, %v1133
        %v1476 = vpack.c.b16 %v1143, %v1134
        %v1477 = vpack.c.b16 %v1144, %v1135
        %v1478 = vpack.c.b16 %v1145, %v1136
        %v1479 = vpack.c.b16 %v1146, %v1137
        %v1480 = vpack.c.b16 %v1147, %v1138
        %v1481 = vpack.c.b16 %v1157, %v1148
        %v1482 = vpack.c.b16 %v1158, %v1149
        %v1483 = vpack.c.b16 %v1159, %v1150
        %v1484 = vpack.c.b16 %v1160, %v1151
        %v1485 = vpack.c.b16 %v1161, %v1152
        %v1486 = vpack.c.b16 %v1162, %v1153
        %v1487 = vpack.c.b16 %v1163, %v1154
        %v1488 = vpack.c.b16 %v1164, %v1155
        %v1489 = vpack.c.b16 %v1165, %v1156
        %v1490 = vpack.c.b16 %v1175, %v1166
        %v1491 = vpack.c.b16 %v1176, %v1167
        %v1492 = vpack.c.b16 %v1177, %v1168
        %v1493 = vpack.c.b16 %v1178, %v1169
        %v1494 = vpack.c.b16 %v1179, %v1170
        %v1495 = vpack.c.b16 %v1180, %v1171
        %v1496 = vpack.c.b16 %v1181, %v1172
        %v1497 = vpack.c.b16 %v1182, %v1173
        %v1498 = vpack.c.b16 %v1183, %v1174
        %v1499 = vpack.c.b16 %v1193, %v1184
        %v1500 = vpack.c.b16 %v1194, %v1185
        %v1501 = vpack.c.b16 %v1195, %v1186
        %v1502 = vpack.c.b16 %v1196, %v1187
        %v1503 = vpack.c.b16 %v1197, %v1188
        %v1504 = vpack.c.b16 %v1198, %v1189
        %v1505 = vpack.c.b16 %v1199, %v1190
        %v1506 = vpack.c.b16 %v1200, %v1191
        %v1507 = vpack.c.b16 %v1201, %v1192
        %v1508 = vpack.c.b16 %v1211, %v1202
        %v1509 = vpack.c.b16 %v1212, %v1203
        %v1510 = vpack.c.b16 %v1213, %v1204
        %v1511 = vpack.c.b16 %v1214, %v1205
        %v1512 = vpack.c.b16 %v1215, %v1206
        %v1513 = vpack.c.b16 %v1216, %v1207
        %v1514 = vpack.c.b16 %v1217, %v1208
        %v1515 = vpack.c.b16 %v1218, %v1209
        %v1516 = vpack.c.b16 %v1219, %v1210
        %v1517 = vpack.c.b16 %v1229, %v1220
        %v1518 = vpack.c.b16 %v1230, %v1221
        %v1519 = vpack.c.b16 %v1231, %v1222
        %v1520 = vpack.c.b16 %v1232, %v1223
        %v1521 = vpack.c.b16 %v1233, %v1224
        %v1522 = vpack.c.b16 %v1234, %v1225
        %v1523 = vpack.c.b16 %v1235, %v1226
        %v1524 = vpack.c.b16 %v1236, %v1227
        %v1525 = vpack.c.b16 %v1237, %v1228
        %v1526 = vpack.c.b16 %v1247, %v1238
        %v1527 = vpack.c.b16 %v1248, %v1239
        %v1528 = vpack.c.b16 %v1249, %v1240
        %v1529 = vpack.c.b16 %v1250, %v1241
        %v1530 = vpack.c.b16 %v1251, %v1242
        %v1531 = vpack.c.b16 %v1252, %v1243
        %v1532 = vpack.c.b16 %v1253, %v1244
        %v1533 = vpack.c.b16 %v1254, %v1245
        %v1534 = vpack.c.b16 %v1255, %v1246
        %v1535 = vpack.c.b16 %v1265, %v1256
        %v1536 = vpack.c.b16 %v1266, %v1257
        %v1537 = vpack.c.b16 %v1267, %v1258
        %v1538 = vpack.c.b16 %v1268, %v1259
        %v1539 = vpack.c.b16 %v1269, %v1260
        %v1540 = vpack.c.b16 %v1270, %v1261
        %v1541 = vpack.c.b16 %v1271, %v1262
        %v1542 = vpack.c.b16 %v1272, %v1263
        %v1543 = vpack.c.b16 %v1273, %v1264
        %v1544 = vpack.c.b16 %v1283, %v1274
        %v1545 = vpack.c.b16 %v1284, %v1275
        %v1546 = vpack.c.b16 %v1285, %v1276
        %v1547 = vpack.c.b16 %v1286, %v1277
        %v1548 = vpack.c.b16 %v1287, %v1278
        %v1549 = vpack.c.b16 %v1288, %v1279
        %v1550 = vpack.c.b16 %v1289, %v1280
        %v1551 = vpack.c.b16 %v1290, %v1281
        %v1552 = vpack.c.b16 %v1291, %v1282
        %v1553 = vpack.c.b16 %v1301, %v1292
        %v1554 = vpack.c.b16 %v1302, %v1293
        %v1555 = vpack.c.b16 %v1303, %v1294
        %v1556 = vpack.c.b16 %v1304, %v1295
        %v1557 = vpack.c.b16 %v1305, %v1296
        %v1558 = vpack.c.b16 %v1306, %v1297
        %v1559 = vpack.c.b16 %v1307, %v1298
        %v1560 = vpack.c.b16 %v1308, %v1299
        %v1561 = vpack.c.b16 %v1309, %v1300
        %v1562 = vpack.c.b16 %v1319, %v1310
        %v1563 = vpack.c.b16 %v1320, %v1311
        %v1564 = vpack.c.b16 %v1321, %v1312
        %v1565 = vpack.c.b16 %v1322, %v1313
        %v1566 = vpack.c.b16 %v1323, %v1314
        %v1567 = vpack.c.b16 %v1324, %v1315
        %v1568 = vpack.c.b16 %v1325, %v1316
        %v1569 = vpack.c.b16 %v1326, %v1317
        %v1570 = vpack.c.b16 %v1327, %v1318
        %v1571 = vpack.c.b16 %v1337, %v1328
        %v1572 = vpack.c.b16 %v1338, %v1329
        %v1573 = vpack.c.b16 %v1339, %v1330
        %v1574 = vpack.c.b16 %v1340, %v1331
        %v1575 = vpack.c.b16 %v1341, %v1332
        %v1576 = vpack.c.b16 %v1342, %v1333
        %v1577 = vpack.c.b16 %v1343, %v1334
        %v1578 = vpack.c.b16 %v1344, %v1335
        %v1579 = vpack.c.b16 %v1345, %v1336
        %v1580 = vpack.c.b16 %v1355, %v1346
        %v1581 = vpack.c.b16 %v1356, %v1347
        %v1582 = vpack.c.b16 %v1357, %v1348
        %v1583 = vpack.c.b16 %v1358, %v1349
        %v1584 = vpack.c.b16 %v1359, %v1350
        %v1585 = vpack.c.b16 %v1360, %v1351
        %v1586 = vpack.c.b16 %v1361, %v1352
        %v1587 = vpack.c.b16 %v1362, %v1353
        %v1588 = vpack.c.b16 %v1363, %v1354
        %v1589 = vpack.c.b16 %v1373, %v1364
        %v1590 = vpack.c.b16 %v1374, %v1365
        %v1591 = vpack.c.b16 %v1375, %v1366
        %v1592 = vpack.c.b16 %v1376, %v1367
        %v1593 = vpack.c.b16 %v1377, %v1368
        %v1594 = vpack.c.b16 %v1378, %v1369
        %v1595 = vpack.c.b16 %v1379, %v1370
        %v1596 = vpack.c.b16 %v1380, %v1371
        %v1597 = vpack.c.b16 %v1381, %v1372
        %1814 = vmatprep.subr.bf16.mxu0 %v1383
        %1815 = vmatpush1.bf16.msra.mxu0 %v1382
        %1816 = vmatprep.subr.bf16.mxu0 %v1392
        %1817 = vmatpush1.bf16.msra.mxu0 %v1391
        %1818 = vmatprep.subr.bf16.mxu0 %v1401
        %1819 = vmatpush1.bf16.msra.mxu0 %v1400
        %1820 = vmatprep.subr.bf16.mxu0 %v1410
        %1821 = vmatpush1.bf16.msra.mxu0 %v1409
        %1822 = vmatprep.subr.bf16.mxu0 %v1419
        %1823 = vmatpush1.bf16.msra.mxu0 %v1418
        %1824 = vmatprep.subr.bf16.mxu0 %v1428
        %1825 = vmatpush1.bf16.msra.mxu0 %v1427
        %1826 = vmatprep.subr.bf16.mxu0 %v1437
        %1827 = vmatpush1.bf16.msra.mxu0 %v1436
        %1828 = vmatprep.subr.bf16.mxu0 %v1446
        %1829 = vmatpush1.bf16.msra.mxu0 %v1445
        %1830 = vmatprep.subr.bf16.mxu0 %v1455
        %1831 = vmatpush1.bf16.msra.mxu0 %v1454
        %1832 = vmatprep.subr.bf16.mxu0 %v1464
        %1833 = vmatpush1.bf16.msra.mxu0 %v1463
        %1834 = vmatprep.subr.bf16.mxu0 %v1473
        %1835 = vmatpush1.bf16.msra.mxu0 %v1472
        %1836 = vmatprep.subr.bf16.mxu0 %v1482
        %1837 = vmatpush1.bf16.msra.mxu0 %v1481
        %1838 = vmatprep.subr.bf16.mxu0 %v1491
        %1839 = vmatpush1.bf16.msra.mxu0 %v1490
        %1840 = vmatprep.subr.bf16.mxu0 %v1500
        %1841 = vmatpush1.bf16.msra.mxu0 %v1499
        %1842 = vmatprep.subr.bf16.mxu0 %v1509
        %1843 = vmatpush1.bf16.msra.mxu0 %v1508
        %1844 = vmatprep.subr.bf16.mxu0 %v1518
        %1845 = vmatpush1.bf16.msra.mxu0 %v1517
        %1846 = vmatprep.mubr.bf16.mxu0 %v686
        %1847 = vmatmul.mubr.bf16.gmra.mrb[0].mxu0 %v670
        %v1848 = vpop.f32.mrb[0].mxu0
        %v1849 = vadd.f32 0.0, %v1848
        %v1850 = vpop.f32.mrb[0].mxu0
        %v1851 = vadd.f32 0.0, %v1850
        %v1852 = vpop.f32.mrb[0].mxu0
        %v1853 = vadd.f32 0.0, %v1852
        %v1854 = vpop.f32.mrb[0].mxu0
        %v1855 = vadd.f32 0.0, %v1854
        %1856 = vmatprep.mubr.bf16.mxu0 %v687
        %1857 = vmatmul.mubr.bf16.gmra.mrb[0].mxu0 %v671
        %v1858 = vpop.f32.mrb[0].mxu0
        %v1859 = vadd.f32 0.0, %v1858
        %v1860 = vpop.f32.mrb[0].mxu0
        %v1861 = vadd.f32 0.0, %v1860
        %v1862 = vpop.f32.mrb[0].mxu0
        %v1863 = vadd.f32 0.0, %v1862
        %v1864 = vpop.f32.mrb[0].mxu0
        %v1865 = vadd.f32 0.0, %v1864
        %1866 = vmatprep.mubr.bf16.mxu0 %v688
        %1867 = vmatmul.mubr.bf16.gmra.mrb[0].mxu0 %v672
        %v1868 = vpop.f32.mrb[0].mxu0
        %v1869 = vadd.f32 0.0, %v1868
        %v1870 = vpop.f32.mrb[0].mxu0
        %v1871 = vadd.f32 0.0, %v1870
        %v1872 = vpop.f32.mrb[0].mxu0
        %v1873 = vadd.f32 0.0, %v1872
        %v1874 = vpop.f32.mrb[0].mxu0
        %v1875 = vadd.f32 0.0, %v1874
        %1876 = vmatprep.mubr.bf16.mxu0 %v689
        %1877 = vmatmul.mubr.bf16.gmra.mrb[0].mxu0 %v673
        %v1878 = vpop.f32.mrb[0].mxu0
        %v1879 = vadd.f32 0.0, %v1878
        %v1880 = vpop.f32.mrb[0].mxu0
        %v1881 = vadd.f32 0.0, %v1880
        %v1882 = vpop.f32.mrb[0].mxu0
        %v1883 = vpop.f32.mrb[0].mxu0
        %1884 = vdwg.mxu0
        %1885 = vmatprep.subr.bf16.mxu0 %v1527
        %1886 = vmatpush1.bf16.msra.mxu0 %v1526
        %1887 = vmatprep.subr.bf16.mxu0 %v1536
        %1888 = vmatpush1.bf16.msra.mxu0 %v1535
        %1889 = vmatprep.subr.bf16.mxu0 %v1545
        %1890 = vmatpush1.bf16.msra.mxu0 %v1544
        %1891 = vmatprep.subr.bf16.mxu0 %v1554
        %1892 = vmatpush1.bf16.msra.mxu0 %v1553
        %1893 = vmatprep.subr.bf16.mxu0 %v1563
        %1894 = vmatpush1.bf16.msra.mxu0 %v1562
        %1895 = vmatprep.subr.bf16.mxu0 %v1572
        %1896 = vmatpush1.bf16.msra.mxu0 %v1571
        %1897 = vmatprep.subr.bf16.mxu0 %v1581
        %1898 = vmatpush1.bf16.msra.mxu0 %v1580
        %1899 = vmatprep.subr.bf16.mxu0 %v1590
        %1900 = vmatpush1.bf16.msra.mxu0 %v1589
        %1901 = vmatprep.subr.bf16.mxu0 0
        %1902 = vmatpush1.bf16.msra.mxu0 0
        %1903 = vmatprep.subr.bf16.mxu0 0
        %1904 = vmatpush1.bf16.msra.mxu0 0
        %1905 = vmatprep.subr.bf16.mxu0 0
        %1906 = vmatpush1.bf16.msra.mxu0 0
        %1907 = vmatprep.subr.bf16.mxu0 0
        %1908 = vmatpush1.bf16.msra.mxu0 0
        %1909 = vmatprep.subr.bf16.mxu0 0
        %1910 = vmatpush1.bf16.msra.mxu0 0
        %1911 = vmatprep.subr.bf16.mxu0 0
        %1912 = vmatpush1.bf16.msra.mxu0 0
        %1913 = vmatprep.subr.bf16.mxu0 0
        %1914 = vmatpush1.bf16.msra.mxu0 0
        %1915 = vmatprep.subr.bf16.mxu0 0
        %1916 = vmatpush1.bf16.msra.mxu0 0
        %1917 = vmatprep.mubr.bf16.mxu0 0
        %1918 = vmatmul.mubr.bf16.gmra.mrb[0].mxu0 %v702
        %v1919 = vpop.f32.mrb[0].mxu0
        %v1920 = vadd.f32 %v1849, %v1919
        %v1921 = vpop.f32.mrb[0].mxu0
        %v1922 = vadd.f32 %v1851, %v1921
        %v1923 = vpop.f32.mrb[0].mxu0
        %v1924 = vadd.f32 %v1853, %v1923
        %v1925 = vpop.f32.mrb[0].mxu0
        %v1926 = vadd.f32 %v1855, %v1925
        %1927 = vmatprep.mubr.bf16.mxu0 0
        %1928 = vmatmul.mubr.bf16.gmra.mrb[0].mxu0 %v703
        %v1929 = vpop.f32.mrb[0].mxu0
        %v1930 = vadd.f32 %v1859, %v1929
        %v1931 = vpop.f32.mrb[0].mxu0
        %v1932 = vadd.f32 %v1861, %v1931
        %v1933 = vpop.f32.mrb[0].mxu0
        %v1934 = vadd.f32 %v1863, %v1933
        %v1935 = vpop.f32.mrb[0].mxu0
        %v1936 = vadd.f32 %v1865, %v1935
        %1937 = vmatprep.mubr.bf16.mxu0 0
        %1938 = vmatmul.mubr.bf16.gmra.mrb[0].mxu0 %v704
        %v1939 = vpop.f32.mrb[0].mxu0
        %v1940 = vadd.f32 %v1869, %v1939
        %v1941 = vpop.f32.mrb[0].mxu0
        %v1942 = vadd.f32 %v1871, %v1941
        %v1943 = vpop.f32.mrb[0].mxu0
        %v1944 = vadd.f32 %v1873, %v1943
        %v1945 = vpop.f32.mrb[0].mxu0
        %v1946 = vadd.f32 %v1875, %v1945
        %1947 = vmatprep.mubr.bf16.mxu0 0
        %1948 = vmatmul.mubr.bf16.gmra.mrb[0].mxu0 %v705
        %v1949 = vpop.f32.mrb[0].mxu0
        %v1950 = vadd.f32 %v1879, %v1949
        %v1951 = vpop.f32.mrb[0].mxu0
        %v1952 = vadd.f32 %v1881, %v1951
        %v1953 = vpop.f32.mrb[0].mxu0
        %v1954 = vpop.f32.mrb[0].mxu0
        %1955 = vdwg.mxu0
        %1956 = vmatprep.subr.bf16.mxu0 %v1385
        %1957 = vmatpush1.bf16.msra.mxu0 %v1384
        %1958 = vmatprep.subr.bf16.mxu0 %v1394
        %1959 = vmatpush1.bf16.msra.mxu0 %v1393
        %1960 = vmatprep.subr.bf16.mxu0 %v1403
        %1961 = vmatpush1.bf16.msra.mxu0 %v1402
        %1962 = vmatprep.subr.bf16.mxu0 %v1412
        %1963 = vmatpush1.bf16.msra.mxu0 %v1411
        %1964 = vmatprep.subr.bf16.mxu0 %v1421
        %1965 = vmatpush1.bf16.msra.mxu0 %v1420
        %1966 = vmatprep.subr.bf16.mxu0 %v1430
        %1967 = vmatpush1.bf16.msra.mxu0 %v1429
        %1968 = vmatprep.subr.bf16.mxu0 %v1439
        %1969 = vmatpush1.bf16.msra.mxu0 %v1438
        %1970 = vmatprep.subr.bf16.mxu0 %v1448
        %1971 = vmatpush1.bf16.msra.mxu0 %v1447
        %1972 = vmatprep.subr.bf16.mxu0 %v1457
        %1973 = vmatpush1.bf16.msra.mxu0 %v1456
        %1974 = vmatprep.subr.bf16.mxu0 %v1466
        %1975 = vmatpush1.bf16.msra.mxu0 %v1465
        %1976 = vmatprep.subr.bf16.mxu0 %v1475
        %1977 = vmatpush1.bf16.msra.mxu0 %v1474
        %1978 = vmatprep.subr.bf16.mxu0 %v1484
        %1979 = vmatpush1.bf16.msra.mxu0 %v1483
        %1980 = vmatprep.subr.bf16.mxu0 %v1493
        %1981 = vmatpush1.bf16.msra.mxu0 %v1492
        %1982 = vmatprep.subr.bf16.mxu0 %v1502
        %1983 = vmatpush1.bf16.msra.mxu0 %v1501
        %1984 = vmatprep.subr.bf16.mxu0 %v1511
        %1985 = vmatpush1.bf16.msra.mxu0 %v1510
        %1986 = vmatprep.subr.bf16.mxu0 %v1520
        %1987 = vmatpush1.bf16.msra.mxu0 %v1519
        %1988 = vmatprep.mubr.bf16.mxu0 %v686
        %1989 = vmatmul.mubr.bf16.gmra.mrb[0].mxu0 %v670
        %v1990 = vpop.f32.mrb[0].mxu0
        %v1991 = vadd.f32 0.0, %v1990
        %v1992 = vpop.f32.mrb[0].mxu0
        %v1993 = vadd.f32 0.0, %v1992
        %v1994 = vpop.f32.mrb[0].mxu0
        %v1995 = vadd.f32 0.0, %v1994
        %v1996 = vpop.f32.mrb[0].mxu0
        %v1997 = vadd.f32 0.0, %v1996
        %1998 = vmatprep.mubr.bf16.mxu0 %v687
        %1999 = vmatmul.mubr.bf16.gmra.mrb[0].mxu0 %v671
        %v2000 = vpop.f32.mrb[0].mxu0
        %v2001 = vadd.f32 0.0, %v2000
        %v2002 = vpop.f32.mrb[0].mxu0
        %v2003 = vadd.f32 0.0, %v2002
        %v2004 = vpop.f32.mrb[0].mxu0
        %v2005 = vadd.f32 0.0, %v2004
        %v2006 = vpop.f32.mrb[0].mxu0
        %v2007 = vadd.f32 0.0, %v2006
        %2008 = vmatprep.mubr.bf16.mxu0 %v688
        %2009 = vmatmul.mubr.bf16.gmra.mrb[0].mxu0 %v672
        %v2010 = vpop.f32.mrb[0].mxu0
        %v2011 = vadd.f32 0.0, %v2010
        %v2012 = vpop.f32.mrb[0].mxu0
        %v2013 = vadd.f32 0.0, %v2012
        %v2014 = vpop.f32.mrb[0].mxu0
        %v2015 = vadd.f32 0.0, %v2014
        %v2016 = vpop.f32.mrb[0].mxu0
        %v2017 = vadd.f32 0.0, %v2016
        %2018 = vmatprep.mubr.bf16.mxu0 %v689
        %2019 = vmatmul.mubr.bf16.gmra.mrb[0].mxu0 %v673
        %v2020 = vpop.f32.mrb[0].mxu0
        %v2021 = vadd.f32 0.0, %v2020
        %v2022 = vpop.f32.mrb[0].mxu0
        %v2023 = vadd.f32 0.0, %v2022
        %v2024 = vpop.f32.mrb[0].mxu0
        %v2025 = vpop.f32.mrb[0].mxu0
        %2026 = vdwg.mxu0
        %2027 = vmatprep.subr.bf16.mxu0 %v1529
        %2028 = vmatpush1.bf16.msra.mxu0 %v1528
        %2029 = vmatprep.subr.bf16.mxu0 %v1538
        %2030 = vmatpush1.bf16.msra.mxu0 %v1537
        %2031 = vmatprep.subr.bf16.mxu0 %v1547
        %2032 = vmatpush1.bf16.msra.mxu0 %v1546
        %2033 = vmatprep.subr.bf16.mxu0 %v1556
        %2034 = vmatpush1.bf16.msra.mxu0 %v1555
        %2035 = vmatprep.subr.bf16.mxu0 %v1565
        %2036 = vmatpush1.bf16.msra.mxu0 %v1564
        %2037 = vmatprep.subr.bf16.mxu0 %v1574
        %2038 = vmatpush1.bf16.msra.mxu0 %v1573
        %2039 = vmatprep.subr.bf16.mxu0 %v1583
        %2040 = vmatpush1.bf16.msra.mxu0 %v1582
        %2041 = vmatprep.subr.bf16.mxu0 %v1592
        %2042 = vmatpush1.bf16.msra.mxu0 %v1591
        %2043 = vmatprep.subr.bf16.mxu0 0
        %2044 = vmatpush1.bf16.msra.mxu0 0
        %2045 = vmatprep.subr.bf16.mxu0 0
        %2046 = vmatpush1.bf16.msra.mxu0 0
        %2047 = vmatprep.subr.bf16.mxu0 0
        %2048 = vmatpush1.bf16.msra.mxu0 0
        %2049 = vmatprep.subr.bf16.mxu0 0
        %2050 = vmatpush1.bf16.msra.mxu0 0
        %2051 = vmatprep.subr.bf16.mxu0 0
        %2052 = vmatpush1.bf16.msra.mxu0 0
        %2053 = vmatprep.subr.bf16.mxu0 0
        %2054 = vmatpush1.bf16.msra.mxu0 0
        %2055 = vmatprep.subr.bf16.mxu0 0
        %2056 = vmatpush1.bf16.msra.mxu0 0
        %2057 = vmatprep.subr.bf16.mxu0 0
        %2058 = vmatpush1.bf16.msra.mxu0 0
        %2059 = vmatprep.mubr.bf16.mxu0 0
        %2060 = vmatmul.mubr.bf16.gmra.mrb[0].mxu0 %v702
        %v2061 = vpop.f32.mrb[0].mxu0
        %v2062 = vadd.f32 %v1991, %v2061
        %v2063 = vpop.f32.mrb[0].mxu0
        %v2064 = vadd.f32 %v1993, %v2063
        %v2065 = vpop.f32.mrb[0].mxu0
        %v2066 = vadd.f32 %v1995, %v2065
        %v2067 = vpop.f32.mrb[0].mxu0
        %v2068 = vadd.f32 %v1997, %v2067
        %2069 = vmatprep.mubr.bf16.mxu0 0
        %2070 = vmatmul.mubr.bf16.gmra.mrb[0].mxu0 %v703
        %v2071 = vpop.f32.mrb[0].mxu0
        %v2072 = vadd.f32 %v2001, %v2071
        %v2073 = vpop.f32.mrb[0].mxu0
        %v2074 = vadd.f32 %v2003, %v2073
        %v2075 = vpop.f32.mrb[0].mxu0
        %v2076 = vadd.f32 %v2005, %v2075
        %v2077 = vpop.f32.mrb[0].mxu0
        %v2078 = vadd.f32 %v2007, %v2077
        %2079 = vmatprep.mubr.bf16.mxu0 0
        %2080 = vmatmul.mubr.bf16.gmra.mrb[0].mxu0 %v704
        %v2081 = vpop.f32.mrb[0].mxu0
        %v2082 = vadd.f32 %v2011, %v2081
        %v2083 = vpop.f32.mrb[0].mxu0
        %v2084 = vadd.f32 %v2013, %v2083
        %v2085 = vpop.f32.mrb[0].mxu0
        %v2086 = vadd.f32 %v2015, %v2085
        %v2087 = vpop.f32.mrb[0].mxu0
        %v2088 = vadd.f32 %v2017, %v2087
        %2089 = vmatprep.mubr.bf16.mxu0 0
        %2090 = vmatmul.mubr.bf16.gmra.mrb[0].mxu0 %v705
        %v2091 = vpop.f32.mrb[0].mxu0
        %v2092 = vadd.f32 %v2021, %v2091
        %v2093 = vpop.f32.mrb[0].mxu0
        %v2094 = vadd.f32 %v2023, %v2093
        %v2095 = vpop.f32.mrb[0].mxu0
        %v2096 = vpop.f32.mrb[0].mxu0
        %2097 = vdwg.mxu0
        %2098 = vmatprep.subr.bf16.mxu0 %v1387
        %2099 = vmatpush1.bf16.msra.mxu0 %v1386
        %2100 = vmatprep.subr.bf16.mxu0 %v1396
        %2101 = vmatpush1.bf16.msra.mxu0 %v1395
        %2102 = vmatprep.subr.bf16.mxu0 %v1405
        %2103 = vmatpush1.bf16.msra.mxu0 %v1404
        %2104 = vmatprep.subr.bf16.mxu0 %v1414
        %2105 = vmatpush1.bf16.msra.mxu0 %v1413
        %2106 = vmatprep.subr.bf16.mxu0 %v1423
        %2107 = vmatpush1.bf16.msra.mxu0 %v1422
        %2108 = vmatprep.subr.bf16.mxu0 %v1432
        %2109 = vmatpush1.bf16.msra.mxu0 %v1431
        %2110 = vmatprep.subr.bf16.mxu0 %v1441
        %2111 = vmatpush1.bf16.msra.mxu0 %v1440
        %2112 = vmatprep.subr.bf16.mxu0 %v1450
        %2113 = vmatpush1.bf16.msra.mxu0 %v1449
        %2114 = vmatprep.subr.bf16.mxu0 %v1459
        %2115 = vmatpush1.bf16.msra.mxu0 %v1458
        %2116 = vmatprep.subr.bf16.mxu0 %v1468
        %2117 = vmatpush1.bf16.msra.mxu0 %v1467
        %2118 = vmatprep.subr.bf16.mxu0 %v1477
        %2119 = vmatpush1.bf16.msra.mxu0 %v1476
        %2120 = vmatprep.subr.bf16.mxu0 %v1486
        %2121 = vmatpush1.bf16.msra.mxu0 %v1485
        %2122 = vmatprep.subr.bf16.mxu0 %v1495
        %2123 = vmatpush1.bf16.msra.mxu0 %v1494
        %2124 = vmatprep.subr.bf16.mxu0 %v1504
        %2125 = vmatpush1.bf16.msra.mxu0 %v1503
        %2126 = vmatprep.subr.bf16.mxu0 %v1513
        %2127 = vmatpush1.bf16.msra.mxu0 %v1512
        %2128 = vmatprep.subr.bf16.mxu0 %v1522
        %2129 = vmatpush1.bf16.msra.mxu0 %v1521
        %2130 = vmatprep.mubr.bf16.mxu0 %v686
        %2131 = vmatmul.mubr.bf16.gmra.mrb[0].mxu0 %v670
        %v2132 = vpop.f32.mrb[0].mxu0
        %v2133 = vadd.f32 0.0, %v2132
        %v2134 = vpop.f32.mrb[0].mxu0
        %v2135 = vadd.f32 0.0, %v2134
        %v2136 = vpop.f32.mrb[0].mxu0
        %v2137 = vadd.f32 0.0, %v2136
        %v2138 = vpop.f32.mrb[0].mxu0
        %v2139 = vadd.f32 0.0, %v2138
        %2140 = vmatprep.mubr.bf16.mxu0 %v687
        %2141 = vmatmul.mubr.bf16.gmra.mrb[0].mxu0 %v671
        %v2142 = vpop.f32.mrb[0].mxu0
        %v2143 = vadd.f32 0.0, %v2142
        %v2144 = vpop.f32.mrb[0].mxu0
        %v2145 = vadd.f32 0.0, %v2144
        %v2146 = vpop.f32.mrb[0].mxu0
        %v2147 = vadd.f32 0.0, %v2146
        %v2148 = vpop.f32.mrb[0].mxu0
        %v2149 = vadd.f32 0.0, %v2148
        %2150 = vmatprep.mubr.bf16.mxu0 %v688
        %2151 = vmatmul.mubr.bf16.gmra.mrb[0].mxu0 %v672
        %v2152 = vpop.f32.mrb[0].mxu0
        %v2153 = vadd.f32 0.0, %v2152
        %v2154 = vpop.f32.mrb[0].mxu0
        %v2155 = vadd.f32 0.0, %v2154
        %v2156 = vpop.f32.mrb[0].mxu0
        %v2157 = vadd.f32 0.0, %v2156
        %v2158 = vpop.f32.mrb[0].mxu0
        %v2159 = vadd.f32 0.0, %v2158
        %2160 = vmatprep.mubr.bf16.mxu0 %v689
        %2161 = vmatmul.mubr.bf16.gmra.mrb[0].mxu0 %v673
        %v2162 = vpop.f32.mrb[0].mxu0
        %v2163 = vadd.f32 0.0, %v2162
        %v2164 = vpop.f32.mrb[0].mxu0
        %v2165 = vadd.f32 0.0, %v2164
        %v2166 = vpop.f32.mrb[0].mxu0
        %v2167 = vpop.f32.mrb[0].mxu0
        %2168 = vdwg.mxu0
        %2169 = vmatprep.subr.bf16.mxu0 %v1531
        %2170 = vmatpush1.bf16.msra.mxu0 %v1530
        %2171 = vmatprep.subr.bf16.mxu0 %v1540
        %2172 = vmatpush1.bf16.msra.mxu0 %v1539
        %2173 = vmatprep.subr.bf16.mxu0 %v1549
        %2174 = vmatpush1.bf16.msra.mxu0 %v1548
        %2175 = vmatprep.subr.bf16.mxu0 %v1558
        %2176 = vmatpush1.bf16.msra.mxu0 %v1557
        %2177 = vmatprep.subr.bf16.mxu0 %v1567
        %2178 = vmatpush1.bf16.msra.mxu0 %v1566
        %2179 = vmatprep.subr.bf16.mxu0 %v1576
        %2180 = vmatpush1.bf16.msra.mxu0 %v1575
        %2181 = vmatprep.subr.bf16.mxu0 %v1585
        %2182 = vmatpush1.bf16.msra.mxu0 %v1584
        %2183 = vmatprep.subr.bf16.mxu0 %v1594
        %2184 = vmatpush1.bf16.msra.mxu0 %v1593
        %2185 = vmatprep.subr.bf16.mxu0 0
        %2186 = vmatpush1.bf16.msra.mxu0 0
        %2187 = vmatprep.subr.bf16.mxu0 0
        %2188 = vmatpush1.bf16.msra.mxu0 0
        %2189 = vmatprep.subr.bf16.mxu0 0
        %2190 = vmatpush1.bf16.msra.mxu0 0
        %2191 = vmatprep.subr.bf16.mxu0 0
        %2192 = vmatpush1.bf16.msra.mxu0 0
        %2193 = vmatprep.subr.bf16.mxu0 0
        %2194 = vmatpush1.bf16.msra.mxu0 0
        %2195 = vmatprep.subr.bf16.mxu0 0
        %2196 = vmatpush1.bf16.msra.mxu0 0
        %2197 = vmatprep.subr.bf16.mxu0 0
        %2198 = vmatpush1.bf16.msra.mxu0 0
        %2199 = vmatprep.subr.bf16.mxu0 0
        %2200 = vmatpush1.bf16.msra.mxu0 0
        %2201 = vmatprep.mubr.bf16.mxu0 0
        %2202 = vmatmul.mubr.bf16.gmra.mrb[0].mxu0 %v702
        %v2203 = vpop.f32.mrb[0].mxu0
        %v2204 = vadd.f32 %v2133, %v2203
        %v2205 = vpop.f32.mrb[0].mxu0
        %v2206 = vadd.f32 %v2135, %v2205
        %v2207 = vpop.f32.mrb[0].mxu0
        %v2208 = vadd.f32 %v2137, %v2207
        %v2209 = vpop.f32.mrb[0].mxu0
        %v2210 = vadd.f32 %v2139, %v2209
        %2211 = vmatprep.mubr.bf16.mxu0 0
        %2212 = vmatmul.mubr.bf16.gmra.mrb[0].mxu0 %v703
        %v2213 = vpop.f32.mrb[0].mxu0
        %v2214 = vadd.f32 %v2143, %v2213
        %v2215 = vpop.f32.mrb[0].mxu0
        %v2216 = vadd.f32 %v2145, %v2215
        %v2217 = vpop.f32.mrb[0].mxu0
        %v2218 = vadd.f32 %v2147, %v2217
        %v2219 = vpop.f32.mrb[0].mxu0
        %v2220 = vadd.f32 %v2149, %v2219
        %2221 = vmatprep.mubr.bf16.mxu0 0
        %2222 = vmatmul.mubr.bf16.gmra.mrb[0].mxu0 %v704
        %v2223 = vpop.f32.mrb[0].mxu0
        %v2224 = vadd.f32 %v2153, %v2223
        %v2225 = vpop.f32.mrb[0].mxu0
        %v2226 = vadd.f32 %v2155, %v2225
        %v2227 = vpop.f32.mrb[0].mxu0
        %v2228 = vadd.f32 %v2157, %v2227
        %v2229 = vpop.f32.mrb[0].mxu0
        %v2230 = vadd.f32 %v2159, %v2229
        %2231 = vmatprep.mubr.bf16.mxu0 0
        %2232 = vmatmul.mubr.bf16.gmra.mrb[0].mxu0 %v705
        %v2233 = vpop.f32.mrb[0].mxu0
        %v2234 = vadd.f32 %v2163, %v2233
        %v2235 = vpop.f32.mrb[0].mxu0
        %v2236 = vadd.f32 %v2165, %v2235
        %v2237 = vpop.f32.mrb[0].mxu0
        %v2238 = vpop.f32.mrb[0].mxu0
        %2239 = vdwg.mxu0
        %2240 = vmatprep.subr.bf16.mxu0 %v1389
        %2241 = vmatpush1.bf16.msra.mxu0 %v1388
        %2242 = vmatprep.subr.bf16.mxu0 %v1398
        %2243 = vmatpush1.bf16.msra.mxu0 %v1397
        %2244 = vmatprep.subr.bf16.mxu0 %v1407
        %2245 = vmatpush1.bf16.msra.mxu0 %v1406
        %2246 = vmatprep.subr.bf16.mxu0 %v1416
        %2247 = vmatpush1.bf16.msra.mxu0 %v1415
        %2248 = vmatprep.subr.bf16.mxu0 %v1425
        %2249 = vmatpush1.bf16.msra.mxu0 %v1424
        %2250 = vmatprep.subr.bf16.mxu0 %v1434
        %2251 = vmatpush1.bf16.msra.mxu0 %v1433
        %2252 = vmatprep.subr.bf16.mxu0 %v1443
        %2253 = vmatpush1.bf16.msra.mxu0 %v1442
        %2254 = vmatprep.subr.bf16.mxu0 %v1452
        %2255 = vmatpush1.bf16.msra.mxu0 %v1451
        %2256 = vmatprep.subr.bf16.mxu0 %v1461
        %2257 = vmatpush1.bf16.msra.mxu0 %v1460
        %2258 = vmatprep.subr.bf16.mxu0 %v1470
        %2259 = vmatpush1.bf16.msra.mxu0 %v1469
        %2260 = vmatprep.subr.bf16.mxu0 %v1479
        %2261 = vmatpush1.bf16.msra.mxu0 %v1478
        %2262 = vmatprep.subr.bf16.mxu0 %v1488
        %2263 = vmatpush1.bf16.msra.mxu0 %v1487
        %2264 = vmatprep.subr.bf16.mxu0 %v1497
        %2265 = vmatpush1.bf16.msra.mxu0 %v1496
        %2266 = vmatprep.subr.bf16.mxu0 %v1506
        %2267 = vmatpush1.bf16.msra.mxu0 %v1505
        %2268 = vmatprep.subr.bf16.mxu0 %v1515
        %2269 = vmatpush1.bf16.msra.mxu0 %v1514
        %2270 = vmatprep.subr.bf16.mxu0 %v1524
        %2271 = vmatpush1.bf16.msra.mxu0 %v1523
        %2272 = vmatprep.mubr.bf16.mxu0 %v686
        %2273 = vmatmul.mubr.bf16.gmra.mrb[0].mxu0 %v670
        %v2274 = vpop.f32.mrb[0].mxu0
        %v2275 = vadd.f32 0.0, %v2274
        %v2276 = vpop.f32.mrb[0].mxu0
        %v2277 = vadd.f32 0.0, %v2276
        %v2278 = vpop.f32.mrb[0].mxu0
        %v2279 = vadd.f32 0.0, %v2278
        %v2280 = vpop.f32.mrb[0].mxu0
        %v2281 = vadd.f32 0.0, %v2280
        %2282 = vmatprep.mubr.bf16.mxu0 %v687
        %2283 = vmatmul.mubr.bf16.gmra.mrb[0].mxu0 %v671
        %v2284 = vpop.f32.mrb[0].mxu0
        %v2285 = vadd.f32 0.0, %v2284
        %v2286 = vpop.f32.mrb[0].mxu0
        %v2287 = vadd.f32 0.0, %v2286
        %v2288 = vpop.f32.mrb[0].mxu0
        %v2289 = vadd.f32 0.0, %v2288
        %v2290 = vpop.f32.mrb[0].mxu0
        %v2291 = vadd.f32 0.0, %v2290
        %2292 = vmatprep.mubr.bf16.mxu0 %v688
        %2293 = vmatmul.mubr.bf16.gmra.mrb[0].mxu0 %v672
        %v2294 = vpop.f32.mrb[0].mxu0
        %v2295 = vadd.f32 0.0, %v2294
        %v2296 = vpop.f32.mrb[0].mxu0
        %v2297 = vadd.f32 0.0, %v2296
        %v2298 = vpop.f32.mrb[0].mxu0
        %v2299 = vadd.f32 0.0, %v2298
        %v2300 = vpop.f32.mrb[0].mxu0
        %v2301 = vadd.f32 0.0, %v2300
        %2302 = vmatprep.mubr.bf16.mxu0 %v689
        %2303 = vmatmul.mubr.bf16.gmra.mrb[0].mxu0 %v673
        %v2304 = vpop.f32.mrb[0].mxu0
        %v2305 = vadd.f32 0.0, %v2304
        %v2306 = vpop.f32.mrb[0].mxu0
        %v2307 = vadd.f32 0.0, %v2306
        %v2308 = vpop.f32.mrb[0].mxu0
        %v2309 = vpop.f32.mrb[0].mxu0
        %2310 = vdwg.mxu0
        %2311 = vmatprep.subr.bf16.mxu0 %v1533
        %2312 = vmatpush1.bf16.msra.mxu0 %v1532
        %2313 = vmatprep.subr.bf16.mxu0 %v1542
        %2314 = vmatpush1.bf16.msra.mxu0 %v1541
        %2315 = vmatprep.subr.bf16.mxu0 %v1551
        %2316 = vmatpush1.bf16.msra.mxu0 %v1550
        %2317 = vmatprep.subr.bf16.mxu0 %v1560
        %2318 = vmatpush1.bf16.msra.mxu0 %v1559
        %2319 = vmatprep.subr.bf16.mxu0 %v1569
        %2320 = vmatpush1.bf16.msra.mxu0 %v1568
        %2321 = vmatprep.subr.bf16.mxu0 %v1578
        %2322 = vmatpush1.bf16.msra.mxu0 %v1577
        %2323 = vmatprep.subr.bf16.mxu0 %v1587
        %2324 = vmatpush1.bf16.msra.mxu0 %v1586
        %2325 = vmatprep.subr.bf16.mxu0 %v1596
        %2326 = vmatpush1.bf16.msra.mxu0 %v1595
        %2327 = vmatprep.subr.bf16.mxu0 0
        %2328 = vmatpush1.bf16.msra.mxu0 0
        %2329 = vmatprep.subr.bf16.mxu0 0
        %2330 = vmatpush1.bf16.msra.mxu0 0
        %2331 = vmatprep.subr.bf16.mxu0 0
        %2332 = vmatpush1.bf16.msra.mxu0 0
        %2333 = vmatprep.subr.bf16.mxu0 0
        %2334 = vmatpush1.bf16.msra.mxu0 0
        %2335 = vmatprep.subr.bf16.mxu0 0
        %2336 = vmatpush1.bf16.msra.mxu0 0
        %2337 = vmatprep.subr.bf16.mxu0 0
        %2338 = vmatpush1.bf16.msra.mxu0 0
        %2339 = vmatprep.subr.bf16.mxu0 0
        %2340 = vmatpush1.bf16.msra.mxu0 0
        %2341 = vmatprep.subr.bf16.mxu0 0
        %2342 = vmatpush1.bf16.msra.mxu0 0
        %2343 = vmatprep.mubr.bf16.mxu0 0
        %2344 = vmatmul.mubr.bf16.gmra.mrb[0].mxu0 %v702
        %v2345 = vpop.f32.mrb[0].mxu0
        %v2346 = vadd.f32 %v2275, %v2345
        %v2347 = vpop.f32.mrb[0].mxu0
        %v2348 = vadd.f32 %v2277, %v2347
        %v2349 = vpop.f32.mrb[0].mxu0
        %v2350 = vadd.f32 %v2279, %v2349
        %v2351 = vpop.f32.mrb[0].mxu0
        %v2352 = vadd.f32 %v2281, %v2351
        %2353 = vmatprep.mubr.bf16.mxu0 0
        %2354 = vmatmul.mubr.bf16.gmra.mrb[0].mxu0 %v703
        %v2355 = vpop.f32.mrb[0].mxu0
        %v2356 = vadd.f32 %v2285, %v2355
        %v2357 = vpop.f32.mrb[0].mxu0
        %v2358 = vadd.f32 %v2287, %v2357
        %v2359 = vpop.f32.mrb[0].mxu0
        %v2360 = vadd.f32 %v2289, %v2359
        %v2361 = vpop.f32.mrb[0].mxu0
        %v2362 = vadd.f32 %v2291, %v2361
        %2363 = vmatprep.mubr.bf16.mxu0 0
        %2364 = vmatmul.mubr.bf16.gmra.mrb[0].mxu0 %v704
        %v2365 = vpop.f32.mrb[0].mxu0
        %v2366 = vadd.f32 %v2295, %v2365
        %v2367 = vpop.f32.mrb[0].mxu0
        %v2368 = vadd.f32 %v2297, %v2367
        %v2369 = vpop.f32.mrb[0].mxu0
        %v2370 = vadd.f32 %v2299, %v2369
        %v2371 = vpop.f32.mrb[0].mxu0
        %v2372 = vadd.f32 %v2301, %v2371
        %2373 = vmatprep.mubr.bf16.mxu0 0
        %2374 = vmatmul.mubr.bf16.gmra.mrb[0].mxu0 %v705
        %v2375 = vpop.f32.mrb[0].mxu0
        %v2376 = vadd.f32 %v2305, %v2375
        %v2377 = vpop.f32.mrb[0].mxu0
        %v2378 = vadd.f32 %v2307, %v2377
        %v2379 = vpop.f32.mrb[0].mxu0
        %v2380 = vpop.f32.mrb[0].mxu0
        %2381 = vdwg.mxu0
        %2382 = vmatprep.subr.bf16.mxu0 0
        %2383 = vmatpush1.bf16.msra.mxu0 %v1390
        %2384 = vmatprep.subr.bf16.mxu0 0
        %2385 = vmatpush1.bf16.msra.mxu0 %v1399
        %2386 = vmatprep.subr.bf16.mxu0 0
        %2387 = vmatpush1.bf16.msra.mxu0 %v1408
        %2388 = vmatprep.subr.bf16.mxu0 0
        %2389 = vmatpush1.bf16.msra.mxu0 %v1417
        %2390 = vmatprep.subr.bf16.mxu0 0
        %2391 = vmatpush1.bf16.msra.mxu0 %v1426
        %2392 = vmatprep.subr.bf16.mxu0 0
        %2393 = vmatpush1.bf16.msra.mxu0 %v1435
        %2394 = vmatprep.subr.bf16.mxu0 0
        %2395 = vmatpush1.bf16.msra.mxu0 %v1444
        %2396 = vmatprep.subr.bf16.mxu0 0
        %2397 = vmatpush1.bf16.msra.mxu0 %v1453
        %2398 = vmatprep.subr.bf16.mxu0 0
        %2399 = vmatpush1.bf16.msra.mxu0 %v1462
        %2400 = vmatprep.subr.bf16.mxu0 0
        %2401 = vmatpush1.bf16.msra.mxu0 %v1471
        %2402 = vmatprep.subr.bf16.mxu0 0
        %2403 = vmatpush1.bf16.msra.mxu0 %v1480
        %2404 = vmatprep.subr.bf16.mxu0 0
        %2405 = vmatpush1.bf16.msra.mxu0 %v1489
        %2406 = vmatprep.subr.bf16.mxu0 0
        %2407 = vmatpush1.bf16.msra.mxu0 %v1498
        %2408 = vmatprep.subr.bf16.mxu0 0
        %2409 = vmatpush1.bf16.msra.mxu0 %v1507
        %2410 = vmatprep.subr.bf16.mxu0 0
        %2411 = vmatpush1.bf16.msra.mxu0 %v1516
        %2412 = vmatprep.subr.bf16.mxu0 0
        %2413 = vmatpush1.bf16.msra.mxu0 %v1525
        %2414 = vmatprep.mubr.bf16.mxu0 %v686
        %2415 = vmatmul.mubr.bf16.gmra.mrb[0].mxu0 %v670
        %v2416 = vpop.f32.mrb[0].mxu0
        %v2417 = vadd.f32 0.0, %v2416
        %v2418 = vpop.f32.mrb[0].mxu0
        %v2419 = vpop.f32.mrb[0].mxu0
        %v2420 = vadd.f32 0.0, %v2419
        %v2421 = vpop.f32.mrb[0].mxu0
        %2422 = vmatprep.mubr.bf16.mxu0 %v687
        %2423 = vmatmul.mubr.bf16.gmra.mrb[0].mxu0 %v671
        %v2424 = vpop.f32.mrb[0].mxu0
        %v2425 = vadd.f32 0.0, %v2424
        %v2426 = vpop.f32.mrb[0].mxu0
        %v2427 = vpop.f32.mrb[0].mxu0
        %v2428 = vadd.f32 0.0, %v2427
        %v2429 = vpop.f32.mrb[0].mxu0
        %2430 = vmatprep.mubr.bf16.mxu0 %v688
        %2431 = vmatmul.mubr.bf16.gmra.mrb[0].mxu0 %v672
        %v2432 = vpop.f32.mrb[0].mxu0
        %v2433 = vadd.f32 0.0, %v2432
        %v2434 = vpop.f32.mrb[0].mxu0
        %v2435 = vpop.f32.mrb[0].mxu0
        %v2436 = vadd.f32 0.0, %v2435
        %v2437 = vpop.f32.mrb[0].mxu0
        %2438 = vmatprep.mubr.bf16.mxu0 %v689
        %2439 = vmatmul.mubr.bf16.gmra.mrb[0].mxu0 %v673
        %v2440 = vpop.f32.mrb[0].mxu0
        %v2441 = vadd.f32 0.0, %v2440
        %v2442 = vpop.f32.mrb[0].mxu0
        %v2443 = vpop.f32.mrb[0].mxu0
        %v2444 = vpop.f32.mrb[0].mxu0
        %2445 = vdwg.mxu0
        %2446 = vmatprep.subr.bf16.mxu0 0
        %2447 = vmatpush1.bf16.msra.mxu0 %v1534
        %2448 = vmatprep.subr.bf16.mxu0 0
        %2449 = vmatpush1.bf16.msra.mxu0 %v1543
        %2450 = vmatprep.subr.bf16.mxu0 0
        %2451 = vmatpush1.bf16.msra.mxu0 %v1552
        %2452 = vmatprep.subr.bf16.mxu0 0
        %2453 = vmatpush1.bf16.msra.mxu0 %v1561
        %2454 = vmatprep.subr.bf16.mxu0 0
        %2455 = vmatpush1.bf16.msra.mxu0 %v1570
        %2456 = vmatprep.subr.bf16.mxu0 0
        %2457 = vmatpush1.bf16.msra.mxu0 %v1579
        %2458 = vmatprep.subr.bf16.mxu0 0
        %2459 = vmatpush1.bf16.msra.mxu0 %v1588
        %2460 = vmatprep.subr.bf16.mxu0 0
        %2461 = vmatpush1.bf16.msra.mxu0 %v1597
        %2462 = vmatprep.subr.bf16.mxu0 0
        %2463 = vmatpush1.bf16.msra.mxu0 0
        %2464 = vmatprep.subr.bf16.mxu0 0
        %2465 = vmatpush1.bf16.msra.mxu0 0
        %2466 = vmatprep.subr.bf16.mxu0 0
        %2467 = vmatpush1.bf16.msra.mxu0 0
        %2468 = vmatprep.subr.bf16.mxu0 0
        %2469 = vmatpush1.bf16.msra.mxu0 0
        %2470 = vmatprep.subr.bf16.mxu0 0
        %2471 = vmatpush1.bf16.msra.mxu0 0
        %2472 = vmatprep.subr.bf16.mxu0 0
        %2473 = vmatpush1.bf16.msra.mxu0 0
        %2474 = vmatprep.subr.bf16.mxu0 0
        %2475 = vmatpush1.bf16.msra.mxu0 0
        %2476 = vmatprep.subr.bf16.mxu0 0
        %2477 = vmatpush1.bf16.msra.mxu0 0
        %2478 = vmatprep.mubr.bf16.mxu0 0
        %2479 = vmatmul.mubr.bf16.gmra.mrb[0].mxu0 %v702
        %v2480 = vpop.f32.mrb[0].mxu0
        %v2481 = vadd.f32 %v2417, %v2480
        %v2482 = vpop.f32.mrb[0].mxu0
        %v2483 = vpop.f32.mrb[0].mxu0
        %v2484 = vadd.f32 %v2420, %v2483
        %v2485 = vpop.f32.mrb[0].mxu0
        %2486 = vmatprep.mubr.bf16.mxu0 0
        %2487 = vmatmul.mubr.bf16.gmra.mrb[0].mxu0 %v703
        %v2488 = vpop.f32.mrb[0].mxu0
        %v2489 = vadd.f32 %v2425, %v2488
        %v2490 = vpop.f32.mrb[0].mxu0
        %v2491 = vpop.f32.mrb[0].mxu0
        %v2492 = vadd.f32 %v2428, %v2491
        %v2493 = vpop.f32.mrb[0].mxu0
        %2494 = vmatprep.mubr.bf16.mxu0 0
        %2495 = vmatmul.mubr.bf16.gmra.mrb[0].mxu0 %v704
        %v2496 = vpop.f32.mrb[0].mxu0
        %v2497 = vadd.f32 %v2433, %v2496
        %v2498 = vpop.f32.mrb[0].mxu0
        %v2499 = vpop.f32.mrb[0].mxu0
        %v2500 = vadd.f32 %v2436, %v2499
        %v2501 = vpop.f32.mrb[0].mxu0
        %2502 = vmatprep.mubr.bf16.mxu0 0
        %2503 = vmatmul.mubr.bf16.gmra.mrb[0].mxu0 %v705
        %v2504 = vpop.f32.mrb[0].mxu0
        %v2505 = vadd.f32 %v2441, %v2504
        %v2506 = vpop.f32.mrb[0].mxu0
        %v2507 = vpop.f32.mrb[0].mxu0
        %v2508 = vpop.f32.mrb[0].mxu0
        %2509 = vdwg.mxu0
        %v2510 = vadd.f32 %v1920, %v1924
        %v2511 = vadd.f32 %v2510, %v1930
        %v2512 = vadd.f32 %v2511, %v1934
        %v2513 = vadd.f32 %v2512, %v1940
        %v2514 = vadd.f32 %v2513, %v1944
        %vm2515 = vcmask 1040384
        %v2516 = vsel %vm2515, %v1950, 0.0
        %v2517 = vadd.f32 %v2514, %v2516
        %v2518 = vrot.slane %v2517, 4
        %v2519 = vadd.f32 %v2517, %v2518
        %v2520 = vrot.slane %v2519, 2
        %v2521 = vadd.f32 %v2519, %v2520
        %v2522 = vrot.slane %v2521, 1
        %v2523 = vadd.f32 %v2521, %v2522
        %v2524 = vadd.f32 %v1922, %v1926
        %v2525 = vadd.f32 %v2524, %v1932
        %v2526 = vadd.f32 %v2525, %v1936
        %v2527 = vadd.f32 %v2526, %v1942
        %v2528 = vadd.f32 %v2527, %v1946
        %v2529 = vsel %vm2515, %v1952, 0.0
        %v2530 = vadd.f32 %v2528, %v2529
        %v2531 = vrot.slane %v2530, 4
        %v2532 = vadd.f32 %v2530, %v2531
        %v2533 = vrot.slane %v2532, 2
        %v2534 = vadd.f32 %v2532, %v2533
        %v2535 = vrot.slane %v2534, 1
        %v2536 = vadd.f32 %v2534, %v2535
        %v2537 = vadd.f32 %v2062, %v2066
        %v2538 = vadd.f32 %v2537, %v2072
        %v2539 = vadd.f32 %v2538, %v2076
        %v2540 = vadd.f32 %v2539, %v2082
        %v2541 = vadd.f32 %v2540, %v2086
        %v2542 = vsel %vm2515, %v2092, 0.0
        %v2543 = vadd.f32 %v2541, %v2542
        %v2544 = vrot.slane %v2543, 4
        %v2545 = vadd.f32 %v2543, %v2544
        %v2546 = vrot.slane %v2545, 2
        %v2547 = vadd.f32 %v2545, %v2546
        %v2548 = vrot.slane %v2547, 1
        %v2549 = vadd.f32 %v2547, %v2548
        %v2550 = vadd.f32 %v2064, %v2068
        %v2551 = vadd.f32 %v2550, %v2074
        %v2552 = vadd.f32 %v2551, %v2078
        %v2553 = vadd.f32 %v2552, %v2084
        %v2554 = vadd.f32 %v2553, %v2088
        %v2555 = vsel %vm2515, %v2094, 0.0
        %v2556 = vadd.f32 %v2554, %v2555
        %v2557 = vrot.slane %v2556, 4
        %v2558 = vadd.f32 %v2556, %v2557
        %v2559 = vrot.slane %v2558, 2
        %v2560 = vadd.f32 %v2558, %v2559
        %v2561 = vrot.slane %v2560, 1
        %v2562 = vadd.f32 %v2560, %v2561
        %v2563 = vadd.f32 %v2204, %v2208
        %v2564 = vadd.f32 %v2563, %v2214
        %v2565 = vadd.f32 %v2564, %v2218
        %v2566 = vadd.f32 %v2565, %v2224
        %v2567 = vadd.f32 %v2566, %v2228
        %v2568 = vsel %vm2515, %v2234, 0.0
        %v2569 = vadd.f32 %v2567, %v2568
        %v2570 = vrot.slane %v2569, 4
        %v2571 = vadd.f32 %v2569, %v2570
        %v2572 = vrot.slane %v2571, 2
        %v2573 = vadd.f32 %v2571, %v2572
        %v2574 = vrot.slane %v2573, 1
        %v2575 = vadd.f32 %v2573, %v2574
        %v2576 = vadd.f32 %v2206, %v2210
        %v2577 = vadd.f32 %v2576, %v2216
        %v2578 = vadd.f32 %v2577, %v2220
        %v2579 = vadd.f32 %v2578, %v2226
        %v2580 = vadd.f32 %v2579, %v2230
        %v2581 = vsel %vm2515, %v2236, 0.0
        %v2582 = vadd.f32 %v2580, %v2581
        %v2583 = vrot.slane %v2582, 4
        %v2584 = vadd.f32 %v2582, %v2583
        %v2585 = vrot.slane %v2584, 2
        %v2586 = vadd.f32 %v2584, %v2585
        %v2587 = vrot.slane %v2586, 1
        %v2588 = vadd.f32 %v2586, %v2587
        %v2589 = vadd.f32 %v2346, %v2350
        %v2590 = vadd.f32 %v2589, %v2356
        %v2591 = vadd.f32 %v2590, %v2360
        %v2592 = vadd.f32 %v2591, %v2366
        %v2593 = vadd.f32 %v2592, %v2370
        %v2594 = vsel %vm2515, %v2376, 0.0
        %v2595 = vadd.f32 %v2593, %v2594
        %v2596 = vrot.slane %v2595, 4
        %v2597 = vadd.f32 %v2595, %v2596
        %v2598 = vrot.slane %v2597, 2
        %v2599 = vadd.f32 %v2597, %v2598
        %v2600 = vrot.slane %v2599, 1
        %v2601 = vadd.f32 %v2599, %v2600
        %v2602 = vadd.f32 %v2348, %v2352
        %v2603 = vadd.f32 %v2602, %v2358
        %v2604 = vadd.f32 %v2603, %v2362
        %v2605 = vadd.f32 %v2604, %v2368
        %v2606 = vadd.f32 %v2605, %v2372
        %v2607 = vsel %vm2515, %v2378, 0.0
        %v2608 = vadd.f32 %v2606, %v2607
        %v2609 = vrot.slane %v2608, 4
        %v2610 = vadd.f32 %v2608, %v2609
        %v2611 = vrot.slane %v2610, 2
        %v2612 = vadd.f32 %v2610, %v2611
        %v2613 = vrot.slane %v2612, 1
        %v2614 = vadd.f32 %v2612, %v2613
        %v2615 = vadd.f32 %v2481, %v2484
        %v2616 = vadd.f32 %v2615, %v2489
        %v2617 = vadd.f32 %v2616, %v2492
        %v2618 = vadd.f32 %v2617, %v2497
        %v2619 = vadd.f32 %v2618, %v2500
        %v2620 = vsel %vm2515, %v2505, 0.0
        %v2621 = vadd.f32 %v2619, %v2620
        %v2622 = vrot.slane %v2621, 4
        %v2623 = vadd.f32 %v2621, %v2622
        %v2624 = vrot.slane %v2623, 2
        %v2625 = vadd.f32 %v2623, %v2624
        %v2626 = vrot.slane %v2625, 1
        %v2627 = vadd.f32 %v2625, %v2626
        %v2628 = vmul.f32 %v2523, 0.020408163
        %v2629 = vmul.f32 %v2536, 0.020408163
        %v2630 = vmul.f32 %v2549, 0.020408163
        %v2631 = vmul.f32 %v2562, 0.020408163
        %v2632 = vmul.f32 %v2575, 0.020408163
        %v2633 = vmul.f32 %v2588, 0.020408163
        %v2634 = vmul.f32 %v2601, 0.020408163
        %v2635 = vmul.f32 %v2614, 0.020408163
        %v2636 = vmul.f32 %v2627, 0.020408163
        %v2637 = vsub.f32 %v1920, %v2628
        %v2638 = vsub.f32 %v1922, %v2629
        %v2639 = vsub.f32 %v2062, %v2630
        %v2640 = vsub.f32 %v2064, %v2631
        %v2641 = vsub.f32 %v2204, %v2632
        %v2642 = vsub.f32 %v2206, %v2633
        %v2643 = vsub.f32 %v2346, %v2634
        %v2644 = vsub.f32 %v2348, %v2635
        %v2645 = vsub.f32 %v2481, %v2636
        %v2646 = vsub.f32 %v1924, %v2628
        %v2647 = vsub.f32 %v1926, %v2629
        %v2648 = vsub.f32 %v2066, %v2630
        %v2649 = vsub.f32 %v2068, %v2631
        %v2650 = vsub.f32 %v2208, %v2632
        %v2651 = vsub.f32 %v2210, %v2633
        %v2652 = vsub.f32 %v2350, %v2634
        %v2653 = vsub.f32 %v2352, %v2635
        %v2654 = vsub.f32 %v2484, %v2636
        %v2655 = vsub.f32 %v1930, %v2628
        %v2656 = vsub.f32 %v1932, %v2629
        %v2657 = vsub.f32 %v2072, %v2630
        %v2658 = vsub.f32 %v2074, %v2631
        %v2659 = vsub.f32 %v2214, %v2632
        %v2660 = vsub.f32 %v2216, %v2633
        %v2661 = vsub.f32 %v2356, %v2634
        %v2662 = vsub.f32 %v2358, %v2635
        %v2663 = vsub.f32 %v2489, %v2636
        %v2664 = vsub.f32 %v1934, %v2628
        %v2665 = vsub.f32 %v1936, %v2629
        %v2666 = vsub.f32 %v2076, %v2630
        %v2667 = vsub.f32 %v2078, %v2631
        %v2668 = vsub.f32 %v2218, %v2632
        %v2669 = vsub.f32 %v2220, %v2633
        %v2670 = vsub.f32 %v2360, %v2634
        %v2671 = vsub.f32 %v2362, %v2635
        %v2672 = vsub.f32 %v2492, %v2636
        %v2673 = vsub.f32 %v1940, %v2628
        %v2674 = vsub.f32 %v1942, %v2629
        %v2675 = vsub.f32 %v2082, %v2630
        %v2676 = vsub.f32 %v2084, %v2631
        %v2677 = vsub.f32 %v2224, %v2632
        %v2678 = vsub.f32 %v2226, %v2633
        %v2679 = vsub.f32 %v2366, %v2634
        %v2680 = vsub.f32 %v2368, %v2635
        %v2681 = vsub.f32 %v2497, %v2636
        %v2682 = vsub.f32 %v1944, %v2628
        %v2683 = vsub.f32 %v1946, %v2629
        %v2684 = vsub.f32 %v2086, %v2630
        %v2685 = vsub.f32 %v2088, %v2631
        %v2686 = vsub.f32 %v2228, %v2632
        %v2687 = vsub.f32 %v2230, %v2633
        %v2688 = vsub.f32 %v2370, %v2634
        %v2689 = vsub.f32 %v2372, %v2635
        %v2690 = vsub.f32 %v2500, %v2636
        %v2691 = vsub.f32 %v1950, %v2628
        %v2692 = vsub.f32 %v1952, %v2629
        %v2693 = vsub.f32 %v2092, %v2630
        %v2694 = vsub.f32 %v2094, %v2631
        %v2695 = vsub.f32 %v2234, %v2632
        %v2696 = vsub.f32 %v2236, %v2633
        %v2697 = vsub.f32 %v2376, %v2634
        %v2698 = vsub.f32 %v2378, %v2635
        %v2699 = vsub.f32 %v2505, %v2636
        %v2700 = vmul.f32 %v2637, %v2637
        %v2701 = vmul.f32 %v2638, %v2638
        %v2702 = vmul.f32 %v2639, %v2639
        %v2703 = vmul.f32 %v2640, %v2640
        %v2704 = vmul.f32 %v2641, %v2641
        %v2705 = vmul.f32 %v2642, %v2642
        %v2706 = vmul.f32 %v2643, %v2643
        %v2707 = vmul.f32 %v2644, %v2644
        %v2708 = vmul.f32 %v2645, %v2645
        %v2709 = vmul.f32 %v2646, %v2646
        %v2710 = vmul.f32 %v2647, %v2647
        %v2711 = vmul.f32 %v2648, %v2648
        %v2712 = vmul.f32 %v2649, %v2649
        %v2713 = vmul.f32 %v2650, %v2650
        %v2714 = vmul.f32 %v2651, %v2651
        %v2715 = vmul.f32 %v2652, %v2652
        %v2716 = vmul.f32 %v2653, %v2653
        %v2717 = vmul.f32 %v2654, %v2654
        %v2718 = vmul.f32 %v2655, %v2655
        %v2719 = vmul.f32 %v2656, %v2656
        %v2720 = vmul.f32 %v2657, %v2657
        %v2721 = vmul.f32 %v2658, %v2658
        %v2722 = vmul.f32 %v2659, %v2659
        %v2723 = vmul.f32 %v2660, %v2660
        %v2724 = vmul.f32 %v2661, %v2661
        %v2725 = vmul.f32 %v2662, %v2662
        %v2726 = vmul.f32 %v2663, %v2663
        %v2727 = vmul.f32 %v2664, %v2664
        %v2728 = vmul.f32 %v2665, %v2665
        %v2729 = vmul.f32 %v2666, %v2666
        %v2730 = vmul.f32 %v2667, %v2667
        %v2731 = vmul.f32 %v2668, %v2668
        %v2732 = vmul.f32 %v2669, %v2669
        %v2733 = vmul.f32 %v2670, %v2670
        %v2734 = vmul.f32 %v2671, %v2671
        %v2735 = vmul.f32 %v2672, %v2672
        %v2736 = vmul.f32 %v2673, %v2673
        %v2737 = vmul.f32 %v2674, %v2674
        %v2738 = vmul.f32 %v2675, %v2675
        %v2739 = vmul.f32 %v2676, %v2676
        %v2740 = vmul.f32 %v2677, %v2677
        %v2741 = vmul.f32 %v2678, %v2678
        %v2742 = vmul.f32 %v2679, %v2679
        %v2743 = vmul.f32 %v2680, %v2680
        %v2744 = vmul.f32 %v2681, %v2681
        %v2745 = vmul.f32 %v2682, %v2682
        %v2746 = vmul.f32 %v2683, %v2683
        %v2747 = vmul.f32 %v2684, %v2684
        %v2748 = vmul.f32 %v2685, %v2685
        %v2749 = vmul.f32 %v2686, %v2686
        %v2750 = vmul.f32 %v2687, %v2687
        %v2751 = vmul.f32 %v2688, %v2688
        %v2752 = vmul.f32 %v2689, %v2689
        %v2753 = vmul.f32 %v2690, %v2690
        %v2754 = vmul.f32 %v2691, %v2691
        %v2755 = vmul.f32 %v2692, %v2692
        %v2756 = vmul.f32 %v2693, %v2693
        %v2757 = vmul.f32 %v2694, %v2694
        %v2758 = vmul.f32 %v2695, %v2695
        %v2759 = vmul.f32 %v2696, %v2696
        %v2760 = vmul.f32 %v2697, %v2697
        %v2761 = vmul.f32 %v2698, %v2698
        %v2762 = vmul.f32 %v2699, %v2699
        %v2763 = vadd.f32 %v2700, %v2709
        %v2764 = vadd.f32 %v2763, %v2718
        %v2765 = vadd.f32 %v2764, %v2727
        %v2766 = vadd.f32 %v2765, %v2736
        %v2767 = vadd.f32 %v2766, %v2745
        %v2768 = vsel %vm2515, %v2754, 0.0
        %v2769 = vadd.f32 %v2767, %v2768
        %v2770 = vrot.slane %v2769, 4
        %v2771 = vadd.f32 %v2769, %v2770
        %v2772 = vrot.slane %v2771, 2
        %v2773 = vadd.f32 %v2771, %v2772
        %v2774 = vrot.slane %v2773, 1
        %v2775 = vadd.f32 %v2773, %v2774
        %v2776 = vadd.f32 %v2701, %v2710
        %v2777 = vadd.f32 %v2776, %v2719
        %v2778 = vadd.f32 %v2777, %v2728
        %v2779 = vadd.f32 %v2778, %v2737
        %v2780 = vadd.f32 %v2779, %v2746
        %v2781 = vsel %vm2515, %v2755, 0.0
        %v2782 = vadd.f32 %v2780, %v2781
        %v2783 = vrot.slane %v2782, 4
        %v2784 = vadd.f32 %v2782, %v2783
        %v2785 = vrot.slane %v2784, 2
        %v2786 = vadd.f32 %v2784, %v2785
        %v2787 = vrot.slane %v2786, 1
        %v2788 = vadd.f32 %v2786, %v2787
        %v2789 = vadd.f32 %v2702, %v2711
        %v2790 = vadd.f32 %v2789, %v2720
        %v2791 = vadd.f32 %v2790, %v2729
        %v2792 = vadd.f32 %v2791, %v2738
        %v2793 = vadd.f32 %v2792, %v2747
        %v2794 = vsel %vm2515, %v2756, 0.0
        %v2795 = vadd.f32 %v2793, %v2794
        %v2796 = vrot.slane %v2795, 4
        %v2797 = vadd.f32 %v2795, %v2796
        %v2798 = vrot.slane %v2797, 2
        %v2799 = vadd.f32 %v2797, %v2798
        %v2800 = vrot.slane %v2799, 1
        %v2801 = vadd.f32 %v2799, %v2800
        %v2802 = vadd.f32 %v2703, %v2712
        %v2803 = vadd.f32 %v2802, %v2721
        %v2804 = vadd.f32 %v2803, %v2730
        %v2805 = vadd.f32 %v2804, %v2739
        %v2806 = vadd.f32 %v2805, %v2748
        %v2807 = vsel %vm2515, %v2757, 0.0
        %v2808 = vadd.f32 %v2806, %v2807
        %v2809 = vrot.slane %v2808, 4
        %v2810 = vadd.f32 %v2808, %v2809
        %v2811 = vrot.slane %v2810, 2
        %v2812 = vadd.f32 %v2810, %v2811
        %v2813 = vrot.slane %v2812, 1
        %v2814 = vadd.f32 %v2812, %v2813
        %v2815 = vadd.f32 %v2704, %v2713
        %v2816 = vadd.f32 %v2815, %v2722
        %v2817 = vadd.f32 %v2816, %v2731
        %v2818 = vadd.f32 %v2817, %v2740
        %v2819 = vadd.f32 %v2818, %v2749
        %v2820 = vsel %vm2515, %v2758, 0.0
        %v2821 = vadd.f32 %v2819, %v2820
        %v2822 = vrot.slane %v2821, 4
        %v2823 = vadd.f32 %v2821, %v2822
        %v2824 = vrot.slane %v2823, 2
        %v2825 = vadd.f32 %v2823, %v2824
        %v2826 = vrot.slane %v2825, 1
        %v2827 = vadd.f32 %v2825, %v2826
        %v2828 = vadd.f32 %v2705, %v2714
        %v2829 = vadd.f32 %v2828, %v2723
        %v2830 = vadd.f32 %v2829, %v2732
        %v2831 = vadd.f32 %v2830, %v2741
        %v2832 = vadd.f32 %v2831, %v2750
        %v2833 = vsel %vm2515, %v2759, 0.0
        %v2834 = vadd.f32 %v2832, %v2833
        %v2835 = vrot.slane %v2834, 4
        %v2836 = vadd.f32 %v2834, %v2835
        %v2837 = vrot.slane %v2836, 2
        %v2838 = vadd.f32 %v2836, %v2837
        %v2839 = vrot.slane %v2838, 1
        %v2840 = vadd.f32 %v2838, %v2839
        %v2841 = vadd.f32 %v2706, %v2715
        %v2842 = vadd.f32 %v2841, %v2724
        %v2843 = vadd.f32 %v2842, %v2733
        %v2844 = vadd.f32 %v2843, %v2742
        %v2845 = vadd.f32 %v2844, %v2751
        %v2846 = vsel %vm2515, %v2760, 0.0
        %v2847 = vadd.f32 %v2845, %v2846
        %v2848 = vrot.slane %v2847, 4
        %v2849 = vadd.f32 %v2847, %v2848
        %v2850 = vrot.slane %v2849, 2
        %v2851 = vadd.f32 %v2849, %v2850
        %v2852 = vrot.slane %v2851, 1
        %v2853 = vadd.f32 %v2851, %v2852
        %v2854 = vadd.f32 %v2707, %v2716
        %v2855 = vadd.f32 %v2854, %v2725
        %v2856 = vadd.f32 %v2855, %v2734
        %v2857 = vadd.f32 %v2856, %v2743
        %v2858 = vadd.f32 %v2857, %v2752
        %v2859 = vsel %vm2515, %v2761, 0.0
        %v2860 = vadd.f32 %v2858, %v2859
        %v2861 = vrot.slane %v2860, 4
        %v2862 = vadd.f32 %v2860, %v2861
        %v2863 = vrot.slane %v2862, 2
        %v2864 = vadd.f32 %v2862, %v2863
        %v2865 = vrot.slane %v2864, 1
        %v2866 = vadd.f32 %v2864, %v2865
        %v2867 = vadd.f32 %v2708, %v2717
        %v2868 = vadd.f32 %v2867, %v2726
        %v2869 = vadd.f32 %v2868, %v2735
        %v2870 = vadd.f32 %v2869, %v2744
        %v2871 = vadd.f32 %v2870, %v2753
        %v2872 = vsel %vm2515, %v2762, 0.0
        %v2873 = vadd.f32 %v2871, %v2872
        %v2874 = vrot.slane %v2873, 4
        %v2875 = vadd.f32 %v2873, %v2874
        %v2876 = vrot.slane %v2875, 2
        %v2877 = vadd.f32 %v2875, %v2876
        %v2878 = vrot.slane %v2877, 1
        %v2879 = vadd.f32 %v2877, %v2878
        %v2880 = vmul.f32 %v2775, 0.020408163
        %v2881 = vmul.f32 %v2788, 0.020408163
        %v2882 = vmul.f32 %v2801, 0.020408163
        %v2883 = vmul.f32 %v2814, 0.020408163
        %v2884 = vmul.f32 %v2827, 0.020408163
        %v2885 = vmul.f32 %v2840, 0.020408163
        %v2886 = vmul.f32 %v2853, 0.020408163
        %v2887 = vmul.f32 %v2866, 0.020408163
        %v2888 = vmul.f32 %v2879, 0.020408163
        %v2889 = vld [vmem:[%s221] ss:$2 sm:$0xff]
        %s2890 = scalar_lea.vmem %s221, 16 [#allocation4]
        %v2891 = vld [vmem:[%s2890] ss:$2 sm:$0x1]
        %s2892 = scalar_lea.vmem %s221, 1 [#allocation4]
        %v2893 = vld [vmem:[%s2892] ss:$2 sm:$0xff]
        %s2894 = scalar_lea.vmem %s221, 17 [#allocation4]
        %v2895 = vld [vmem:[%s2894] ss:$2 sm:$0x1]
        %v2896 = vadd.f32 %v2880, 0.001
        %v2897 = vadd.f32 %v2881, 0.001
        %v2898 = vadd.f32 %v2882, 0.001
        %v2899 = vadd.f32 %v2883, 0.001
        %v2900 = vadd.f32 %v2884, 0.001
        %v2901 = vadd.f32 %v2885, 0.001
        %v2902 = vadd.f32 %v2886, 0.001
        %v2903 = vadd.f32 %v2887, 0.001
        %v2904 = vadd.f32 %v2888, 0.001
        %v2905 = vrsqrt.pop %v2896
        %v2906 = vrsqrt.pop %v2897
        %v2907 = vrsqrt.pop %v2898
        %v2908 = vrsqrt.pop %v2899
        %v2909 = vrsqrt.pop %v2900
        %v2910 = vrsqrt.pop %v2901
        %v2911 = vrsqrt.pop %v2902
        %v2912 = vrsqrt.pop %v2903
        %v2913 = vrsqrt.pop %v2904
        %v2923 = vcombine.low %v2905, %v2906
        %v2924 = vcombine.low %v2907, %v2908
        %v2925 = vcombine.low %v2909, %v2910
        %v2926 = vcombine.low %v2911, %v2912
        %v2928 = vunpack.c.l.s4 1966171168
        %v2929 = vunpack.c.0.s8 %v2928
        %v2930 = vlaneseq
        %v2931 = vshrl.u32 %v2930, 7
        %v2932 = vsub.s32 %v2929, %v2931
        %v2933 = vrot.slane %v2923, %v2932
        %v2935 = vunpack.c.l.s4 1966171168
        %v2936 = vunpack.c.0.s8 %v2935
        %v2937 = vlaneseq
        %v2938 = vshrl.u32 %v2937, 7
        %v2939 = vsub.s32 %v2936, %v2938
        %v2940 = vrot.slane %v2924, %v2939
        %v2942 = vunpack.c.l.s4 1966171168
        %v2943 = vunpack.c.0.s8 %v2942
        %v2944 = vlaneseq
        %v2945 = vshrl.u32 %v2944, 7
        %v2946 = vsub.s32 %v2943, %v2945
        %v2947 = vrot.slane %v2925, %v2946
        %v2949 = vunpack.c.l.s4 1966171168
        %v2950 = vunpack.c.0.s8 %v2949
        %v2951 = vlaneseq
        %v2952 = vshrl.u32 %v2951, 7
        %v2953 = vsub.s32 %v2950, %v2952
        %v2954 = vrot.slane %v2926, %v2953
        %v2955 = vcombine.low %v2933, %v2940
        %v2956 = vcombine.low %v2947, %v2954
        %v2958 = vunpack.c.l.s4 1966171168
        %v2959 = vunpack.c.0.s8 %v2958
        %v2960 = vlaneseq
        %v2961 = vshrl.u32 %v2960, 7
        %v2962 = vsub.s32 %v2959, %v2961
        %v2963 = vrot.slane %v2955, %v2962
        %v2965 = vunpack.c.l.s4 1966171168
        %v2966 = vunpack.c.0.s8 %v2965
        %v2967 = vlaneseq
        %v2968 = vshrl.u32 %v2967, 7
        %v2969 = vsub.s32 %v2966, %v2968
        %v2970 = vrot.slane %v2956, %v2969
        %v2971 = vcombine.low %v2963, %v2970
        %v2973 = vunpack.c.l.s4 1966171168
        %v2974 = vunpack.c.0.s8 %v2973
        %v2975 = vlaneseq
        %v2976 = vshrl.u32 %v2975, 7
        %v2977 = vsub.s32 %v2974, %v2976
        %v2978 = vrot.slane %v2913, %v2977
        %v2980 = vunpack.c.l.s4 1966171168
        %v2981 = vunpack.c.0.s8 %v2980
        %v2982 = vlaneseq
        %v2983 = vshrl.u32 %v2982, 7
        %v2984 = vsub.s32 %v2981, %v2983
        %v2985 = vrot.slane %v2978, %v2984
        %v2988 = vmul.f32 %v2889, %v2971
        %v2989 = vmul.f32 %v2891, %v2985
        %v2992 = vlaneseq
        %v2993 = vshrl.u32 %v2992, 7
        %v2994 = vsub.s32 0, %v2993
        %v2995 = vrot.slane %v2988, %v2994
        %v2996 = vlaneseq
        %v2997 = vshrl.u32 %v2996, 7
        %v2998 = vsub.s32 1, %v2997
        %v2999 = vrot.slane %v2988, %v2998
        %v3000 = vlaneseq
        %v3001 = vshrl.u32 %v3000, 7
        %v3002 = vsub.s32 2, %v3001
        %v3003 = vrot.slane %v2988, %v3002
        %v3004 = vlaneseq
        %v3005 = vshrl.u32 %v3004, 7
        %v3006 = vsub.s32 3, %v3005
        %v3007 = vrot.slane %v2988, %v3006
        %v3008 = vlaneseq
        %v3009 = vshrl.u32 %v3008, 7
        %v3010 = vsub.s32 4, %v3009
        %v3011 = vrot.slane %v2988, %v3010
        %v3012 = vlaneseq
        %v3013 = vshrl.u32 %v3012, 7
        %v3014 = vsub.s32 5, %v3013
        %v3015 = vrot.slane %v2988, %v3014
        %v3016 = vlaneseq
        %v3017 = vshrl.u32 %v3016, 7
        %v3018 = vsub.s32 6, %v3017
        %v3019 = vrot.slane %v2988, %v3018
        %v3020 = vlaneseq
        %v3021 = vshrl.u32 %v3020, 7
        %v3022 = vsub.s32 7, %v3021
        %v3023 = vrot.slane %v2988, %v3022
        %v3024 = vlaneseq
        %v3025 = vshrl.u32 %v3024, 7
        %v3026 = vsub.s32 0, %v3025
        %v3027 = vrot.slane %v2989, %v3026
        %v3037 = vmul.f32 %v2637, %v2995
        %v3038 = vmul.f32 %v2638, %v2999
        %v3039 = vmul.f32 %v2639, %v3003
        %v3040 = vmul.f32 %v2640, %v3007
        %v3041 = vmul.f32 %v2641, %v3011
        %v3042 = vmul.f32 %v2642, %v3015
        %v3043 = vmul.f32 %v2643, %v3019
        %v3044 = vmul.f32 %v2644, %v3023
        %v3045 = vmul.f32 %v2645, %v3027
        %v3046 = vmul.f32 %v2646, %v2995
        %v3047 = vmul.f32 %v2647, %v2999
        %v3048 = vmul.f32 %v2648, %v3003
        %v3049 = vmul.f32 %v2649, %v3007
        %v3050 = vmul.f32 %v2650, %v3011
        %v3051 = vmul.f32 %v2651, %v3015
        %v3052 = vmul.f32 %v2652, %v3019
        %v3053 = vmul.f32 %v2653, %v3023
        %v3054 = vmul.f32 %v2654, %v3027
        %v3055 = vmul.f32 %v2655, %v2995
        %v3056 = vmul.f32 %v2656, %v2999
        %v3057 = vmul.f32 %v2657, %v3003
        %v3058 = vmul.f32 %v2658, %v3007
        %v3059 = vmul.f32 %v2659, %v3011
        %v3060 = vmul.f32 %v2660, %v3015
        %v3061 = vmul.f32 %v2661, %v3019
        %v3062 = vmul.f32 %v2662, %v3023
        %v3063 = vmul.f32 %v2663, %v3027
        %v3064 = vmul.f32 %v2664, %v2995
        %v3065 = vmul.f32 %v2665, %v2999
        %v3066 = vmul.f32 %v2666, %v3003
        %v3067 = vmul.f32 %v2667, %v3007
        %v3068 = vmul.f32 %v2668, %v3011
        %v3069 = vmul.f32 %v2669, %v3015
        %v3070 = vmul.f32 %v2670, %v3019
        %v3071 = vmul.f32 %v2671, %v3023
        %v3072 = vmul.f32 %v2672, %v3027
        %v3073 = vmul.f32 %v2673, %v2995
        %v3074 = vmul.f32 %v2674, %v2999
        %v3075 = vmul.f32 %v2675, %v3003
        %v3076 = vmul.f32 %v2676, %v3007
        %v3077 = vmul.f32 %v2677, %v3011
        %v3078 = vmul.f32 %v2678, %v3015
        %v3079 = vmul.f32 %v2679, %v3019
        %v3080 = vmul.f32 %v2680, %v3023
        %v3081 = vmul.f32 %v2681, %v3027
        %v3082 = vmul.f32 %v2682, %v2995
        %v3083 = vmul.f32 %v2683, %v2999
        %v3084 = vmul.f32 %v2684, %v3003
        %v3085 = vmul.f32 %v2685, %v3007
        %v3086 = vmul.f32 %v2686, %v3011
        %v3087 = vmul.f32 %v2687, %v3015
        %v3088 = vmul.f32 %v2688, %v3019
        %v3089 = vmul.f32 %v2689, %v3023
        %v3090 = vmul.f32 %v2690, %v3027
        %v3091 = vmul.f32 %v2691, %v2995
        %v3092 = vmul.f32 %v2692, %v2999
        %v3093 = vmul.f32 %v2693, %v3003
        %v3094 = vmul.f32 %v2694, %v3007
        %v3095 = vmul.f32 %v2695, %v3011
        %v3096 = vmul.f32 %v2696, %v3015
        %v3097 = vmul.f32 %v2697, %v3019
        %v3098 = vmul.f32 %v2698, %v3023
        %v3099 = vmul.f32 %v2699, %v3027
        %v3102 = vlaneseq
        %v3103 = vshrl.u32 %v3102, 7
        %v3104 = vsub.s32 0, %v3103
        %v3105 = vrot.slane %v2893, %v3104
        %v3106 = vlaneseq
        %v3107 = vshrl.u32 %v3106, 7
        %v3108 = vsub.s32 1, %v3107
        %v3109 = vrot.slane %v2893, %v3108
        %v3110 = vlaneseq
        %v3111 = vshrl.u32 %v3110, 7
        %v3112 = vsub.s32 2, %v3111
        %v3113 = vrot.slane %v2893, %v3112
        %v3114 = vlaneseq
        %v3115 = vshrl.u32 %v3114, 7
        %v3116 = vsub.s32 3, %v3115
        %v3117 = vrot.slane %v2893, %v3116
        %v3118 = vlaneseq
        %v3119 = vshrl.u32 %v3118, 7
        %v3120 = vsub.s32 4, %v3119
        %v3121 = vrot.slane %v2893, %v3120
        %v3122 = vlaneseq
        %v3123 = vshrl.u32 %v3122, 7
        %v3124 = vsub.s32 5, %v3123
        %v3125 = vrot.slane %v2893, %v3124
        %v3126 = vlaneseq
        %v3127 = vshrl.u32 %v3126, 7
        %v3128 = vsub.s32 6, %v3127
        %v3129 = vrot.slane %v2893, %v3128
        %v3130 = vlaneseq
        %v3131 = vshrl.u32 %v3130, 7
        %v3132 = vsub.s32 7, %v3131
        %v3133 = vrot.slane %v2893, %v3132
        %v3134 = vlaneseq
        %v3135 = vshrl.u32 %v3134, 7
        %v3136 = vsub.s32 0, %v3135
        %v3137 = vrot.slane %v2895, %v3136
        %v3147 = vadd.f32 %v3037, %v3105
        %v3148 = vadd.f32 %v3038, %v3109
        %v3149 = vadd.f32 %v3039, %v3113
        %v3150 = vadd.f32 %v3040, %v3117
        %v3151 = vadd.f32 %v3041, %v3121
        %v3152 = vadd.f32 %v3042, %v3125
        %v3153 = vadd.f32 %v3043, %v3129
        %v3154 = vadd.f32 %v3044, %v3133
        %v3155 = vadd.f32 %v3045, %v3137
        %v3156 = vadd.f32 %v3046, %v3105
        %v3157 = vadd.f32 %v3047, %v3109
        %v3158 = vadd.f32 %v3048, %v3113
        %v3159 = vadd.f32 %v3049, %v3117
        %v3160 = vadd.f32 %v3050, %v3121
        %v3161 = vadd.f32 %v3051, %v3125
        %v3162 = vadd.f32 %v3052, %v3129
        %v3163 = vadd.f32 %v3053, %v3133
        %v3164 = vadd.f32 %v3054, %v3137
        %v3165 = vadd.f32 %v3055, %v3105
        %v3166 = vadd.f32 %v3056, %v3109
        %v3167 = vadd.f32 %v3057, %v3113
        %v3168 = vadd.f32 %v3058, %v3117
        %v3169 = vadd.f32 %v3059, %v3121
        %v3170 = vadd.f32 %v3060, %v3125
        %v3171 = vadd.f32 %v3061, %v3129
        %v3172 = vadd.f32 %v3062, %v3133
        %v3173 = vadd.f32 %v3063, %v3137
        %v3174 = vadd.f32 %v3064, %v3105
        %v3175 = vadd.f32 %v3065, %v3109
        %v3176 = vadd.f32 %v3066, %v3113
        %v3177 = vadd.f32 %v3067, %v3117
        %v3178 = vadd.f32 %v3068, %v3121
        %v3179 = vadd.f32 %v3069, %v3125
        %v3180 = vadd.f32 %v3070, %v3129
        %v3181 = vadd.f32 %v3071, %v3133
        %v3182 = vadd.f32 %v3072, %v3137
        %v3183 = vadd.f32 %v3073, %v3105
        %v3184 = vadd.f32 %v3074, %v3109
        %v3185 = vadd.f32 %v3075, %v3113
        %v3186 = vadd.f32 %v3076, %v3117
        %v3187 = vadd.f32 %v3077, %v3121
        %v3188 = vadd.f32 %v3078, %v3125
        %v3189 = vadd.f32 %v3079, %v3129
        %v3190 = vadd.f32 %v3080, %v3133
        %v3191 = vadd.f32 %v3081, %v3137
        %v3192 = vadd.f32 %v3082, %v3105
        %v3193 = vadd.f32 %v3083, %v3109
        %v3194 = vadd.f32 %v3084, %v3113
        %v3195 = vadd.f32 %v3085, %v3117
        %v3196 = vadd.f32 %v3086, %v3121
        %v3197 = vadd.f32 %v3087, %v3125
        %v3198 = vadd.f32 %v3088, %v3129
        %v3199 = vadd.f32 %v3089, %v3133
        %v3200 = vadd.f32 %v3090, %v3137
        %v3201 = vadd.f32 %v3091, %v3105
        %v3202 = vadd.f32 %v3092, %v3109
        %v3203 = vadd.f32 %v3093, %v3113
        %v3204 = vadd.f32 %v3094, %v3117
        %v3205 = vadd.f32 %v3095, %v3121
        %v3206 = vadd.f32 %v3096, %v3125
        %v3207 = vadd.f32 %v3097, %v3129
        %v3208 = vadd.f32 %v3098, %v3133
        %v3209 = vadd.f32 %v3099, %v3137
        %3210 = vst [vmem:[%s249] sm:$0xff] %v3147
        %3211 = vst [vmem:[%s249 + $0x8] sm:$0xff] %v3148
        %3212 = vst [vmem:[%s249 + $0x10] sm:$0xff] %v3149
        %3213 = vst [vmem:[%s249 + $0x18] sm:$0xff] %v3150
        %3214 = vst [vmem:[%s249 + $0x20] sm:$0xff] %v3151
        %3215 = vst [vmem:[%s249 + $0x28] sm:$0xff] %v3152
        %3216 = vst [vmem:[%s249 + $0x30] sm:$0xff] %v3153
        %3217 = vst [vmem:[%s249 + $0x38] sm:$0xff] %v3154
        %3218 = vst [vmem:[%s249 + $0x40] sm:$0xff] %v3155
        %3219 = vst [vmem:[%s249 + $0x48] sm:$0xff] %v3156
        %3220 = vst [vmem:[%s249 + $0x50] sm:$0xff] %v3157
        %3221 = vst [vmem:[%s249 + $0x58] sm:$0xff] %v3158
        %3222 = vst [vmem:[%s249 + $0x60] sm:$0xff] %v3159
        %3223 = vst [vmem:[%s249 + $0x68] sm:$0xff] %v3160
        %3224 = vst [vmem:[%s249 + $0x70] sm:$0xff] %v3161
        %3225 = vst [vmem:[%s249 + $0x78] sm:$0xff] %v3162
        %3226 = vst [vmem:[%s249 + $0x80] sm:$0xff] %v3163
        %3227 = vst [vmem:[%s249 + $0x88] sm:$0xff] %v3164
        %3228 = vst [vmem:[%s249 + $0x90] sm:$0xff] %v3165
        %3229 = vst [vmem:[%s249 + $0x98] sm:$0xff] %v3166
        %3230 = vst [vmem:[%s249 + $0xa0] sm:$0xff] %v3167
        %3231 = vst [vmem:[%s249 + $0xa8] sm:$0xff] %v3168
        %3232 = vst [vmem:[%s249 + $0xb0] sm:$0xff] %v3169
        %3233 = vst [vmem:[%s249 + $0xb8] sm:$0xff] %v3170
        %3234 = vst [vmem:[%s249 + $0xc0] sm:$0xff] %v3171
        %3235 = vst [vmem:[%s249 + $0xc8] sm:$0xff] %v3172
        %3236 = vst [vmem:[%s249 + $0xd0] sm:$0xff] %v3173
        %3237 = vst [vmem:[%s249 + $0xd8] sm:$0xff] %v3174
        %3238 = vst [vmem:[%s249 + $0xe0] sm:$0xff] %v3175
        %3239 = vst [vmem:[%s249 + $0xe8] sm:$0xff] %v3176
        %3240 = vst [vmem:[%s249 + $0xf0] sm:$0xff] %v3177
        %3241 = vst [vmem:[%s249 + $0xf8] sm:$0xff] %v3178
        %3242 = vst [vmem:[%s249 + $0x100] sm:$0xff] %v3179
        %3243 = vst [vmem:[%s249 + $0x108] sm:$0xff] %v3180
        %3244 = vst [vmem:[%s249 + $0x110] sm:$0xff] %v3181
        %3245 = vst [vmem:[%s249 + $0x118] sm:$0xff] %v3182
        %3246 = vst [vmem:[%s249 + $0x120] sm:$0xff] %v3183
        %3247 = vst [vmem:[%s249 + $0x128] sm:$0xff] %v3184
        %3248 = vst [vmem:[%s249 + $0x130] sm:$0xff] %v3185
        %3249 = vst [vmem:[%s249 + $0x138] sm:$0xff] %v3186
        %3250 = vst [vmem:[%s249 + $0x140] sm:$0xff] %v3187
        %3251 = vst [vmem:[%s249 + $0x148] sm:$0xff] %v3188
        %3252 = vst [vmem:[%s249 + $0x150] sm:$0xff] %v3189
        %3253 = vst [vmem:[%s249 + $0x158] sm:$0xff] %v3190
        %3254 = vst [vmem:[%s249 + $0x160] sm:$0xff] %v3191
        %3255 = vst [vmem:[%s249 + $0x168] sm:$0xff] %v3192
        %3256 = vst [vmem:[%s249 + $0x170] sm:$0xff] %v3193
        %3257 = vst [vmem:[%s249 + $0x178] sm:$0xff] %v3194
        %3258 = vst [vmem:[%s249 + $0x180] sm:$0xff] %v3195
        %3259 = vst [vmem:[%s249 + $0x188] sm:$0xff] %v3196
        %3260 = vst [vmem:[%s249 + $0x190] sm:$0xff] %v3197
        %3261 = vst [vmem:[%s249 + $0x198] sm:$0xff] %v3198
        %3262 = vst [vmem:[%s249 + $0x1a0] sm:$0xff] %v3199
        %3263 = vst [vmem:[%s249 + $0x1a8] sm:$0xff] %v3200
        %3264 = vst [vmem:[%s249 + $0x1b0] sm:$0x1] %v3201
        %3265 = vst [vmem:[%s249 + $0x1b8] sm:$0x1] %v3202
        %3266 = vst [vmem:[%s249 + $0x1c0] sm:$0x1] %v3203
        %3267 = vst [vmem:[%s249 + $0x1c8] sm:$0x1] %v3204
        %3268 = vst [vmem:[%s249 + $0x1d0] sm:$0x1] %v3205
        %3269 = vst [vmem:[%s249 + $0x1d8] sm:$0x1] %v3206
        %3270 = vst [vmem:[%s249 + $0x1e0] sm:$0x1] %v3207
        %3271 = vst [vmem:[%s249 + $0x1e8] sm:$0x1] %v3208
        %3272 = vst [vmem:[%s249 + $0x1f0] sm:$0x1] %v3209
        %s3273 = sand.u32 %s123, 1
        %s3274 = sand.u32 %s123, 1
        %s3275 = smul.addr %s3274, 504
        %s3276 = scalar_lea.vmem [#allocation6], %s3275
        // Predicated region
        $region45: #{fused_add_conv1x1_bn.1} parent=35 // pred_check
          %p3277 = pneg %p133
        $region46: #{fused_add_conv1x1_bn.1} parent=35 // pred_check_branch
          %3279 = sbr.rel (%p3277) target = $region48
        $region47: #{fused_add_conv1x1_bn.1} parent=35 // pred_region
          %s3280 = smul.u32 9, %s21
          %s3281 = smul.addr %s3280, 8
          %s3282 = scalar_lea.vmem %s4, %s3281
          // Predicated region
          $region49: #{fused_add_conv1x1_bn.1} parent=47 // pred_check
            _
          $region50: #{fused_add_conv1x1_bn.1} parent=47 // pred_check_branch
            %3284 = sbr.rel (0) target = $region52
          $region51: #{fused_add_conv1x1_bn.1} parent=47 // pred_region
            // Predicated region
            $region53: #{fused_add_conv1x1_bn.1} parent=51 // pred_check
              _
            $region54: #{fused_add_conv1x1_bn.1} parent=51 // pred_check_branch
              %3286 = sbr.rel (0) target = $region56
            $region55: #{fused_add_conv1x1_bn.1} parent=51 // pred_region
              loop: start=0, step=1, limit=1
              $region57: #{fused_add_conv1x1_bn.1} parent=55 // loop_pre_header
                _
              $region58: #{fused_add_conv1x1_bn.1} parent=55 // loop_header
                %s3288 = sphi 0, %s3292
                %p3289 = scmp.ge.s32.totalorder %s3288, 1
                %s3293 = sphi %s3276, %s3276
                %s3294 = sphi %s3282, %s3282
              $region59: #{fused_add_conv1x1_bn.1} parent=55 // loop_header_branch
                %3291 = sbr.rel (%p3289) target = $region63
              $region60: #{fused_add_conv1x1_bn.1} parent=55 // loop_body
                %v3295 = vld [vmem:[%s3293] sm:$0xff]
                %3296 = vst [vmem:[%s3294] sm:$0xff] %v3295
                %v3297 = vld [vmem:[%s3293 + $0x8] sm:$0xff]
                %3298 = vst [vmem:[%s3294 + $0x8] sm:$0xff] %v3297
                %v3299 = vld [vmem:[%s3293 + $0x10] sm:$0xff]
                %3300 = vst [vmem:[%s3294 + $0x10] sm:$0xff] %v3299
                %v3301 = vld [vmem:[%s3293 + $0x18] sm:$0xff]
                %3302 = vst [vmem:[%s3294 + $0x18] sm:$0xff] %v3301
                %v3303 = vld [vmem:[%s3293 + $0x20] sm:$0xff]
                %3304 = vst [vmem:[%s3294 + $0x20] sm:$0xff] %v3303
                %v3305 = vld [vmem:[%s3293 + $0x28] sm:$0xff]
                %3306 = vst [vmem:[%s3294 + $0x28] sm:$0xff] %v3305
                %v3307 = vld [vmem:[%s3293 + $0x30] sm:$0xff]
                %3308 = vst [vmem:[%s3294 + $0x30] sm:$0xff] %v3307
                %v3309 = vld [vmem:[%s3293 + $0x38] sm:$0xff]
                %3310 = vst [vmem:[%s3294 + $0x38] sm:$0xff] %v3309
                %v3311 = vld [vmem:[%s3293 + $0x40] sm:$0xff]
                %3312 = vst [vmem:[%s3294 + $0x40] sm:$0xff] %v3311
                %v3313 = vld [vmem:[%s3293 + $0x48] sm:$0xff]
                %3314 = vst [vmem:[%s3294 + $0x90] sm:$0xff] %v3313
                %v3315 = vld [vmem:[%s3293 + $0x50] sm:$0xff]
                %3316 = vst [vmem:[%s3294 + $0x98] sm:$0xff] %v3315
                %v3317 = vld [vmem:[%s3293 + $0x58] sm:$0xff]
                %3318 = vst [vmem:[%s3294 + $0xa0] sm:$0xff] %v3317
                %v3319 = vld [vmem:[%s3293 + $0x60] sm:$0xff]
                %3320 = vst [vmem:[%s3294 + $0xa8] sm:$0xff] %v3319
                %v3321 = vld [vmem:[%s3293 + $0x68] sm:$0xff]
                %3322 = vst [vmem:[%s3294 + $0xb0] sm:$0xff] %v3321
                %v3323 = vld [vmem:[%s3293 + $0x70] sm:$0xff]
                %3324 = vst [vmem:[%s3294 + $0xb8] sm:$0xff] %v3323
                %v3325 = vld [vmem:[%s3293 + $0x78] sm:$0xff]
                %3326 = vst [vmem:[%s3294 + $0xc0] sm:$0xff] %v3325
                %v3327 = vld [vmem:[%s3293 + $0x80] sm:$0xff]
                %3328 = vst [vmem:[%s3294 + $0xc8] sm:$0xff] %v3327
                %v3329 = vld [vmem:[%s3293 + $0x88] sm:$0xff]
                %3330 = vst [vmem:[%s3294 + $0xd0] sm:$0xff] %v3329
                %v3331 = vld [vmem:[%s3293 + $0x90] sm:$0xff]
                %3332 = vst [vmem:[%s3294 + $0x120] sm:$0xff] %v3331
                %v3333 = vld [vmem:[%s3293 + $0x98] sm:$0xff]
                %3334 = vst [vmem:[%s3294 + $0x128] sm:$0xff] %v3333
                %v3335 = vld [vmem:[%s3293 + $0xa0] sm:$0xff]
                %3336 = vst [vmem:[%s3294 + $0x130] sm:$0xff] %v3335
                %v3337 = vld [vmem:[%s3293 + $0xa8] sm:$0xff]
                %3338 = vst [vmem:[%s3294 + $0x138] sm:$0xff] %v3337
                %v3339 = vld [vmem:[%s3293 + $0xb0] sm:$0xff]
                %3340 = vst [vmem:[%s3294 + $0x140] sm:$0xff] %v3339
                %v3341 = vld [vmem:[%s3293 + $0xb8] sm:$0xff]
                %3342 = vst [vmem:[%s3294 + $0x148] sm:$0xff] %v3341
                %v3343 = vld [vmem:[%s3293 + $0xc0] sm:$0xff]
                %3344 = vst [vmem:[%s3294 + $0x150] sm:$0xff] %v3343
                %v3345 = vld [vmem:[%s3293 + $0xc8] sm:$0xff]
                %3346 = vst [vmem:[%s3294 + $0x158] sm:$0xff] %v3345
                %v3347 = vld [vmem:[%s3293 + $0xd0] sm:$0xff]
                %3348 = vst [vmem:[%s3294 + $0x160] sm:$0xff] %v3347
                %v3349 = vld [vmem:[%s3293 + $0xd8] sm:$0xff]
                %3350 = vst [vmem:[%s3294 + $0x1b0] sm:$0xff] %v3349
                %v3351 = vld [vmem:[%s3293 + $0xe0] sm:$0xff]
                %3352 = vst [vmem:[%s3294 + $0x1b8] sm:$0xff] %v3351
                %v3353 = vld [vmem:[%s3293 + $0xe8] sm:$0xff]
                %3354 = vst [vmem:[%s3294 + $0x1c0] sm:$0xff] %v3353
                %v3355 = vld [vmem:[%s3293 + $0xf0] sm:$0xff]
                %3356 = vst [vmem:[%s3294 + $0x1c8] sm:$0xff] %v3355
                %v3357 = vld [vmem:[%s3293 + $0xf8] sm:$0xff]
                %3358 = vst [vmem:[%s3294 + $0x1d0] sm:$0xff] %v3357
                %v3359 = vld [vmem:[%s3293 + $0x100] sm:$0xff]
                %3360 = vst [vmem:[%s3294 + $0x1d8] sm:$0xff] %v3359
                %v3361 = vld [vmem:[%s3293 + $0x108] sm:$0xff]
                %3362 = vst [vmem:[%s3294 + $0x1e0] sm:$0xff] %v3361
                %v3363 = vld [vmem:[%s3293 + $0x110] sm:$0xff]
                %3364 = vst [vmem:[%s3294 + $0x1e8] sm:$0xff] %v3363
                %v3365 = vld [vmem:[%s3293 + $0x118] sm:$0xff]
                %3366 = vst [vmem:[%s3294 + $0x1f0] sm:$0xff] %v3365
                %v3367 = vld [vmem:[%s3293 + $0x120] sm:$0xff]
                %3368 = vst [vmem:[%s3294 + $0x240] sm:$0xff] %v3367
                %v3369 = vld [vmem:[%s3293 + $0x128] sm:$0xff]
                %3370 = vst [vmem:[%s3294 + $0x248] sm:$0xff] %v3369
                %v3371 = vld [vmem:[%s3293 + $0x130] sm:$0xff]
                %3372 = vst [vmem:[%s3294 + $0x250] sm:$0xff] %v3371
                %v3373 = vld [vmem:[%s3293 + $0x138] sm:$0xff]
                %3374 = vst [vmem:[%s3294 + $0x258] sm:$0xff] %v3373
                %v3375 = vld [vmem:[%s3293 + $0x140] sm:$0xff]
                %3376 = vst [vmem:[%s3294 + $0x260] sm:$0xff] %v3375
                %v3377 = vld [vmem:[%s3293 + $0x148] sm:$0xff]
                %3378 = vst [vmem:[%s3294 + $0x268] sm:$0xff] %v3377
                %v3379 = vld [vmem:[%s3293 + $0x150] sm:$0xff]
                %3380 = vst [vmem:[%s3294 + $0x270] sm:$0xff] %v3379
                %v3381 = vld [vmem:[%s3293 + $0x158] sm:$0xff]
                %3382 = vst [vmem:[%s3294 + $0x278] sm:$0xff] %v3381
                %v3383 = vld [vmem:[%s3293 + $0x160] sm:$0xff]
                %3384 = vst [vmem:[%s3294 + $0x280] sm:$0xff] %v3383
                %v3385 = vld [vmem:[%s3293 + $0x168] sm:$0xff]
                %3386 = vst [vmem:[%s3294 + $0x2d0] sm:$0xff] %v3385
                %v3387 = vld [vmem:[%s3293 + $0x170] sm:$0xff]
                %3388 = vst [vmem:[%s3294 + $0x2d8] sm:$0xff] %v3387
                %v3389 = vld [vmem:[%s3293 + $0x178] sm:$0xff]
                %3390 = vst [vmem:[%s3294 + $0x2e0] sm:$0xff] %v3389
                %v3391 = vld [vmem:[%s3293 + $0x180] sm:$0xff]
                %3392 = vst [vmem:[%s3294 + $0x2e8] sm:$0xff] %v3391
                %v3393 = vld [vmem:[%s3293 + $0x188] sm:$0xff]
                %3394 = vst [vmem:[%s3294 + $0x2f0] sm:$0xff] %v3393
                %v3395 = vld [vmem:[%s3293 + $0x190] sm:$0xff]
                %3396 = vst [vmem:[%s3294 + $0x2f8] sm:$0xff] %v3395
                %v3397 = vld [vmem:[%s3293 + $0x198] sm:$0xff]
                %3398 = vst [vmem:[%s3294 + $0x300] sm:$0xff] %v3397
                %v3399 = vld [vmem:[%s3293 + $0x1a0] sm:$0xff]
                %3400 = vst [vmem:[%s3294 + $0x308] sm:$0xff] %v3399
                %v3401 = vld [vmem:[%s3293 + $0x1a8] sm:$0xff]
                %3402 = vst [vmem:[%s3294 + $0x310] sm:$0xff] %v3401
                %v3403 = vld [vmem:[%s3293 + $0x1b0] sm:$0xff]
                %3404 = vst [vmem:[%s3294 + $0x360] sm:$0xff] %v3403
                %v3405 = vld [vmem:[%s3293 + $0x1b8] sm:$0xff]
                %3406 = vst [vmem:[%s3294 + $0x368] sm:$0xff] %v3405
                %v3407 = vld [vmem:[%s3293 + $0x1c0] sm:$0xff]
                %3408 = vst [vmem:[%s3294 + $0x370] sm:$0xff] %v3407
                %v3409 = vld [vmem:[%s3293 + $0x1c8] sm:$0xff]
                %3410 = vst [vmem:[%s3294 + $0x378] sm:$0xff] %v3409
                %v3411 = vld [vmem:[%s3293 + $0x1d0] sm:$0xff]
                %3412 = vst [vmem:[%s3294 + $0x380] sm:$0xff] %v3411
                %v3413 = vld [vmem:[%s3293 + $0x1d8] sm:$0xff]
                %3414 = vst [vmem:[%s3294 + $0x388] sm:$0xff] %v3413
                %v3415 = vld [vmem:[%s3293 + $0x1e0] sm:$0xff]
                %3416 = vst [vmem:[%s3294 + $0x390] sm:$0xff] %v3415
                %v3417 = vld [vmem:[%s3293 + $0x1e8] sm:$0xff]
                %3418 = vst [vmem:[%s3294 + $0x398] sm:$0xff] %v3417
                %v3419 = vld [vmem:[%s3293 + $0x1f0] sm:$0xff]
                %3420 = vst [vmem:[%s3294 + $0x3a0] sm:$0xff] %v3419
              $region61: #{fused_add_conv1x1_bn.1} parent=55 // loop_footer
                %s3292 = sadd.s32 1, %s3288
              $region62: #{fused_add_conv1x1_bn.1} parent=55 // loop_footer_branch
                %3287 = sbr.rel target = $region58
              $region63: #{fused_add_conv1x1_bn.1} parent=55 // loop_exit
                _
            $region56: #{fused_add_conv1x1_bn.1} parent=51 // pred_fallthru
              _
            // Predicated region
            $region64: #{fused_add_conv1x1_bn.1} parent=51 // pred_check
              _
            $region65: #{fused_add_conv1x1_bn.1} parent=51 // pred_check_branch
              %3422 = sbr.rel target = $region67
            $region66: #{fused_add_conv1x1_bn.1} parent=51 // pred_region
              _
            $region67: #{fused_add_conv1x1_bn.1} parent=51 // pred_fallthru
              _
          $region52: #{fused_add_conv1x1_bn.1} parent=47 // pred_fallthru
            _
          %3423 = vnop
        $region48: #{fused_add_conv1x1_bn.1} parent=35 // pred_fallthru
          _
      $region36: #{fused_add_conv1x1_bn.1} parent=5 // pred_fallthru
        _
      %p3424 = scmp.le.s32.totalorder 2, %s16
      // Predicated region
      $region68: #{fused_add_conv1x1_bn.1} parent=5 // pred_check
        %p3425 = pneg %p3424
      $region69: #{fused_add_conv1x1_bn.1} parent=5 // pred_check_branch
        %3427 = sbr.rel (%p3425) target = $region71
      $region70: #{fused_add_conv1x1_bn.1} parent=5 // pred_region
        %s3428 = ssub.s32 %s16, 2
        // Predicated region
        $region72: #{fused_add_conv1x1_bn.1} parent=70 // pred_check
          %p3429 = pneg %p139
        $region73: #{fused_add_conv1x1_bn.1} parent=70 // pred_check_branch
          %3431 = sbr.rel (%p3429) target = $region75
        $region74: #{fused_add_conv1x1_bn.1} parent=70 // pred_region
          %s3432 = sand.u32 %s124, 1
          %s3433 = sand.u32 %s124, 1
          %s3434 = smul.addr %s3433, 504
          %s3435 = scalar_lea.vmem [#allocation6], %s3434
        $region75: #{fused_add_conv1x1_bn.1} parent=70 // pred_fallthru
          _
      $region71: #{fused_add_conv1x1_bn.1} parent=5 // pred_fallthru
        _
    $region6: #{fused_add_conv1x1_bn.1} parent=1 // loop_footer
      %s20 = sadd.s32 1, %s16
    $region7: #{fused_add_conv1x1_bn.1} parent=1 // loop_footer_branch
      %15 = sbr.rel target = $region3
    $region8: #{fused_add_conv1x1_bn.1} parent=1 // loop_exit
      _
    %3436 = vsyncpa [#allocation3], 1
    %s3437 = scalar_lea.sflag [#allocation3], 1
    %3438 = vsyncpa %s3437, 1
    %3439 = vsyncpa [#allocation5], 1
    %s3440 = scalar_lea.sflag [#allocation5], 1
    %3441 = vsyncpa %s3440, 1

</llo_original>
